<compile_context>
chip_gen: v7x
topology: tpu7x:2x2x1
jax: 0.10.0
libtpu: 0.0.40
codegen_flags: <defaults>
</compile_context>

<pallas_src>
import functools
import math

import jax
import jax.numpy as jnp
from jax.experimental import pallas as pl
from jax.experimental.pallas import tpu as pltpu


_SQRT_2_OVER_PI = math.sqrt(2.0 / math.pi)


def _gelu(x):
    # tanh-approximate GELU: the tanh goes to the otherwise-idle EUP slot,
    # instead of lax.erf's long VPU polynomial (kernel is VPU-bound).
    return 0.5 * x * (1.0 + jnp.tanh(_SQRT_2_OVER_PI * (x + 0.044715 * x * x * x)))


def _scm_kernel(H, W, B, CINP, C1, C2, COUT,
                x_ref, m_ref, sel_ref,
                w1_ref, b1_ref, w2_ref, b2_ref, w3_ref, b3_ref,
                w4_ref, b4_ref, gamma_ref, beta_ref,
                out_ref, cols_ref):
    HW = H * W
    L = B * HW                       # lane dim: B images, flattened HxW each
    taps = [(dy, dx) for dy in (-1, 0, 1) for dx in (-1, 0, 1)]
    # Precomputed (grid-invariant) halo masks, loaded once per step.
    masks = [m_ref[t:t + 1, :] for t in range(9)]            # each (1, L)

    def shift(h, t):
        # h[:, p] -> value at (y+dy, x+dx) of the same image, 0 outside.
        dy, dx = taps[t]
        if dy == 0 and dx == 0:
            return h
        s = dy * W + dx
        rolled = pltpu.roll(h, shift=(-s) % L, axis=1)        # rolled[p] = h[p+s]
        return rolled * masks[t]

    # ---- conv1: 3x3, CINP -> C1 (single matmul, K = 9*CINP), bias, GELU ----
    xin = x_ref[...]                                          # (CINP, L)
    for t in range(9):
        cols_ref[t * CINP:(t + 1) * CINP, :] = shift(xin, t)
    h1 = _gelu(jnp.dot(w1_ref[...], cols_ref[0:9 * CINP, :],
                       preferred_element_type=jnp.float32) + b1_ref[...])

    # ---- conv2: 1x1, C1 -> C2, bias, GELU -----------------------------------
    h2 = _gelu(jnp.dot(w2_ref[...], h1,
                       preferred_element_type=jnp.float32) + b2_ref[...])

    # ---- conv3: 3x3, C2 -> C2 (single matmul, K = 9*C2); reuses scratch -----
    for t in range(9):
        cols_ref[t * C2:(t + 1) * C2, :] = shift(h2, t)
    h3 = _gelu(jnp.dot(w3_ref[...], cols_ref[0:9 * C2, :],
                       preferred_element_type=jnp.float32) + b3_ref[...])

    # ---- conv4: 1x1, C2 -> COUT, bias (no activation) -----------------------
    h4 = jnp.dot(w4_ref[...], h3,
                 preferred_element_type=jnp.float32) + b4_ref[...]   # (COUT, L)

    # ---- InstanceNorm2d(COUT, affine) ---------------------------------------
    # Per-image sums / sums-of-squares via MXU dots against a block-ones
    # selector (frees the XLU, which is busy with the rolls), then a fused
    # scale/shift epilogue: out = h4 * scale + offset.
    sel = sel_ref[...]                                                  # (L, B)
    sums = jnp.dot(h4, sel, preferred_element_type=jnp.float32)         # (COUT, B)
    sumsq = jnp.dot(h4 * h4, sel, preferred_element_type=jnp.float32)   # (COUT, B)
    inv_hw = 1.0 / HW
    mean = sums * inv_hw
    var = sumsq * inv_hw - mean * mean
    scale = gamma_ref[...] * jax.lax.rsqrt(var + 1e-5)                  # (COUT, B)
    offs = beta_ref[...] - mean * scale                                 # (COUT, B)
    for b in range(B):
        out_ref[b, :, :] = (h4[:, b * HW:(b + 1) * HW] * scale[:, b:b + 1]
                            + offs[:, b:b + 1])


def _step_vmem_bytes(bt, hw, cinp, c2, cout):
    """Rough per-grid-step VMEM footprint (bytes) for b_tile = bt."""
    L = bt * hw
    words_per_lane = (2 * cinp              # input block (double-buffered)
                      + 2 * 9               # halo masks (resident)
                      + 2 * cout            # output block (double-buffered)
                      + 9 * max(cinp, c2)   # shared im2col scratch
                      + 192)                # f32 temporaries (h1..h4, rolls, gelu)
    sel_bytes = 2 * bt * L * 4              # block-ones selector (resident)
    return words_per_lane * L * 4 + sel_bytes


def _pick_b_tile(n, hw, cinp, c2, cout, vmem_budget, max_tile=32):
    """Largest per-step image count that stays inside the VMEM budget."""
    best = 1
    for bt in range(1, max(1, min(n, max_tile)) + 1):
        if _step_vmem_bytes(bt, hw, cinp, c2, cout) <= vmem_budget:
            best = bt
    return best


def init_params(key, out_plane):
    c1, c2, cout = out_plane // 4, out_plane // 2, out_plane
    ks = jax.random.split(key, 10)

    def u(k, shape, fan_in):
        bound = 1.0 / math.sqrt(fan_in)
        return jax.random.uniform(k, shape, jnp.float32, -bound, bound)

    return dict(
        w1=u(ks[0], (3, 3, 3, c1), 3 * 9),   b1=u(ks[1], (1, c1), 3 * 9),
        w2=u(ks[2], (c1, c2), c1),           b2=u(ks[3], (1, c2), c1),
        w3=u(ks[4], (3, 3, c2, c2), c2 * 9), b3=u(ks[5], (1, c2), c2 * 9),
        w4=u(ks[6], (c2, cout), c2),         b4=u(ks[7], (1, cout), c2),
        gamma=1.0 + 0.1 * jax.random.normal(ks[8], (1, cout), jnp.float32),
        beta=0.1 * jax.random.normal(ks[9], (1, cout), jnp.float32),
    )


def scm_forward(x_nchw, params, out_plane, b_tile=None, max_tile=32):
    assert out_plane % 4 == 0
    # (fast path assumes out_plane a multiple of 32 so c1/c2 are sublane-aligned)
    c1, c2, cout = out_plane // 4, out_plane // 2, out_plane
    N, CIN, H, W = x_nchw.shape
    HW = H * W
    assert HW % 128 == 0, "H*W must be a multiple of 128 (lane-aligned images)"
    cinp = -(-CIN // 8) * 8                     # input channels padded to 8

    # Generation-aware VMEM budget (v7x has 64 MiB, v5e/v6e 128 MiB).
    try:
        vmem_cap = int(pltpu.get_tpu_info().vmem_capacity_bytes)
    except Exception:
        vmem_cap = 64 << 20
    if b_tile is None:
        b_tile = _pick_b_tile(N, HW, cinp, c2, cout,
                              vmem_budget=int(0.45 * vmem_cap),
                              max_tile=max_tile)
    vmem_limit = min(int(0.9 * vmem_cap), 128 << 20)

    # Pad the batch up to a multiple of b_tile (awkward N keeps fat steps).
    pad_n = (-N) % b_tile
    n_pad = N + pad_n
    L = b_tile * HW

    # Input: NCHW -> (CINP, n_pad*H*W); channels on sublanes, batch+spatial on
    # lanes.  This tiny 3-channel arrange is negligible HBM traffic.
    x = x_nchw.astype(jnp.float32).reshape(N, CIN, HW)
    if pad_n:
        x = jnp.pad(x, ((0, pad_n), (0, 0), (0, 0)))
    xp = jnp.pad(jnp.transpose(x, (1, 0, 2)).reshape(CIN, n_pad * HW),
                 ((0, cinp - CIN), (0, 0)))

    # Grid-invariant constants: halo masks (9, L) and block-ones selector (L, B).
    taps = [(dy, dx) for dy in (-1, 0, 1) for dx in (-1, 0, 1)]
    pos = jnp.arange(HW, dtype=jnp.int32)
    xc, yr = pos % W, pos // W
    mrows = []
    for dy, dx in taps:
        ok = ((xc + dx >= 0) & (xc + dx < W) & (yr + dy >= 0) & (yr + dy < H))
        mrows.append(ok)
    masks = jnp.tile(jnp.stack(mrows).astype(jnp.float32), (1, b_tile))   # (9, L)
    sel = jnp.repeat(jnp.eye(b_tile, dtype=jnp.float32), HW, axis=0)      # (L, B)

    # Weights -> (C_out, K) matmul layout; 3x3 kernels flattened as (ky, kx, ci)
    # to match the im2col slab row order built in the kernel.
    w1 = jnp.pad(params['w1'], ((0, 0), (0, 0), (0, cinp - CIN), (0, 0)))
    w1m = jnp.transpose(w1, (3, 0, 1, 2)).reshape(c1, 9 * cinp)
    w3m = jnp.transpose(params['w3'], (3, 0, 1, 2)).reshape(c2, 9 * c2)
    w2m = params['w2'].T                     # (C2, C1)
    w4m = params['w4'].T                     # (COUT, C2)
    b1 = params['b1'].reshape(c1, 1)
    b2 = params['b2'].reshape(c2, 1)
    b3 = params['b3'].reshape(c2, 1)
    b4 = params['b4'].reshape(cout, 1)
    gamma = params['gamma'].reshape(cout, 1)
    beta = params['beta'].reshape(cout, 1)

    kernel = functools.partial(_scm_kernel, H, W, b_tile, cinp, c1, c2, cout)

    def const_spec(a):
        # Whole array, same block every step -> stays resident (no re-DMA).
        return pl.BlockSpec(a.shape, lambda i, nd=a.ndim: (0,) * nd)

    const_args = (masks, sel, w1m, b1, w2m, b2, w3m, b3, w4m, b4, gamma, beta)

    out = pl.pallas_call(
        kernel,
        grid=(n_pad // b_tile,),
        in_specs=[pl.BlockSpec((cinp, L), lambda i: (0, i))]
                 + [const_spec(a) for a in const_args],
        out_specs=pl.BlockSpec((b_tile, cout, HW), lambda i: (i, 0, 0)),
        out_shape=jax.ShapeDtypeStruct((n_pad, cout, HW), jnp.float32),
        scratch_shapes=[pltpu.VMEM((9 * max(cinp, c2), L), jnp.float32)],
        compiler_params=pltpu.CompilerParams(
            dimension_semantics=("parallel",),
            vmem_limit_bytes=vmem_limit),
    )(xp, *const_args)
    if pad_n:
        out = out[:N]
    # lane-dense (N, C, H*W) -> NCHW is a free reshape (no HBM transpose pass)
    return out.reshape(N, cout, H, W)


def scm_reference(x_nchw, params, out_plane, approximate=True):
    """Pure-JAX (XLA) reference of the PyTorch module, for validation."""
    x = jnp.transpose(x_nchw, (0, 2, 3, 1)).astype(jnp.float32)

    def conv(h, w, b):
        if w.ndim == 2:
            w = w.reshape(1, 1, *w.shape)
        y = jax.lax.conv_general_dilated(
            h, w, (1, 1), 'SAME',
            dimension_numbers=('NHWC', 'HWIO', 'NHWC'))
        return y + b.reshape(1, 1, 1, -1)

    act = lambda v: jax.nn.gelu(v, approximate=approximate)
    h = act(conv(x, params['w1'], params['b1']))
    h = act(conv(h, params['w2'], params['b2']))
    h = act(conv(h, params['w3'], params['b3']))
    h = conv(h, params['w4'], params['b4'])
    mean = jnp.mean(h, axis=(1, 2), keepdims=True)
    var = jnp.mean((h - mean) ** 2, axis=(1, 2), keepdims=True)
    y = (h - mean) * jax.lax.rsqrt(var + 1e-5)
    y = (y * params['gamma'].reshape(1, 1, 1, -1)
         + params['beta'].reshape(1, 1, 1, -1))
    return jnp.transpose(y, (0, 3, 1, 2))


if __name__ == "__main__":
    out_plane = 32
    key = jax.random.PRNGKey(0)
    kx, kp = jax.random.split(key)
    x = jax.random.normal(kx, (4, 3, 16, 16), jnp.float32)   # NCHW like torch
    params = init_params(kp, out_plane)

    fwd = jax.jit(functools.partial(scm_forward, params=params,
                                    out_plane=out_plane))
    y = fwd(x)
    jax.block_until_ready(y)

    assert y.shape == (4, out_plane, 16, 16)
    # Validate against the matching (tanh-GELU) reference; the only documented
    # deviation from torch defaults is tanh- vs erf-GELU (~1e-3 level).
    y_ref = scm_reference(x, params, out_plane, approximate=True)
    err = float(jnp.max(jnp.abs(y - y_ref)))
    assert err < 1e-3, f"max abs error {err}"
    print("KERNEL_OK")
</pallas_src>

<mosaic_0001>
module attributes {stable_mosaic.version = 11 : i64} {
  func.func @_scm_kernel(%arg0: i32, %arg1: memref<8x1024xf32, #tpu.memory_space<vmem>>, %arg2: memref<9x1024xf32, #tpu.memory_space<vmem>>, %arg3: memref<1024x4xf32, #tpu.memory_space<vmem>>, %arg4: memref<8x72xf32, #tpu.memory_space<vmem>>, %arg5: memref<8x1xf32, #tpu.memory_space<vmem>>, %arg6: memref<16x8xf32, #tpu.memory_space<vmem>>, %arg7: memref<16x1xf32, #tpu.memory_space<vmem>>, %arg8: memref<16x144xf32, #tpu.memory_space<vmem>>, %arg9: memref<16x1xf32, #tpu.memory_space<vmem>>, %arg10: memref<32x16xf32, #tpu.memory_space<vmem>>, %arg11: memref<32x1xf32, #tpu.memory_space<vmem>>, %arg12: memref<32x1xf32, #tpu.memory_space<vmem>>, %arg13: memref<32x1xf32, #tpu.memory_space<vmem>>, %arg14: memref<4x32x256xf32, #tpu.memory_space<vmem>>, %arg15: memref<144x1024xf32, #tpu.memory_space<vmem>>) attributes {dimension_semantics = [#tpu.dimension_semantics<parallel>], iteration_bounds = array<i64: 1>, scalar_prefetch = 0 : i64, scratch_operands = 1 : i64, tpu.core_type = #tpu.core_type<tc>, window_params = [{transform_indices = @transform_0, window_bounds = array<i64: 8, 1024>}, {pipeline_mode = #tpu.pipeline_mode<synchronous>, transform_indices = @transform_1, window_bounds = array<i64: 9, 1024>}, {pipeline_mode = #tpu.pipeline_mode<synchronous>, transform_indices = @transform_2, window_bounds = array<i64: 1024, 4>}, {pipeline_mode = #tpu.pipeline_mode<synchronous>, transform_indices = @transform_3, window_bounds = array<i64: 8, 72>}, {pipeline_mode = #tpu.pipeline_mode<synchronous>, transform_indices = @transform_4, window_bounds = array<i64: 8, 1>}, {pipeline_mode = #tpu.pipeline_mode<synchronous>, transform_indices = @transform_5, window_bounds = array<i64: 16, 8>}, {pipeline_mode = #tpu.pipeline_mode<synchronous>, transform_indices = @transform_6, window_bounds = array<i64: 16, 1>}, {pipeline_mode = #tpu.pipeline_mode<synchronous>, transform_indices = @transform_7, window_bounds = array<i64: 16, 144>}, {pipeline_mode = #tpu.pipeline_mode<synchronous>, transform_indices = @transform_8, window_bounds = array<i64: 16, 1>}, {pipeline_mode = #tpu.pipeline_mode<synchronous>, transform_indices = @transform_9, window_bounds = array<i64: 32, 16>}, {pipeline_mode = #tpu.pipeline_mode<synchronous>, transform_indices = @transform_10, window_bounds = array<i64: 32, 1>}, {pipeline_mode = #tpu.pipeline_mode<synchronous>, transform_indices = @transform_11, window_bounds = array<i64: 32, 1>}, {pipeline_mode = #tpu.pipeline_mode<synchronous>, transform_indices = @transform_12, window_bounds = array<i64: 32, 1>}, {transform_indices = @transform_13, window_bounds = array<i64: 4, 32, 256>}]} {
    %c0 = arith.constant 0 : index
    %c0_0 = arith.constant 0 : index
    %0 = vector.load %arg2[%c0, %c0_0] : memref<9x1024xf32, #tpu.memory_space<vmem>>, vector<1x1024xf32>
    %c1 = arith.constant 1 : index
    %c0_1 = arith.constant 0 : index
    %1 = vector.load %arg2[%c1, %c0_1] : memref<9x1024xf32, #tpu.memory_space<vmem>>, vector<1x1024xf32>
    %c2 = arith.constant 2 : index
    %c0_2 = arith.constant 0 : index
    %2 = vector.load %arg2[%c2, %c0_2] : memref<9x1024xf32, #tpu.memory_space<vmem>>, vector<1x1024xf32>
    %c3 = arith.constant 3 : index
    %c0_3 = arith.constant 0 : index
    %3 = vector.load %arg2[%c3, %c0_3] : memref<9x1024xf32, #tpu.memory_space<vmem>>, vector<1x1024xf32>
    %c5 = arith.constant 5 : index
    %c0_4 = arith.constant 0 : index
    %4 = vector.load %arg2[%c5, %c0_4] : memref<9x1024xf32, #tpu.memory_space<vmem>>, vector<1x1024xf32>
    %c6 = arith.constant 6 : index
    %c0_5 = arith.constant 0 : index
    %5 = vector.load %arg2[%c6, %c0_5] : memref<9x1024xf32, #tpu.memory_space<vmem>>, vector<1x1024xf32>
    %c7 = arith.constant 7 : index
    %c0_6 = arith.constant 0 : index
    %6 = vector.load %arg2[%c7, %c0_6] : memref<9x1024xf32, #tpu.memory_space<vmem>>, vector<1x1024xf32>
    %c8 = arith.constant 8 : index
    %c0_7 = arith.constant 0 : index
    %7 = vector.load %arg2[%c8, %c0_7] : memref<9x1024xf32, #tpu.memory_space<vmem>>, vector<1x1024xf32>
    %c0_8 = arith.constant 0 : index
    %c0_9 = arith.constant 0 : index
    %8 = vector.load %arg1[%c0_8, %c0_9] : memref<8x1024xf32, #tpu.memory_space<vmem>>, vector<8x1024xf32>
    %c17_i32 = arith.constant 17 : i32
    %9 = tpu.dynamic_rotate %8 by %c17_i32 dim 1 : vector<8x1024xf32>, i32 -> vector<8x1024xf32>
    %10 = vector.broadcast %0 : vector<1x1024xf32> to vector<8x1024xf32>
    %11 = arith.mulf %9, %10 : vector<8x1024xf32>
    %c0_10 = arith.constant 0 : index
    %c0_11 = arith.constant 0 : index
    %12 = vector.load %arg15[%c0_10, %c0_11] : memref<144x1024xf32, #tpu.memory_space<vmem>>, vector<8x1024xf32>
    tpu.vector_store %arg15[%c0_10, %c0_11], %11 {strides = array<i32>} : memref<144x1024xf32, #tpu.memory_space<vmem>>, vector<8x1024xf32>,
    %c16_i32 = arith.constant 16 : i32
    %13 = tpu.dynamic_rotate %8 by %c16_i32 dim 1 : vector<8x1024xf32>, i32 -> vector<8x1024xf32>
    %14 = vector.broadcast %1 : vector<1x1024xf32> to vector<8x1024xf32>
    %15 = arith.mulf %13, %14 : vector<8x1024xf32>
    %c8_12 = arith.constant 8 : index
    %c0_13 = arith.constant 0 : index
    %16 = vector.load %arg15[%c8_12, %c0_13] : memref<144x1024xf32, #tpu.memory_space<vmem>>, vector<8x1024xf32>
    tpu.vector_store %arg15[%c8_12, %c0_13], %15 {strides = array<i32>} : memref<144x1024xf32, #tpu.memory_space<vmem>>, vector<8x1024xf32>,
    %c15_i32 = arith.constant 15 : i32
    %17 = tpu.dynamic_rotate %8 by %c15_i32 dim 1 : vector<8x1024xf32>, i32 -> vector<8x1024xf32>
    %18 = vector.broadcast %2 : vector<1x1024xf32> to vector<8x1024xf32>
    %19 = arith.mulf %17, %18 : vector<8x1024xf32>
    %c16 = arith.constant 16 : index
    %c0_14 = arith.constant 0 : index
    %20 = vector.load %arg15[%c16, %c0_14] : memref<144x1024xf32, #tpu.memory_space<vmem>>, vector<8x1024xf32>
    tpu.vector_store %arg15[%c16, %c0_14], %19 {strides = array<i32>} : memref<144x1024xf32, #tpu.memory_space<vmem>>, vector<8x1024xf32>,
    %c1_i32 = arith.constant 1 : i32
    %21 = tpu.dynamic_rotate %8 by %c1_i32 dim 1 : vector<8x1024xf32>, i32 -> vector<8x1024xf32>
    %22 = vector.broadcast %3 : vector<1x1024xf32> to vector<8x1024xf32>
    %23 = arith.mulf %21, %22 : vector<8x1024xf32>
    %c24 = arith.constant 24 : index
    %c0_15 = arith.constant 0 : index
    %24 = vector.load %arg15[%c24, %c0_15] : memref<144x1024xf32, #tpu.memory_space<vmem>>, vector<8x1024xf32>
    tpu.vector_store %arg15[%c24, %c0_15], %23 {strides = array<i32>} : memref<144x1024xf32, #tpu.memory_space<vmem>>, vector<8x1024xf32>,
    %c32 = arith.constant 32 : index
    %c0_16 = arith.constant 0 : index
    %25 = vector.load %arg15[%c32, %c0_16] : memref<144x1024xf32, #tpu.memory_space<vmem>>, vector<8x1024xf32>
    tpu.vector_store %arg15[%c32, %c0_16], %8 {strides = array<i32>} : memref<144x1024xf32, #tpu.memory_space<vmem>>, vector<8x1024xf32>,
    %c1023_i32 = arith.constant 1023 : i32
    %26 = tpu.dynamic_rotate %8 by %c1023_i32 dim 1 : vector<8x1024xf32>, i32 -> vector<8x1024xf32>
    %27 = vector.broadcast %4 : vector<1x1024xf32> to vector<8x1024xf32>
    %28 = arith.mulf %26, %27 : vector<8x1024xf32>
    %c40 = arith.constant 40 : index
    %c0_17 = arith.constant 0 : index
    %29 = vector.load %arg15[%c40, %c0_17] : memref<144x1024xf32, #tpu.memory_space<vmem>>, vector<8x1024xf32>
    tpu.vector_store %arg15[%c40, %c0_17], %28 {strides = array<i32>} : memref<144x1024xf32, #tpu.memory_space<vmem>>, vector<8x1024xf32>,
    %c1009_i32 = arith.constant 1009 : i32
    %30 = tpu.dynamic_rotate %8 by %c1009_i32 dim 1 : vector<8x1024xf32>, i32 -> vector<8x1024xf32>
    %31 = vector.broadcast %5 : vector<1x1024xf32> to vector<8x1024xf32>
    %32 = arith.mulf %30, %31 : vector<8x1024xf32>
    %c48 = arith.constant 48 : index
    %c0_18 = arith.constant 0 : index
    %33 = vector.load %arg15[%c48, %c0_18] : memref<144x1024xf32, #tpu.memory_space<vmem>>, vector<8x1024xf32>
    tpu.vector_store %arg15[%c48, %c0_18], %32 {strides = array<i32>} : memref<144x1024xf32, #tpu.memory_space<vmem>>, vector<8x1024xf32>,
    %c1008_i32 = arith.constant 1008 : i32
    %34 = tpu.dynamic_rotate %8 by %c1008_i32 dim 1 : vector<8x1024xf32>, i32 -> vector<8x1024xf32>
    %35 = vector.broadcast %6 : vector<1x1024xf32> to vector<8x1024xf32>
    %36 = arith.mulf %34, %35 : vector<8x1024xf32>
    %c56 = arith.constant 56 : index
    %c0_19 = arith.constant 0 : index
    %37 = vector.load %arg15[%c56, %c0_19] : memref<144x1024xf32, #tpu.memory_space<vmem>>, vector<8x1024xf32>
    tpu.vector_store %arg15[%c56, %c0_19], %36 {strides = array<i32>} : memref<144x1024xf32, #tpu.memory_space<vmem>>, vector<8x1024xf32>,
    %c1007_i32 = arith.constant 1007 : i32
    %38 = tpu.dynamic_rotate %8 by %c1007_i32 dim 1 : vector<8x1024xf32>, i32 -> vector<8x1024xf32>
    %39 = vector.broadcast %7 : vector<1x1024xf32> to vector<8x1024xf32>
    %40 = arith.mulf %38, %39 : vector<8x1024xf32>
    %c64 = arith.constant 64 : index
    %c0_20 = arith.constant 0 : index
    %41 = vector.load %arg15[%c64, %c0_20] : memref<144x1024xf32, #tpu.memory_space<vmem>>, vector<8x1024xf32>
    tpu.vector_store %arg15[%c64, %c0_20], %40 {strides = array<i32>} : memref<144x1024xf32, #tpu.memory_space<vmem>>, vector<8x1024xf32>,
    %c0_21 = arith.constant 0 : index
    %c0_22 = arith.constant 0 : index
    %42 = vector.load %arg4[%c0_21, %c0_22] : memref<8x72xf32, #tpu.memory_space<vmem>>, vector<8x72xf32>
    %c0_23 = arith.constant 0 : index
    %c0_24 = arith.constant 0 : index
    %43 = vector.load %arg15[%c0_23, %c0_24] : memref<144x1024xf32, #tpu.memory_space<vmem>>, vector<72x1024xf32>
    %cst = arith.constant dense<0.000000e+00> : vector<8x1024xf32>
    %44 = tpu.matmul %42, %43, %cst {dimension_numbers = #tpu.dot_dimension_numbers<[1], [0], [0], [1], [0, 0, 1, 1], [], []>} : vector<8x72xf32>, vector<72x1024xf32>, vector<8x1024xf32> -> vector<8x1024xf32>
    %c0_25 = arith.constant 0 : index
    %c0_26 = arith.constant 0 : index
    %45 = vector.load %arg5[%c0_25, %c0_26] : memref<8x1xf32, #tpu.memory_space<vmem>>, vector<8x1xf32>
    %46 = vector.broadcast %45 : vector<8x1xf32> to vector<8x1024xf32>
    %47 = arith.addf %44, %46 : vector<8x1024xf32>
    %cst_27 = arith.constant 5.000000e-01 : f32
    %48 = vector.broadcast %cst_27 : f32 to vector<8x1024xf32>
    %49 = arith.mulf %48, %47 : vector<8x1024xf32>
    %cst_28 = arith.constant 4.471500e-02 : f32
    %50 = vector.broadcast %cst_28 : f32 to vector<8x1024xf32>
    %51 = arith.mulf %50, %47 : vector<8x1024xf32>
    %52 = arith.mulf %51, %47 : vector<8x1024xf32>
    %53 = arith.mulf %52, %47 : vector<8x1024xf32>
    %54 = arith.addf %47, %53 : vector<8x1024xf32>
    %cst_29 = arith.constant 0.797884583 : f32
    %55 = vector.broadcast %cst_29 : f32 to vector<8x1024xf32>
    %56 = arith.mulf %55, %54 : vector<8x1024xf32>
    %57 = math.tanh %56 : vector<8x1024xf32>
    %cst_30 = arith.constant 1.000000e+00 : f32
    %58 = vector.broadcast %cst_30 : f32 to vector<8x1024xf32>
    %59 = arith.addf %58, %57 : vector<8x1024xf32>
    %60 = arith.mulf %49, %59 : vector<8x1024xf32>
    %c0_31 = arith.constant 0 : index
    %c0_32 = arith.constant 0 : index
    %61 = vector.load %arg6[%c0_31, %c0_32] : memref<16x8xf32, #tpu.memory_space<vmem>>, vector<16x8xf32>
    %cst_33 = arith.constant dense<0.000000e+00> : vector<16x1024xf32>
    %62 = tpu.matmul %61, %60, %cst_33 {dimension_numbers = #tpu.dot_dimension_numbers<[1], [0], [0], [1], [0, 0, 1, 1], [], []>} : vector<16x8xf32>, vector<8x1024xf32>, vector<16x1024xf32> -> vector<16x1024xf32>
    %c0_34 = arith.constant 0 : index
    %c0_35 = arith.constant 0 : index
    %63 = vector.load %arg7[%c0_34, %c0_35] : memref<16x1xf32, #tpu.memory_space<vmem>>, vector<16x1xf32>
    %64 = vector.broadcast %63 : vector<16x1xf32> to vector<16x1024xf32>
    %65 = arith.addf %62, %64 : vector<16x1024xf32>
    %cst_36 = arith.constant 5.000000e-01 : f32
    %66 = vector.broadcast %cst_36 : f32 to vector<16x1024xf32>
    %67 = arith.mulf %66, %65 : vector<16x1024xf32>
    %cst_37 = arith.constant 4.471500e-02 : f32
    %68 = vector.broadcast %cst_37 : f32 to vector<16x1024xf32>
    %69 = arith.mulf %68, %65 : vector<16x1024xf32>
    %70 = arith.mulf %69, %65 : vector<16x1024xf32>
    %71 = arith.mulf %70, %65 : vector<16x1024xf32>
    %72 = arith.addf %65, %71 : vector<16x1024xf32>
    %cst_38 = arith.constant 0.797884583 : f32
    %73 = vector.broadcast %cst_38 : f32 to vector<16x1024xf32>
    %74 = arith.mulf %73, %72 : vector<16x1024xf32>
    %75 = math.tanh %74 : vector<16x1024xf32>
    %cst_39 = arith.constant 1.000000e+00 : f32
    %76 = vector.broadcast %cst_39 : f32 to vector<16x1024xf32>
    %77 = arith.addf %76, %75 : vector<16x1024xf32>
    %78 = arith.mulf %67, %77 : vector<16x1024xf32>
    %c17_i32_40 = arith.constant 17 : i32
    %79 = tpu.dynamic_rotate %78 by %c17_i32_40 dim 1 : vector<16x1024xf32>, i32 -> vector<16x1024xf32>
    %80 = vector.broadcast %0 : vector<1x1024xf32> to vector<16x1024xf32>
    %81 = arith.mulf %79, %80 : vector<16x1024xf32>
    %c0_41 = arith.constant 0 : index
    %c0_42 = arith.constant 0 : index
    %82 = vector.load %arg15[%c0_41, %c0_42] : memref<144x1024xf32, #tpu.memory_space<vmem>>, vector<16x1024xf32>
    tpu.vector_store %arg15[%c0_41, %c0_42], %81 {strides = array<i32>} : memref<144x1024xf32, #tpu.memory_space<vmem>>, vector<16x1024xf32>,
    %c16_i32_43 = arith.constant 16 : i32
    %83 = tpu.dynamic_rotate %78 by %c16_i32_43 dim 1 : vector<16x1024xf32>, i32 -> vector<16x1024xf32>
    %84 = vector.broadcast %1 : vector<1x1024xf32> to vector<16x1024xf32>
    %85 = arith.mulf %83, %84 : vector<16x1024xf32>
    %c16_44 = arith.constant 16 : index
    %c0_45 = arith.constant 0 : index
    %86 = vector.load %arg15[%c16_44, %c0_45] : memref<144x1024xf32, #tpu.memory_space<vmem>>, vector<16x1024xf32>
    tpu.vector_store %arg15[%c16_44, %c0_45], %85 {strides = array<i32>} : memref<144x1024xf32, #tpu.memory_space<vmem>>, vector<16x1024xf32>,
    %c15_i32_46 = arith.constant 15 : i32
    %87 = tpu.dynamic_rotate %78 by %c15_i32_46 dim 1 : vector<16x1024xf32>, i32 -> vector<16x1024xf32>
    %88 = vector.broadcast %2 : vector<1x1024xf32> to vector<16x1024xf32>
    %89 = arith.mulf %87, %88 : vector<16x1024xf32>
    %c32_47 = arith.constant 32 : index
    %c0_48 = arith.constant 0 : index
    %90 = vector.load %arg15[%c32_47, %c0_48] : memref<144x1024xf32, #tpu.memory_space<vmem>>, vector<16x1024xf32>
    tpu.vector_store %arg15[%c32_47, %c0_48], %89 {strides = array<i32>} : memref<144x1024xf32, #tpu.memory_space<vmem>>, vector<16x1024xf32>,
    %c1_i32_49 = arith.constant 1 : i32
    %91 = tpu.dynamic_rotate %78 by %c1_i32_49 dim 1 : vector<16x1024xf32>, i32 -> vector<16x1024xf32>
    %92 = vector.broadcast %3 : vector<1x1024xf32> to vector<16x1024xf32>
    %93 = arith.mulf %91, %92 : vector<16x1024xf32>
    %c48_50 = arith.constant 48 : index
    %c0_51 = arith.constant 0 : index
    %94 = vector.load %arg15[%c48_50, %c0_51] : memref<144x1024xf32, #tpu.memory_space<vmem>>, vector<16x1024xf32>
    tpu.vector_store %arg15[%c48_50, %c0_51], %93 {strides = array<i32>} : memref<144x1024xf32, #tpu.memory_space<vmem>>, vector<16x1024xf32>,
    %c64_52 = arith.constant 64 : index
    %c0_53 = arith.constant 0 : index
    %95 = vector.load %arg15[%c64_52, %c0_53] : memref<144x1024xf32, #tpu.memory_space<vmem>>, vector<16x1024xf32>
    tpu.vector_store %arg15[%c64_52, %c0_53], %78 {strides = array<i32>} : memref<144x1024xf32, #tpu.memory_space<vmem>>, vector<16x1024xf32>,
    %c1023_i32_54 = arith.constant 1023 : i32
    %96 = tpu.dynamic_rotate %78 by %c1023_i32_54 dim 1 : vector<16x1024xf32>, i32 -> vector<16x1024xf32>
    %97 = vector.broadcast %4 : vector<1x1024xf32> to vector<16x1024xf32>
    %98 = arith.mulf %96, %97 : vector<16x1024xf32>
    %c80 = arith.constant 80 : index
    %c0_55 = arith.constant 0 : index
    %99 = vector.load %arg15[%c80, %c0_55] : memref<144x1024xf32, #tpu.memory_space<vmem>>, vector<16x1024xf32>
    tpu.vector_store %arg15[%c80, %c0_55], %98 {strides = array<i32>} : memref<144x1024xf32, #tpu.memory_space<vmem>>, vector<16x1024xf32>,
    %c1009_i32_56 = arith.constant 1009 : i32
    %100 = tpu.dynamic_rotate %78 by %c1009_i32_56 dim 1 : vector<16x1024xf32>, i32 -> vector<16x1024xf32>
    %101 = vector.broadcast %5 : vector<1x1024xf32> to vector<16x1024xf32>
    %102 = arith.mulf %100, %101 : vector<16x1024xf32>
    %c96 = arith.constant 96 : index
    %c0_57 = arith.constant 0 : index
    %103 = vector.load %arg15[%c96, %c0_57] : memref<144x1024xf32, #tpu.memory_space<vmem>>, vector<16x1024xf32>
    tpu.vector_store %arg15[%c96, %c0_57], %102 {strides = array<i32>} : memref<144x1024xf32, #tpu.memory_space<vmem>>, vector<16x1024xf32>,
    %c1008_i32_58 = arith.constant 1008 : i32
    %104 = tpu.dynamic_rotate %78 by %c1008_i32_58 dim 1 : vector<16x1024xf32>, i32 -> vector<16x1024xf32>
    %105 = vector.broadcast %6 : vector<1x1024xf32> to vector<16x1024xf32>
    %106 = arith.mulf %104, %105 : vector<16x1024xf32>
    %c112 = arith.constant 112 : index
    %c0_59 = arith.constant 0 : index
    %107 = vector.load %arg15[%c112, %c0_59] : memref<144x1024xf32, #tpu.memory_space<vmem>>, vector<16x1024xf32>
    tpu.vector_store %arg15[%c112, %c0_59], %106 {strides = array<i32>} : memref<144x1024xf32, #tpu.memory_space<vmem>>, vector<16x1024xf32>,
    %c1007_i32_60 = arith.constant 1007 : i32
    %108 = tpu.dynamic_rotate %78 by %c1007_i32_60 dim 1 : vector<16x1024xf32>, i32 -> vector<16x1024xf32>
    %109 = vector.broadcast %7 : vector<1x1024xf32> to vector<16x1024xf32>
    %110 = arith.mulf %108, %109 : vector<16x1024xf32>
    %c128 = arith.constant 128 : index
    %c0_61 = arith.constant 0 : index
    %111 = vector.load %arg15[%c128, %c0_61] : memref<144x1024xf32, #tpu.memory_space<vmem>>, vector<16x1024xf32>
    tpu.vector_store %arg15[%c128, %c0_61], %110 {strides = array<i32>} : memref<144x1024xf32, #tpu.memory_space<vmem>>, vector<16x1024xf32>,
    %c0_62 = arith.constant 0 : index
    %c0_63 = arith.constant 0 : index
    %112 = vector.load %arg8[%c0_62, %c0_63] : memref<16x144xf32, #tpu.memory_space<vmem>>, vector<16x144xf32>
    %c0_64 = arith.constant 0 : index
    %c0_65 = arith.constant 0 : index
    %113 = vector.load %arg15[%c0_64, %c0_65] : memref<144x1024xf32, #tpu.memory_space<vmem>>, vector<144x1024xf32>
    %cst_66 = arith.constant dense<0.000000e+00> : vector<16x1024xf32>
    %114 = tpu.matmul %112, %113, %cst_66 {dimension_numbers = #tpu.dot_dimension_numbers<[1], [0], [0], [1], [0, 0, 1, 1], [], []>} : vector<16x144xf32>, vector<144x1024xf32>, vector<16x1024xf32> -> vector<16x1024xf32>
    %c0_67 = arith.constant 0 : index
    %c0_68 = arith.constant 0 : index
    %115 = vector.load %arg9[%c0_67, %c0_68] : memref<16x1xf32, #tpu.memory_space<vmem>>, vector<16x1xf32>
    %116 = vector.broadcast %115 : vector<16x1xf32> to vector<16x1024xf32>
    %117 = arith.addf %114, %116 : vector<16x1024xf32>
    %cst_69 = arith.constant 5.000000e-01 : f32
    %118 = vector.broadcast %cst_69 : f32 to vector<16x1024xf32>
    %119 = arith.mulf %118, %117 : vector<16x1024xf32>
    %cst_70 = arith.constant 4.471500e-02 : f32
    %120 = vector.broadcast %cst_70 : f32 to vector<16x1024xf32>
    %121 = arith.mulf %120, %117 : vector<16x1024xf32>
    %122 = arith.mulf %121, %117 : vector<16x1024xf32>
    %123 = arith.mulf %122, %117 : vector<16x1024xf32>
    %124 = arith.addf %117, %123 : vector<16x1024xf32>
    %cst_71 = arith.constant 0.797884583 : f32
    %125 = vector.broadcast %cst_71 : f32 to vector<16x1024xf32>
    %126 = arith.mulf %125, %124 : vector<16x1024xf32>
    %127 = math.tanh %126 : vector<16x1024xf32>
    %cst_72 = arith.constant 1.000000e+00 : f32
    %128 = vector.broadcast %cst_72 : f32 to vector<16x1024xf32>
    %129 = arith.addf %128, %127 : vector<16x1024xf32>
    %130 = arith.mulf %119, %129 : vector<16x1024xf32>
    %c0_73 = arith.constant 0 : index
    %c0_74 = arith.constant 0 : index
    %131 = vector.load %arg10[%c0_73, %c0_74] : memref<32x16xf32, #tpu.memory_space<vmem>>, vector<32x16xf32>
    %cst_75 = arith.constant dense<0.000000e+00> : vector<32x1024xf32>
    %132 = tpu.matmul %131, %130, %cst_75 {dimension_numbers = #tpu.dot_dimension_numbers<[1], [0], [0], [1], [0, 0, 1, 1], [], []>} : vector<32x16xf32>, vector<16x1024xf32>, vector<32x1024xf32> -> vector<32x1024xf32>
    %c0_76 = arith.constant 0 : index
    %c0_77 = arith.constant 0 : index
    %133 = vector.load %arg11[%c0_76, %c0_77] : memref<32x1xf32, #tpu.memory_space<vmem>>, vector<32x1xf32>
    %134 = vector.broadcast %133 : vector<32x1xf32> to vector<32x1024xf32>
    %135 = arith.addf %132, %134 : vector<32x1024xf32>
    %c0_78 = arith.constant 0 : index
    %c0_79 = arith.constant 0 : index
    %136 = vector.load %arg3[%c0_78, %c0_79] : memref<1024x4xf32, #tpu.memory_space<vmem>>, vector<1024x4xf32>
    %cst_80 = arith.constant dense<0.000000e+00> : vector<32x4xf32>
    %137 = tpu.matmul %135, %136, %cst_80 {dimension_numbers = #tpu.dot_dimension_numbers<[1], [0], [0], [1], [0, 0, 1, 1], [], []>} : vector<32x1024xf32>, vector<1024x4xf32>, vector<32x4xf32> -> vector<32x4xf32>
    %138 = arith.mulf %135, %135 : vector<32x1024xf32>
    %cst_81 = arith.constant dense<0.000000e+00> : vector<32x4xf32>
    %139 = tpu.matmul %138, %136, %cst_81 {dimension_numbers = #tpu.dot_dimension_numbers<[1], [0], [0], [1], [0, 0, 1, 1], [], []>} : vector<32x1024xf32>, vector<1024x4xf32>, vector<32x4xf32> -> vector<32x4xf32>
    %cst_82 = arith.constant 3.906250e-03 : f32
    %140 = vector.broadcast %cst_82 : f32 to vector<32x4xf32>
    %141 = arith.mulf %137, %140 : vector<32x4xf32>
    %cst_83 = arith.constant 3.906250e-03 : f32
    %142 = vector.broadcast %cst_83 : f32 to vector<32x4xf32>
    %143 = arith.mulf %139, %142 : vector<32x4xf32>
    %144 = arith.mulf %141, %141 : vector<32x4xf32>
    %145 = arith.subf %143, %144 : vector<32x4xf32>
    %c0_84 = arith.constant 0 : index
    %c0_85 = arith.constant 0 : index
    %146 = vector.load %arg12[%c0_84, %c0_85] : memref<32x1xf32, #tpu.memory_space<vmem>>, vector<32x1xf32>
    %cst_86 = arith.constant 9.99999974E-6 : f32
    %147 = vector.broadcast %cst_86 : f32 to vector<32x4xf32>
    %148 = arith.addf %145, %147 : vector<32x4xf32>
    %149 = math.rsqrt %148 : vector<32x4xf32>
    %150 = vector.broadcast %146 : vector<32x1xf32> to vector<32x4xf32>
    %151 = arith.mulf %150, %149 : vector<32x4xf32>
    %c0_87 = arith.constant 0 : index
    %c0_88 = arith.constant 0 : index
    %152 = vector.load %arg13[%c0_87, %c0_88] : memref<32x1xf32, #tpu.memory_space<vmem>>, vector<32x1xf32>
    %153 = arith.mulf %141, %151 : vector<32x4xf32>
    %154 = vector.broadcast %152 : vector<32x1xf32> to vector<32x4xf32>
    %155 = arith.subf %154, %153 : vector<32x4xf32>
    %156 = vector.extract_strided_slice %135 {offsets = [0, 0], sizes = [32, 256], strides = [1, 1]} : vector<32x1024xf32> to vector<32x256xf32>
    %157 = vector.extract_strided_slice %151 {offsets = [0, 0], sizes = [32, 1], strides = [1, 1]} : vector<32x4xf32> to vector<32x1xf32>
    %158 = vector.broadcast %157 : vector<32x1xf32> to vector<32x256xf32>
    %159 = arith.mulf %156, %158 : vector<32x256xf32>
    %160 = vector.extract_strided_slice %155 {offsets = [0, 0], sizes = [32, 1], strides = [1, 1]} : vector<32x4xf32> to vector<32x1xf32>
    %161 = vector.broadcast %160 : vector<32x1xf32> to vector<32x256xf32>
    %162 = arith.addf %159, %161 : vector<32x256xf32>
    %c0_89 = arith.constant 0 : index
    %c0_90 = arith.constant 0 : index
    %c0_91 = arith.constant 0 : index
    %163 = vector.load %arg14[%c0_89, %c0_90, %c0_91] : memref<4x32x256xf32, #tpu.memory_space<vmem>>, vector<1x32x256xf32>
    %164 = vector.shape_cast %163 : vector<1x32x256xf32> to vector<32x256xf32>
    %165 = vector.shape_cast %162 : vector<32x256xf32> to vector<1x32x256xf32>
    tpu.vector_store %arg14[%c0_89, %c0_90, %c0_91], %165 {strides = array<i32>} : memref<4x32x256xf32, #tpu.memory_space<vmem>>, vector<1x32x256xf32>,
    %166 = vector.extract_strided_slice %135 {offsets = [0, 256], sizes = [32, 256], strides = [1, 1]} : vector<32x1024xf32> to vector<32x256xf32>
    %167 = vector.extract_strided_slice %151 {offsets = [0, 1], sizes = [32, 1], strides = [1, 1]} : vector<32x4xf32> to vector<32x1xf32>
    %168 = vector.broadcast %167 : vector<32x1xf32> to vector<32x256xf32>
    %169 = arith.mulf %166, %168 : vector<32x256xf32>
    %170 = vector.extract_strided_slice %155 {offsets = [0, 1], sizes = [32, 1], strides = [1, 1]} : vector<32x4xf32> to vector<32x1xf32>
    %171 = vector.broadcast %170 : vector<32x1xf32> to vector<32x256xf32>
    %172 = arith.addf %169, %171 : vector<32x256xf32>
    %c1_92 = arith.constant 1 : index
    %c0_93 = arith.constant 0 : index
    %c0_94 = arith.constant 0 : index
    %173 = vector.load %arg14[%c1_92, %c0_93, %c0_94] : memref<4x32x256xf32, #tpu.memory_space<vmem>>, vector<1x32x256xf32>
    %174 = vector.shape_cast %173 : vector<1x32x256xf32> to vector<32x256xf32>
    %175 = vector.shape_cast %172 : vector<32x256xf32> to vector<1x32x256xf32>
    tpu.vector_store %arg14[%c1_92, %c0_93, %c0_94], %175 {strides = array<i32>} : memref<4x32x256xf32, #tpu.memory_space<vmem>>, vector<1x32x256xf32>,
    %176 = vector.extract_strided_slice %135 {offsets = [0, 512], sizes = [32, 256], strides = [1, 1]} : vector<32x1024xf32> to vector<32x256xf32>
    %177 = vector.extract_strided_slice %151 {offsets = [0, 2], sizes = [32, 1], strides = [1, 1]} : vector<32x4xf32> to vector<32x1xf32>
    %178 = vector.broadcast %177 : vector<32x1xf32> to vector<32x256xf32>
    %179 = arith.mulf %176, %178 : vector<32x256xf32>
    %180 = vector.extract_strided_slice %155 {offsets = [0, 2], sizes = [32, 1], strides = [1, 1]} : vector<32x4xf32> to vector<32x1xf32>
    %181 = vector.broadcast %180 : vector<32x1xf32> to vector<32x256xf32>
    %182 = arith.addf %179, %181 : vector<32x256xf32>
    %c2_95 = arith.constant 2 : index
    %c0_96 = arith.constant 0 : index
    %c0_97 = arith.constant 0 : index
    %183 = vector.load %arg14[%c2_95, %c0_96, %c0_97] : memref<4x32x256xf32, #tpu.memory_space<vmem>>, vector<1x32x256xf32>
    %184 = vector.shape_cast %183 : vector<1x32x256xf32> to vector<32x256xf32>
    %185 = vector.shape_cast %182 : vector<32x256xf32> to vector<1x32x256xf32>
    tpu.vector_store %arg14[%c2_95, %c0_96, %c0_97], %185 {strides = array<i32>} : memref<4x32x256xf32, #tpu.memory_space<vmem>>, vector<1x32x256xf32>,
    %186 = vector.extract_strided_slice %135 {offsets = [0, 768], sizes = [32, 256], strides = [1, 1]} : vector<32x1024xf32> to vector<32x256xf32>
    %187 = vector.extract_strided_slice %151 {offsets = [0, 3], sizes = [32, 1], strides = [1, 1]} : vector<32x4xf32> to vector<32x1xf32>
    %188 = vector.broadcast %187 : vector<32x1xf32> to vector<32x256xf32>
    %189 = arith.mulf %186, %188 : vector<32x256xf32>
    %190 = vector.extract_strided_slice %155 {offsets = [0, 3], sizes = [32, 1], strides = [1, 1]} : vector<32x4xf32> to vector<32x1xf32>
    %191 = vector.broadcast %190 : vector<32x1xf32> to vector<32x256xf32>
    %192 = arith.addf %189, %191 : vector<32x256xf32>
    %c3_98 = arith.constant 3 : index
    %c0_99 = arith.constant 0 : index
    %c0_100 = arith.constant 0 : index
    %193 = vector.load %arg14[%c3_98, %c0_99, %c0_100] : memref<4x32x256xf32, #tpu.memory_space<vmem>>, vector<1x32x256xf32>
    %194 = vector.shape_cast %193 : vector<1x32x256xf32> to vector<32x256xf32>
    %195 = vector.shape_cast %192 : vector<32x256xf32> to vector<1x32x256xf32>
    tpu.vector_store %arg14[%c3_98, %c0_99, %c0_100], %195 {strides = array<i32>} : memref<4x32x256xf32, #tpu.memory_space<vmem>>, vector<1x32x256xf32>,
    return
  }
  func.func @transform_0(%arg0: i32) -> (i32, i32) {
    %c0_i32 = arith.constant 0 : i32
    %c0_i32_0 = arith.constant 0 : i32
    return %c0_i32, %arg0 : i32, i32
  }
  func.func @transform_1(%arg0: i32) -> (i32, i32) {
    %c0_i32 = arith.constant 0 : i32
    %c0_i32_0 = arith.constant 0 : i32
    %c0_i32_1 = arith.constant 0 : i32
    return %c0_i32, %c0_i32_0 : i32, i32
  }
  func.func @transform_2(%arg0: i32) -> (i32, i32) {
    %c0_i32 = arith.constant 0 : i32
    %c0_i32_0 = arith.constant 0 : i32
    %c0_i32_1 = arith.constant 0 : i32
    return %c0_i32, %c0_i32_0 : i32, i32
  }
  func.func @transform_3(%arg0: i32) -> (i32, i32) {
    %c0_i32 = arith.constant 0 : i32
    %c0_i32_0 = arith.constant 0 : i32
    %c0_i32_1 = arith.constant 0 : i32
    return %c0_i32, %c0_i32_0 : i32, i32
  }
  func.func @transform_4(%arg0: i32) -> (i32, i32) {
    %c0_i32 = arith.constant 0 : i32
    %c0_i32_0 = arith.constant 0 : i32
    %c0_i32_1 = arith.constant 0 : i32
    return %c0_i32, %c0_i32_0 : i32, i32
  }
  func.func @transform_5(%arg0: i32) -> (i32, i32) {
    %c0_i32 = arith.constant 0 : i32
    %c0_i32_0 = arith.constant 0 : i32
    %c0_i32_1 = arith.constant 0 : i32
    return %c0_i32, %c0_i32_0 : i32, i32
  }
  func.func @transform_6(%arg0: i32) -> (i32, i32) {
    %c0_i32 = arith.constant 0 : i32
    %c0_i32_0 = arith.constant 0 : i32
    %c0_i32_1 = arith.constant 0 : i32
    return %c0_i32, %c0_i32_0 : i32, i32
  }
  func.func @transform_7(%arg0: i32) -> (i32, i32) {
    %c0_i32 = arith.constant 0 : i32
    %c0_i32_0 = arith.constant 0 : i32
    %c0_i32_1 = arith.constant 0 : i32
    return %c0_i32, %c0_i32_0 : i32, i32
  }
  func.func @transform_8(%arg0: i32) -> (i32, i32) {
    %c0_i32 = arith.constant 0 : i32
    %c0_i32_0 = arith.constant 0 : i32
    %c0_i32_1 = arith.constant 0 : i32
    return %c0_i32, %c0_i32_0 : i32, i32
  }
  func.func @transform_9(%arg0: i32) -> (i32, i32) {
    %c0_i32 = arith.constant 0 : i32
    %c0_i32_0 = arith.constant 0 : i32
    %c0_i32_1 = arith.constant 0 : i32
    return %c0_i32, %c0_i32_0 : i32, i32
  }
  func.func @transform_10(%arg0: i32) -> (i32, i32) {
    %c0_i32 = arith.constant 0 : i32
    %c0_i32_0 = arith.constant 0 : i32
    %c0_i32_1 = arith.constant 0 : i32
    return %c0_i32, %c0_i32_0 : i32, i32
  }
  func.func @transform_11(%arg0: i32) -> (i32, i32) {
    %c0_i32 = arith.constant 0 : i32
    %c0_i32_0 = arith.constant 0 : i32
    %c0_i32_1 = arith.constant 0 : i32
    return %c0_i32, %c0_i32_0 : i32, i32
  }
  func.func @transform_12(%arg0: i32) -> (i32, i32) {
    %c0_i32 = arith.constant 0 : i32
    %c0_i32_0 = arith.constant 0 : i32
    %c0_i32_1 = arith.constant 0 : i32
    return %c0_i32, %c0_i32_0 : i32, i32
  }
  func.func @transform_13(%arg0: i32) -> (i32, i32, i32) {
    %c0_i32 = arith.constant 0 : i32
    %c0_i32_0 = arith.constant 0 : i32
    %c0_i32_1 = arith.constant 0 : i32
    return %arg0, %c0_i32, %c0_i32_0 : i32, i32, i32
  }
}

</mosaic_0001>

<llo_original>
// kernel: scm_forward.1
$region0: #{scm_forward.1}
  #allocation0 [shape = 'u32[]', space=smem, size = 0x4, offset = 0x4, fixed_abs, tag = 'smem constant byte address 0x4 - core index']
  #allocation1 [shape = 'u32[144,128]{1,0:T(1,128)}', space=vmem, size = 0x12000, scoped, tag = 'internal scratch']
  #allocation2 [shape = 'f32[144,1024]{1,0:T(8,128)}', space=vmem, size = 0x90000, scoped, tag = 'scratch operand']
  %s0 = inlined_call_operand.vmem [shape: f32[8,1024], index: 0, kind: input, shape index: {}]
  %s1 = inlined_call_operand.vmem [shape: f32[9,1024], index: 1, kind: input, shape index: {}]
  %s2 = inlined_call_operand.vmem [shape: f32[1024,4], index: 2, kind: input, shape index: {}]
  %s3 = inlined_call_operand.vmem [shape: f32[8,72], index: 3, kind: input, shape index: {}]
  %s4 = inlined_call_operand.vmem [shape: f32[8,1], index: 4, kind: input, shape index: {}]
  %s5 = inlined_call_operand.vmem [shape: f32[16,8], index: 5, kind: input, shape index: {}]
  %s6 = inlined_call_operand.vmem [shape: f32[16,1], index: 6, kind: input, shape index: {}]
  %s7 = inlined_call_operand.vmem [shape: f32[16,144], index: 7, kind: input, shape index: {}]
  %s8 = inlined_call_operand.vmem [shape: f32[16,1], index: 8, kind: input, shape index: {}]
  %s9 = inlined_call_operand.vmem [shape: f32[32,16], index: 9, kind: input, shape index: {}]
  %s10 = inlined_call_operand.vmem [shape: f32[32,1], index: 10, kind: input, shape index: {}]
  %s11 = inlined_call_operand.vmem [shape: f32[32,1], index: 11, kind: input, shape index: {}]
  %s12 = inlined_call_operand.vmem [shape: f32[32,1], index: 12, kind: input, shape index: {}]
  %s13 = inlined_call_operand.vmem [shape: f32[4,32,256], index: 13, kind: output, shape index: {}]
  %s14 = sld [smem:[#allocation0]]
  $region62: #{scm_forward.1} parent=0
    _
  %s16 = ssub.s32 1, %s14
  %s17 = scalar_select 0, %s16, %s14
  // Predicated region
  $region2: #{scm_forward.1} parent=0 // pred_check
    _
  $region3: #{scm_forward.1} parent=0 // pred_check_branch
    %19 = sbr.rel (0) target = $region5
  $region4: #{scm_forward.1} parent=0 // pred_region
    _
  $region5: #{scm_forward.1} parent=0 // pred_fallthru
    _
  // Predicated region
  $region6: #{scm_forward.1} parent=0 // pred_check
    _
  $region7: #{scm_forward.1} parent=0 // pred_check_branch
    %21 = sbr.rel (0) target = $region9
  $region8: #{scm_forward.1} parent=0 // pred_region
    _
  $region9: #{scm_forward.1} parent=0 // pred_fallthru
    _
  // Predicated region
  $region10: #{scm_forward.1} parent=0 // pred_check
    _
  $region11: #{scm_forward.1} parent=0 // pred_check_branch
    %23 = sbr.rel (0) target = $region13
  $region12: #{scm_forward.1} parent=0 // pred_region
    _
  $region13: #{scm_forward.1} parent=0 // pred_fallthru
    _
  // Predicated region
  $region14: #{scm_forward.1} parent=0 // pred_check
    _
  $region15: #{scm_forward.1} parent=0 // pred_check_branch
    %25 = sbr.rel (0) target = $region17
  $region16: #{scm_forward.1} parent=0 // pred_region
    _
  $region17: #{scm_forward.1} parent=0 // pred_fallthru
    _
  // Predicated region
  $region18: #{scm_forward.1} parent=0 // pred_check
    _
  $region19: #{scm_forward.1} parent=0 // pred_check_branch
    %27 = sbr.rel (0) target = $region21
  $region20: #{scm_forward.1} parent=0 // pred_region
    _
  $region21: #{scm_forward.1} parent=0 // pred_fallthru
    _
  // Predicated region
  $region22: #{scm_forward.1} parent=0 // pred_check
    _
  $region23: #{scm_forward.1} parent=0 // pred_check_branch
    %29 = sbr.rel (0) target = $region25
  $region24: #{scm_forward.1} parent=0 // pred_region
    _
  $region25: #{scm_forward.1} parent=0 // pred_fallthru
    _
  // Predicated region
  $region26: #{scm_forward.1} parent=0 // pred_check
    _
  $region27: #{scm_forward.1} parent=0 // pred_check_branch
    %31 = sbr.rel (0) target = $region29
  $region28: #{scm_forward.1} parent=0 // pred_region
    _
  $region29: #{scm_forward.1} parent=0 // pred_fallthru
    _
  // Predicated region
  $region30: #{scm_forward.1} parent=0 // pred_check
    _
  $region31: #{scm_forward.1} parent=0 // pred_check_branch
    %33 = sbr.rel (0) target = $region33
  $region32: #{scm_forward.1} parent=0 // pred_region
    _
  $region33: #{scm_forward.1} parent=0 // pred_fallthru
    _
  // Predicated region
  $region34: #{scm_forward.1} parent=0 // pred_check
    _
  $region35: #{scm_forward.1} parent=0 // pred_check_branch
    %35 = sbr.rel (0) target = $region37
  $region36: #{scm_forward.1} parent=0 // pred_region
    _
  $region37: #{scm_forward.1} parent=0 // pred_fallthru
    _
  // Predicated region
  $region38: #{scm_forward.1} parent=0 // pred_check
    _
  $region39: #{scm_forward.1} parent=0 // pred_check_branch
    %37 = sbr.rel (0) target = $region41
  $region40: #{scm_forward.1} parent=0 // pred_region
    _
  $region41: #{scm_forward.1} parent=0 // pred_fallthru
    _
  // Predicated region
  $region42: #{scm_forward.1} parent=0 // pred_check
    _
  $region43: #{scm_forward.1} parent=0 // pred_check_branch
    %39 = sbr.rel (0) target = $region45
  $region44: #{scm_forward.1} parent=0 // pred_region
    _
  $region45: #{scm_forward.1} parent=0 // pred_fallthru
    _
  // Predicated region
  $region46: #{scm_forward.1} parent=0 // pred_check
    _
  $region47: #{scm_forward.1} parent=0 // pred_check_branch
    %41 = sbr.rel (0) target = $region49
  $region48: #{scm_forward.1} parent=0 // pred_region
    _
  $region49: #{scm_forward.1} parent=0 // pred_fallthru
    _
  // Predicated region
  $region50: #{scm_forward.1} parent=0 // pred_check
    _
  $region51: #{scm_forward.1} parent=0 // pred_check_branch
    %43 = sbr.rel (0) target = $region53
  $region52: #{scm_forward.1} parent=0 // pred_region
    _
  $region53: #{scm_forward.1} parent=0 // pred_fallthru
    _
  %v44 = vld [vmem:[%s1] ss:$8 sm:$0xf]
  %v45 = vld [vmem:[%s1] ss:$8 sm:$0xf0]
  %v46 = vor.u32 %v44, %v45
  %s47 = scalar_lea.vmem %s1, 1
  %v48 = vld [vmem:[%s47] ss:$8 sm:$0xf]
  %v49 = vld [vmem:[%s47] ss:$8 sm:$0xf0]
  %v50 = vor.u32 %v48, %v49
  %s51 = scalar_lea.vmem %s1, 2
  %v52 = vld [vmem:[%s51] ss:$8 sm:$0xf]
  %v53 = vld [vmem:[%s51] ss:$8 sm:$0xf0]
  %v54 = vor.u32 %v52, %v53
  %s55 = scalar_lea.vmem %s1, 3
  %v56 = vld [vmem:[%s55] ss:$8 sm:$0xf]
  %v57 = vld [vmem:[%s55] ss:$8 sm:$0xf0]
  %v58 = vor.u32 %v56, %v57
  %s59 = scalar_lea.vmem %s1, 5
  %v60 = vld [vmem:[%s59] ss:$8 sm:$0xf]
  %v61 = vld [vmem:[%s59] ss:$8 sm:$0xf0]
  %v62 = vor.u32 %v60, %v61
  %s63 = scalar_lea.vmem %s1, 6
  %v64 = vld [vmem:[%s63] ss:$8 sm:$0xf]
  %v65 = vld [vmem:[%s63] ss:$8 sm:$0xf0]
  %v66 = vor.u32 %v64, %v65
  %s67 = scalar_lea.vmem %s1, 7
  %v68 = vld [vmem:[%s67] ss:$8 sm:$0xf]
  %v69 = vld [vmem:[%s67] ss:$8 sm:$0xf0]
  %v70 = vor.u32 %v68, %v69
  %s71 = scalar_lea.vmem %s1, 64
  %v72 = vld [vmem:[%s71] ss:$8 sm:$0xf]
  %v73 = vld [vmem:[%s71] ss:$8 sm:$0xf0]
  %v74 = vor.u32 %v72, %v73
  %v75 = vld [vmem:[%s0] sm:$0xff]
  %v76 = vld [vmem:[%s0 + $0x8] sm:$0xff]
  %v77 = vld [vmem:[%s0 + $0x10] sm:$0xff]
  %v78 = vld [vmem:[%s0 + $0x18] sm:$0xff]
  %v79 = vld [vmem:[%s0 + $0x20] sm:$0xff]
  %v80 = vld [vmem:[%s0 + $0x28] sm:$0xff]
  %v81 = vld [vmem:[%s0 + $0x30] sm:$0xff]
  %v82 = vld [vmem:[%s0 + $0x38] sm:$0xff]
  %83 = vrot.lane.b32.xlu0 %v75, 17
  %v84 = vpop.permute.xlu0 %83
  %85 = vrot.lane.b32.xlu0 %v76, 17
  %v86 = vpop.permute.xlu0 %85
  %87 = vrot.lane.b32.xlu0 %v77, 17
  %v88 = vpop.permute.xlu0 %87
  %89 = vrot.lane.b32.xlu0 %v78, 17
  %v90 = vpop.permute.xlu0 %89
  %91 = vrot.lane.b32.xlu0 %v79, 17
  %v92 = vpop.permute.xlu0 %91
  %93 = vrot.lane.b32.xlu0 %v80, 17
  %v94 = vpop.permute.xlu0 %93
  %95 = vrot.lane.b32.xlu0 %v81, 17
  %v96 = vpop.permute.xlu0 %95
  %97 = vrot.lane.b32.xlu0 %v82, 17
  %v98 = vpop.permute.xlu0 %97
  %v99 = vlaneseq
  %v100 = vand.u32 %v99, 127
  %vm101 = vcmp.lt.s32.totalorder %v100, 17
  %v102 = vsel %vm101, %v96, %v98
  %v103 = vsel %vm101, %v94, %v96
  %v104 = vsel %vm101, %v92, %v94
  %v105 = vsel %vm101, %v90, %v92
  %v106 = vsel %vm101, %v88, %v90
  %v107 = vsel %vm101, %v86, %v88
  %v108 = vsel %vm101, %v84, %v86
  %v109 = vsel %vm101, %v98, %v84
  %v111 = vlaneseq
  %v112 = vshrl.u32 %v111, 7
  %v113 = vsub.s32 0, %v112
  %v114 = vrot.slane %v46, %v113
  %v115 = vlaneseq
  %v116 = vshrl.u32 %v115, 7
  %v117 = vsub.s32 1, %v116
  %v118 = vrot.slane %v46, %v117
  %v119 = vlaneseq
  %v120 = vshrl.u32 %v119, 7
  %v121 = vsub.s32 2, %v120
  %v122 = vrot.slane %v46, %v121
  %v123 = vlaneseq
  %v124 = vshrl.u32 %v123, 7
  %v125 = vsub.s32 3, %v124
  %v126 = vrot.slane %v46, %v125
  %v127 = vlaneseq
  %v128 = vshrl.u32 %v127, 7
  %v129 = vsub.s32 4, %v128
  %v130 = vrot.slane %v46, %v129
  %v131 = vlaneseq
  %v132 = vshrl.u32 %v131, 7
  %v133 = vsub.s32 5, %v132
  %v134 = vrot.slane %v46, %v133
  %v135 = vlaneseq
  %v136 = vshrl.u32 %v135, 7
  %v137 = vsub.s32 6, %v136
  %v138 = vrot.slane %v46, %v137
  %v139 = vlaneseq
  %v140 = vshrl.u32 %v139, 7
  %v141 = vsub.s32 7, %v140
  %v142 = vrot.slane %v46, %v141
  %v151 = vmul.f32 %v109, %v114
  %v152 = vmul.f32 %v108, %v118
  %v153 = vmul.f32 %v107, %v122
  %v154 = vmul.f32 %v106, %v126
  %v155 = vmul.f32 %v105, %v130
  %v156 = vmul.f32 %v104, %v134
  %v157 = vmul.f32 %v103, %v138
  %v158 = vmul.f32 %v102, %v142
  %159 = vst [vmem:[#allocation2] sm:$0xff] %v151
  %160 = vst [vmem:[#allocation2 + $0x8] sm:$0xff] %v152
  %161 = vst [vmem:[#allocation2 + $0x10] sm:$0xff] %v153
  %162 = vst [vmem:[#allocation2 + $0x18] sm:$0xff] %v154
  %163 = vst [vmem:[#allocation2 + $0x20] sm:$0xff] %v155
  %164 = vst [vmem:[#allocation2 + $0x28] sm:$0xff] %v156
  %165 = vst [vmem:[#allocation2 + $0x30] sm:$0xff] %v157
  %166 = vst [vmem:[#allocation2 + $0x38] sm:$0xff] %v158
  %167 = vrot.lane.b32.xlu0 %v75, 16
  %v168 = vpop.permute.xlu0 %167
  %169 = vrot.lane.b32.xlu0 %v76, 16
  %v170 = vpop.permute.xlu0 %169
  %171 = vrot.lane.b32.xlu0 %v77, 16
  %v172 = vpop.permute.xlu0 %171
  %173 = vrot.lane.b32.xlu0 %v78, 16
  %v174 = vpop.permute.xlu0 %173
  %175 = vrot.lane.b32.xlu0 %v79, 16
  %v176 = vpop.permute.xlu0 %175
  %177 = vrot.lane.b32.xlu0 %v80, 16
  %v178 = vpop.permute.xlu0 %177
  %179 = vrot.lane.b32.xlu0 %v81, 16
  %v180 = vpop.permute.xlu0 %179
  %181 = vrot.lane.b32.xlu0 %v82, 16
  %v182 = vpop.permute.xlu0 %181
  %vm183 = vcmp.lt.s32.totalorder %v100, 16
  %v184 = vsel %vm183, %v180, %v182
  %v185 = vsel %vm183, %v178, %v180
  %v186 = vsel %vm183, %v176, %v178
  %v187 = vsel %vm183, %v174, %v176
  %v188 = vsel %vm183, %v172, %v174
  %v189 = vsel %vm183, %v170, %v172
  %v190 = vsel %vm183, %v168, %v170
  %v191 = vsel %vm183, %v182, %v168
  %v193 = vlaneseq
  %v194 = vshrl.u32 %v193, 7
  %v195 = vsub.s32 0, %v194
  %v196 = vrot.slane %v50, %v195
  %v197 = vlaneseq
  %v198 = vshrl.u32 %v197, 7
  %v199 = vsub.s32 1, %v198
  %v200 = vrot.slane %v50, %v199
  %v201 = vlaneseq
  %v202 = vshrl.u32 %v201, 7
  %v203 = vsub.s32 2, %v202
  %v204 = vrot.slane %v50, %v203
  %v205 = vlaneseq
  %v206 = vshrl.u32 %v205, 7
  %v207 = vsub.s32 3, %v206
  %v208 = vrot.slane %v50, %v207
  %v209 = vlaneseq
  %v210 = vshrl.u32 %v209, 7
  %v211 = vsub.s32 4, %v210
  %v212 = vrot.slane %v50, %v211
  %v213 = vlaneseq
  %v214 = vshrl.u32 %v213, 7
  %v215 = vsub.s32 5, %v214
  %v216 = vrot.slane %v50, %v215
  %v217 = vlaneseq
  %v218 = vshrl.u32 %v217, 7
  %v219 = vsub.s32 6, %v218
  %v220 = vrot.slane %v50, %v219
  %v221 = vlaneseq
  %v222 = vshrl.u32 %v221, 7
  %v223 = vsub.s32 7, %v222
  %v224 = vrot.slane %v50, %v223
  %v233 = vmul.f32 %v191, %v196
  %v234 = vmul.f32 %v190, %v200
  %v235 = vmul.f32 %v189, %v204
  %v236 = vmul.f32 %v188, %v208
  %v237 = vmul.f32 %v187, %v212
  %v238 = vmul.f32 %v186, %v216
  %v239 = vmul.f32 %v185, %v220
  %v240 = vmul.f32 %v184, %v224
  %241 = vst [vmem:[#allocation2 + $0x40] sm:$0xff] %v233
  %242 = vst [vmem:[#allocation2 + $0x48] sm:$0xff] %v234
  %243 = vst [vmem:[#allocation2 + $0x50] sm:$0xff] %v235
  %244 = vst [vmem:[#allocation2 + $0x58] sm:$0xff] %v236
  %245 = vst [vmem:[#allocation2 + $0x60] sm:$0xff] %v237
  %246 = vst [vmem:[#allocation2 + $0x68] sm:$0xff] %v238
  %247 = vst [vmem:[#allocation2 + $0x70] sm:$0xff] %v239
  %248 = vst [vmem:[#allocation2 + $0x78] sm:$0xff] %v240
  %249 = vrot.lane.b32.xlu0 %v75, 15
  %v250 = vpop.permute.xlu0 %249
  %251 = vrot.lane.b32.xlu0 %v76, 15
  %v252 = vpop.permute.xlu0 %251
  %253 = vrot.lane.b32.xlu0 %v77, 15
  %v254 = vpop.permute.xlu0 %253
  %255 = vrot.lane.b32.xlu0 %v78, 15
  %v256 = vpop.permute.xlu0 %255
  %257 = vrot.lane.b32.xlu0 %v79, 15
  %v258 = vpop.permute.xlu0 %257
  %259 = vrot.lane.b32.xlu0 %v80, 15
  %v260 = vpop.permute.xlu0 %259
  %261 = vrot.lane.b32.xlu0 %v81, 15
  %v262 = vpop.permute.xlu0 %261
  %263 = vrot.lane.b32.xlu0 %v82, 15
  %v264 = vpop.permute.xlu0 %263
  %vm265 = vcmp.lt.s32.totalorder %v100, 15
  %v266 = vsel %vm265, %v262, %v264
  %v267 = vsel %vm265, %v260, %v262
  %v268 = vsel %vm265, %v258, %v260
  %v269 = vsel %vm265, %v256, %v258
  %v270 = vsel %vm265, %v254, %v256
  %v271 = vsel %vm265, %v252, %v254
  %v272 = vsel %vm265, %v250, %v252
  %v273 = vsel %vm265, %v264, %v250
  %v275 = vlaneseq
  %v276 = vshrl.u32 %v275, 7
  %v277 = vsub.s32 0, %v276
  %v278 = vrot.slane %v54, %v277
  %v279 = vlaneseq
  %v280 = vshrl.u32 %v279, 7
  %v281 = vsub.s32 1, %v280
  %v282 = vrot.slane %v54, %v281
  %v283 = vlaneseq
  %v284 = vshrl.u32 %v283, 7
  %v285 = vsub.s32 2, %v284
  %v286 = vrot.slane %v54, %v285
  %v287 = vlaneseq
  %v288 = vshrl.u32 %v287, 7
  %v289 = vsub.s32 3, %v288
  %v290 = vrot.slane %v54, %v289
  %v291 = vlaneseq
  %v292 = vshrl.u32 %v291, 7
  %v293 = vsub.s32 4, %v292
  %v294 = vrot.slane %v54, %v293
  %v295 = vlaneseq
  %v296 = vshrl.u32 %v295, 7
  %v297 = vsub.s32 5, %v296
  %v298 = vrot.slane %v54, %v297
  %v299 = vlaneseq
  %v300 = vshrl.u32 %v299, 7
  %v301 = vsub.s32 6, %v300
  %v302 = vrot.slane %v54, %v301
  %v303 = vlaneseq
  %v304 = vshrl.u32 %v303, 7
  %v305 = vsub.s32 7, %v304
  %v306 = vrot.slane %v54, %v305
  %v315 = vmul.f32 %v273, %v278
  %v316 = vmul.f32 %v272, %v282
  %v317 = vmul.f32 %v271, %v286
  %v318 = vmul.f32 %v270, %v290
  %v319 = vmul.f32 %v269, %v294
  %v320 = vmul.f32 %v268, %v298
  %v321 = vmul.f32 %v267, %v302
  %v322 = vmul.f32 %v266, %v306
  %323 = vst [vmem:[#allocation2 + $0x80] sm:$0xff] %v315
  %324 = vst [vmem:[#allocation2 + $0x88] sm:$0xff] %v316
  %325 = vst [vmem:[#allocation2 + $0x90] sm:$0xff] %v317
  %326 = vst [vmem:[#allocation2 + $0x98] sm:$0xff] %v318
  %327 = vst [vmem:[#allocation2 + $0xa0] sm:$0xff] %v319
  %328 = vst [vmem:[#allocation2 + $0xa8] sm:$0xff] %v320
  %329 = vst [vmem:[#allocation2 + $0xb0] sm:$0xff] %v321
  %330 = vst [vmem:[#allocation2 + $0xb8] sm:$0xff] %v322
  %331 = vrot.lane.b32.xlu0 %v75, 1
  %v332 = vpop.permute.xlu0 %331
  %333 = vrot.lane.b32.xlu0 %v76, 1
  %v334 = vpop.permute.xlu0 %333
  %335 = vrot.lane.b32.xlu0 %v77, 1
  %v336 = vpop.permute.xlu0 %335
  %337 = vrot.lane.b32.xlu0 %v78, 1
  %v338 = vpop.permute.xlu0 %337
  %339 = vrot.lane.b32.xlu0 %v79, 1
  %v340 = vpop.permute.xlu0 %339
  %341 = vrot.lane.b32.xlu0 %v80, 1
  %v342 = vpop.permute.xlu0 %341
  %343 = vrot.lane.b32.xlu0 %v81, 1
  %v344 = vpop.permute.xlu0 %343
  %345 = vrot.lane.b32.xlu0 %v82, 1
  %v346 = vpop.permute.xlu0 %345
  %vm347 = vcmp.lt.s32.totalorder %v100, 1
  %v348 = vsel %vm347, %v344, %v346
  %v349 = vsel %vm347, %v342, %v344
  %v350 = vsel %vm347, %v340, %v342
  %v351 = vsel %vm347, %v338, %v340
  %v352 = vsel %vm347, %v336, %v338
  %v353 = vsel %vm347, %v334, %v336
  %v354 = vsel %vm347, %v332, %v334
  %v355 = vsel %vm347, %v346, %v332
  %v357 = vlaneseq
  %v358 = vshrl.u32 %v357, 7
  %v359 = vsub.s32 0, %v358
  %v360 = vrot.slane %v58, %v359
  %v361 = vlaneseq
  %v362 = vshrl.u32 %v361, 7
  %v363 = vsub.s32 1, %v362
  %v364 = vrot.slane %v58, %v363
  %v365 = vlaneseq
  %v366 = vshrl.u32 %v365, 7
  %v367 = vsub.s32 2, %v366
  %v368 = vrot.slane %v58, %v367
  %v369 = vlaneseq
  %v370 = vshrl.u32 %v369, 7
  %v371 = vsub.s32 3, %v370
  %v372 = vrot.slane %v58, %v371
  %v373 = vlaneseq
  %v374 = vshrl.u32 %v373, 7
  %v375 = vsub.s32 4, %v374
  %v376 = vrot.slane %v58, %v375
  %v377 = vlaneseq
  %v378 = vshrl.u32 %v377, 7
  %v379 = vsub.s32 5, %v378
  %v380 = vrot.slane %v58, %v379
  %v381 = vlaneseq
  %v382 = vshrl.u32 %v381, 7
  %v383 = vsub.s32 6, %v382
  %v384 = vrot.slane %v58, %v383
  %v385 = vlaneseq
  %v386 = vshrl.u32 %v385, 7
  %v387 = vsub.s32 7, %v386
  %v388 = vrot.slane %v58, %v387
  %v397 = vmul.f32 %v355, %v360
  %v398 = vmul.f32 %v354, %v364
  %v399 = vmul.f32 %v353, %v368
  %v400 = vmul.f32 %v352, %v372
  %v401 = vmul.f32 %v351, %v376
  %v402 = vmul.f32 %v350, %v380
  %v403 = vmul.f32 %v349, %v384
  %v404 = vmul.f32 %v348, %v388
  %405 = vst [vmem:[#allocation2 + $0xc0] sm:$0xff] %v397
  %406 = vst [vmem:[#allocation2 + $0xc8] sm:$0xff] %v398
  %407 = vst [vmem:[#allocation2 + $0xd0] sm:$0xff] %v399
  %408 = vst [vmem:[#allocation2 + $0xd8] sm:$0xff] %v400
  %409 = vst [vmem:[#allocation2 + $0xe0] sm:$0xff] %v401
  %410 = vst [vmem:[#allocation2 + $0xe8] sm:$0xff] %v402
  %411 = vst [vmem:[#allocation2 + $0xf0] sm:$0xff] %v403
  %412 = vst [vmem:[#allocation2 + $0xf8] sm:$0xff] %v404
  %413 = vst [vmem:[#allocation2 + $0x100] sm:$0xff] %v75
  %414 = vst [vmem:[#allocation2 + $0x108] sm:$0xff] %v76
  %415 = vst [vmem:[#allocation2 + $0x110] sm:$0xff] %v77
  %416 = vst [vmem:[#allocation2 + $0x118] sm:$0xff] %v78
  %417 = vst [vmem:[#allocation2 + $0x120] sm:$0xff] %v79
  %418 = vst [vmem:[#allocation2 + $0x128] sm:$0xff] %v80
  %419 = vst [vmem:[#allocation2 + $0x130] sm:$0xff] %v81
  %420 = vst [vmem:[#allocation2 + $0x138] sm:$0xff] %v82
  %421 = vrot.lane.b32.xlu0 %v75, 127
  %v422 = vpop.permute.xlu0 %421
  %423 = vrot.lane.b32.xlu0 %v76, 127
  %v424 = vpop.permute.xlu0 %423
  %425 = vrot.lane.b32.xlu0 %v77, 127
  %v426 = vpop.permute.xlu0 %425
  %427 = vrot.lane.b32.xlu0 %v78, 127
  %v428 = vpop.permute.xlu0 %427
  %429 = vrot.lane.b32.xlu0 %v79, 127
  %v430 = vpop.permute.xlu0 %429
  %431 = vrot.lane.b32.xlu0 %v80, 127
  %v432 = vpop.permute.xlu0 %431
  %433 = vrot.lane.b32.xlu0 %v81, 127
  %v434 = vpop.permute.xlu0 %433
  %435 = vrot.lane.b32.xlu0 %v82, 127
  %v436 = vpop.permute.xlu0 %435
  %vm437 = vcmp.lt.s32.totalorder %v100, 127
  %v438 = vsel %vm437, %v434, %v436
  %v439 = vsel %vm437, %v432, %v434
  %v440 = vsel %vm437, %v430, %v432
  %v441 = vsel %vm437, %v428, %v430
  %v442 = vsel %vm437, %v426, %v428
  %v443 = vsel %vm437, %v424, %v426
  %v444 = vsel %vm437, %v422, %v424
  %v445 = vsel %vm437, %v436, %v422
  %v447 = vlaneseq
  %v448 = vshrl.u32 %v447, 7
  %v449 = vsub.s32 0, %v448
  %v450 = vrot.slane %v62, %v449
  %v451 = vlaneseq
  %v452 = vshrl.u32 %v451, 7
  %v453 = vsub.s32 1, %v452
  %v454 = vrot.slane %v62, %v453
  %v455 = vlaneseq
  %v456 = vshrl.u32 %v455, 7
  %v457 = vsub.s32 2, %v456
  %v458 = vrot.slane %v62, %v457
  %v459 = vlaneseq
  %v460 = vshrl.u32 %v459, 7
  %v461 = vsub.s32 3, %v460
  %v462 = vrot.slane %v62, %v461
  %v463 = vlaneseq
  %v464 = vshrl.u32 %v463, 7
  %v465 = vsub.s32 4, %v464
  %v466 = vrot.slane %v62, %v465
  %v467 = vlaneseq
  %v468 = vshrl.u32 %v467, 7
  %v469 = vsub.s32 5, %v468
  %v470 = vrot.slane %v62, %v469
  %v471 = vlaneseq
  %v472 = vshrl.u32 %v471, 7
  %v473 = vsub.s32 6, %v472
  %v474 = vrot.slane %v62, %v473
  %v475 = vlaneseq
  %v476 = vshrl.u32 %v475, 7
  %v477 = vsub.s32 7, %v476
  %v478 = vrot.slane %v62, %v477
  %v487 = vmul.f32 %v444, %v450
  %v488 = vmul.f32 %v443, %v454
  %v489 = vmul.f32 %v442, %v458
  %v490 = vmul.f32 %v441, %v462
  %v491 = vmul.f32 %v440, %v466
  %v492 = vmul.f32 %v439, %v470
  %v493 = vmul.f32 %v438, %v474
  %v494 = vmul.f32 %v445, %v478
  %495 = vst [vmem:[#allocation2 + $0x140] sm:$0xff] %v487
  %496 = vst [vmem:[#allocation2 + $0x148] sm:$0xff] %v488
  %497 = vst [vmem:[#allocation2 + $0x150] sm:$0xff] %v489
  %498 = vst [vmem:[#allocation2 + $0x158] sm:$0xff] %v490
  %499 = vst [vmem:[#allocation2 + $0x160] sm:$0xff] %v491
  %500 = vst [vmem:[#allocation2 + $0x168] sm:$0xff] %v492
  %501 = vst [vmem:[#allocation2 + $0x170] sm:$0xff] %v493
  %502 = vst [vmem:[#allocation2 + $0x178] sm:$0xff] %v494
  %503 = vrot.lane.b32.xlu0 %v75, 113
  %v504 = vpop.permute.xlu0 %503
  %505 = vrot.lane.b32.xlu0 %v76, 113
  %v506 = vpop.permute.xlu0 %505
  %507 = vrot.lane.b32.xlu0 %v77, 113
  %v508 = vpop.permute.xlu0 %507
  %509 = vrot.lane.b32.xlu0 %v78, 113
  %v510 = vpop.permute.xlu0 %509
  %511 = vrot.lane.b32.xlu0 %v79, 113
  %v512 = vpop.permute.xlu0 %511
  %513 = vrot.lane.b32.xlu0 %v80, 113
  %v514 = vpop.permute.xlu0 %513
  %515 = vrot.lane.b32.xlu0 %v81, 113
  %v516 = vpop.permute.xlu0 %515
  %517 = vrot.lane.b32.xlu0 %v82, 113
  %v518 = vpop.permute.xlu0 %517
  %vm519 = vcmp.lt.s32.totalorder %v100, 113
  %v520 = vsel %vm519, %v516, %v518
  %v521 = vsel %vm519, %v514, %v516
  %v522 = vsel %vm519, %v512, %v514
  %v523 = vsel %vm519, %v510, %v512
  %v524 = vsel %vm519, %v508, %v510
  %v525 = vsel %vm519, %v506, %v508
  %v526 = vsel %vm519, %v504, %v506
  %v527 = vsel %vm519, %v518, %v504
  %v529 = vlaneseq
  %v530 = vshrl.u32 %v529, 7
  %v531 = vsub.s32 0, %v530
  %v532 = vrot.slane %v66, %v531
  %v533 = vlaneseq
  %v534 = vshrl.u32 %v533, 7
  %v535 = vsub.s32 1, %v534
  %v536 = vrot.slane %v66, %v535
  %v537 = vlaneseq
  %v538 = vshrl.u32 %v537, 7
  %v539 = vsub.s32 2, %v538
  %v540 = vrot.slane %v66, %v539
  %v541 = vlaneseq
  %v542 = vshrl.u32 %v541, 7
  %v543 = vsub.s32 3, %v542
  %v544 = vrot.slane %v66, %v543
  %v545 = vlaneseq
  %v546 = vshrl.u32 %v545, 7
  %v547 = vsub.s32 4, %v546
  %v548 = vrot.slane %v66, %v547
  %v549 = vlaneseq
  %v550 = vshrl.u32 %v549, 7
  %v551 = vsub.s32 5, %v550
  %v552 = vrot.slane %v66, %v551
  %v553 = vlaneseq
  %v554 = vshrl.u32 %v553, 7
  %v555 = vsub.s32 6, %v554
  %v556 = vrot.slane %v66, %v555
  %v557 = vlaneseq
  %v558 = vshrl.u32 %v557, 7
  %v559 = vsub.s32 7, %v558
  %v560 = vrot.slane %v66, %v559
  %v569 = vmul.f32 %v526, %v532
  %v570 = vmul.f32 %v525, %v536
  %v571 = vmul.f32 %v524, %v540
  %v572 = vmul.f32 %v523, %v544
  %v573 = vmul.f32 %v522, %v548
  %v574 = vmul.f32 %v521, %v552
  %v575 = vmul.f32 %v520, %v556
  %v576 = vmul.f32 %v527, %v560
  %577 = vst [vmem:[#allocation2 + $0x180] sm:$0xff] %v569
  %578 = vst [vmem:[#allocation2 + $0x188] sm:$0xff] %v570
  %579 = vst [vmem:[#allocation2 + $0x190] sm:$0xff] %v571
  %580 = vst [vmem:[#allocation2 + $0x198] sm:$0xff] %v572
  %581 = vst [vmem:[#allocation2 + $0x1a0] sm:$0xff] %v573
  %582 = vst [vmem:[#allocation2 + $0x1a8] sm:$0xff] %v574
  %583 = vst [vmem:[#allocation2 + $0x1b0] sm:$0xff] %v575
  %584 = vst [vmem:[#allocation2 + $0x1b8] sm:$0xff] %v576
  %585 = vrot.lane.b32.xlu0 %v75, 112
  %v586 = vpop.permute.xlu0 %585
  %587 = vrot.lane.b32.xlu0 %v76, 112
  %v588 = vpop.permute.xlu0 %587
  %589 = vrot.lane.b32.xlu0 %v77, 112
  %v590 = vpop.permute.xlu0 %589
  %591 = vrot.lane.b32.xlu0 %v78, 112
  %v592 = vpop.permute.xlu0 %591
  %593 = vrot.lane.b32.xlu0 %v79, 112
  %v594 = vpop.permute.xlu0 %593
  %595 = vrot.lane.b32.xlu0 %v80, 112
  %v596 = vpop.permute.xlu0 %595
  %597 = vrot.lane.b32.xlu0 %v81, 112
  %v598 = vpop.permute.xlu0 %597
  %599 = vrot.lane.b32.xlu0 %v82, 112
  %v600 = vpop.permute.xlu0 %599
  %vm601 = vcmp.lt.s32.totalorder %v100, 112
  %v602 = vsel %vm601, %v598, %v600
  %v603 = vsel %vm601, %v596, %v598
  %v604 = vsel %vm601, %v594, %v596
  %v605 = vsel %vm601, %v592, %v594
  %v606 = vsel %vm601, %v590, %v592
  %v607 = vsel %vm601, %v588, %v590
  %v608 = vsel %vm601, %v586, %v588
  %v609 = vsel %vm601, %v600, %v586
  %v611 = vlaneseq
  %v612 = vshrl.u32 %v611, 7
  %v613 = vsub.s32 0, %v612
  %v614 = vrot.slane %v70, %v613
  %v615 = vlaneseq
  %v616 = vshrl.u32 %v615, 7
  %v617 = vsub.s32 1, %v616
  %v618 = vrot.slane %v70, %v617
  %v619 = vlaneseq
  %v620 = vshrl.u32 %v619, 7
  %v621 = vsub.s32 2, %v620
  %v622 = vrot.slane %v70, %v621
  %v623 = vlaneseq
  %v624 = vshrl.u32 %v623, 7
  %v625 = vsub.s32 3, %v624
  %v626 = vrot.slane %v70, %v625
  %v627 = vlaneseq
  %v628 = vshrl.u32 %v627, 7
  %v629 = vsub.s32 4, %v628
  %v630 = vrot.slane %v70, %v629
  %v631 = vlaneseq
  %v632 = vshrl.u32 %v631, 7
  %v633 = vsub.s32 5, %v632
  %v634 = vrot.slane %v70, %v633
  %v635 = vlaneseq
  %v636 = vshrl.u32 %v635, 7
  %v637 = vsub.s32 6, %v636
  %v638 = vrot.slane %v70, %v637
  %v639 = vlaneseq
  %v640 = vshrl.u32 %v639, 7
  %v641 = vsub.s32 7, %v640
  %v642 = vrot.slane %v70, %v641
  %v651 = vmul.f32 %v608, %v614
  %v652 = vmul.f32 %v607, %v618
  %v653 = vmul.f32 %v606, %v622
  %v654 = vmul.f32 %v605, %v626
  %v655 = vmul.f32 %v604, %v630
  %v656 = vmul.f32 %v603, %v634
  %v657 = vmul.f32 %v602, %v638
  %v658 = vmul.f32 %v609, %v642
  %659 = vst [vmem:[#allocation2 + $0x1c0] sm:$0xff] %v651
  %660 = vst [vmem:[#allocation2 + $0x1c8] sm:$0xff] %v652
  %661 = vst [vmem:[#allocation2 + $0x1d0] sm:$0xff] %v653
  %662 = vst [vmem:[#allocation2 + $0x1d8] sm:$0xff] %v654
  %663 = vst [vmem:[#allocation2 + $0x1e0] sm:$0xff] %v655
  %664 = vst [vmem:[#allocation2 + $0x1e8] sm:$0xff] %v656
  %665 = vst [vmem:[#allocation2 + $0x1f0] sm:$0xff] %v657
  %666 = vst [vmem:[#allocation2 + $0x1f8] sm:$0xff] %v658
  %667 = vrot.lane.b32.xlu0 %v75, 111
  %v668 = vpop.permute.xlu0 %667
  %669 = vrot.lane.b32.xlu0 %v76, 111
  %v670 = vpop.permute.xlu0 %669
  %671 = vrot.lane.b32.xlu0 %v77, 111
  %v672 = vpop.permute.xlu0 %671
  %673 = vrot.lane.b32.xlu0 %v78, 111
  %v674 = vpop.permute.xlu0 %673
  %675 = vrot.lane.b32.xlu0 %v79, 111
  %v676 = vpop.permute.xlu0 %675
  %677 = vrot.lane.b32.xlu0 %v80, 111
  %v678 = vpop.permute.xlu0 %677
  %679 = vrot.lane.b32.xlu0 %v81, 111
  %v680 = vpop.permute.xlu0 %679
  %681 = vrot.lane.b32.xlu0 %v82, 111
  %v682 = vpop.permute.xlu0 %681
  %vm683 = vcmp.lt.s32.totalorder %v100, 111
  %v684 = vsel %vm683, %v680, %v682
  %v685 = vsel %vm683, %v678, %v680
  %v686 = vsel %vm683, %v676, %v678
  %v687 = vsel %vm683, %v674, %v676
  %v688 = vsel %vm683, %v672, %v674
  %v689 = vsel %vm683, %v670, %v672
  %v690 = vsel %vm683, %v668, %v670
  %v691 = vsel %vm683, %v682, %v668
  %v693 = vlaneseq
  %v694 = vshrl.u32 %v693, 7
  %v695 = vsub.s32 0, %v694
  %v696 = vrot.slane %v74, %v695
  %v697 = vlaneseq
  %v698 = vshrl.u32 %v697, 7
  %v699 = vsub.s32 1, %v698
  %v700 = vrot.slane %v74, %v699
  %v701 = vlaneseq
  %v702 = vshrl.u32 %v701, 7
  %v703 = vsub.s32 2, %v702
  %v704 = vrot.slane %v74, %v703
  %v705 = vlaneseq
  %v706 = vshrl.u32 %v705, 7
  %v707 = vsub.s32 3, %v706
  %v708 = vrot.slane %v74, %v707
  %v709 = vlaneseq
  %v710 = vshrl.u32 %v709, 7
  %v711 = vsub.s32 4, %v710
  %v712 = vrot.slane %v74, %v711
  %v713 = vlaneseq
  %v714 = vshrl.u32 %v713, 7
  %v715 = vsub.s32 5, %v714
  %v716 = vrot.slane %v74, %v715
  %v717 = vlaneseq
  %v718 = vshrl.u32 %v717, 7
  %v719 = vsub.s32 6, %v718
  %v720 = vrot.slane %v74, %v719
  %v721 = vlaneseq
  %v722 = vshrl.u32 %v721, 7
  %v723 = vsub.s32 7, %v722
  %v724 = vrot.slane %v74, %v723
  %v733 = vmul.f32 %v690, %v696
  %v734 = vmul.f32 %v689, %v700
  %v735 = vmul.f32 %v688, %v704
  %v736 = vmul.f32 %v687, %v708
  %v737 = vmul.f32 %v686, %v712
  %v738 = vmul.f32 %v685, %v716
  %v739 = vmul.f32 %v684, %v720
  %v740 = vmul.f32 %v691, %v724
  %741 = vst [vmem:[#allocation2 + $0x200] sm:$0xff] %v733
  %742 = vst [vmem:[#allocation2 + $0x208] sm:$0xff] %v734
  %743 = vst [vmem:[#allocation2 + $0x210] sm:$0xff] %v735
  %744 = vst [vmem:[#allocation2 + $0x218] sm:$0xff] %v736
  %745 = vst [vmem:[#allocation2 + $0x220] sm:$0xff] %v737
  %746 = vst [vmem:[#allocation2 + $0x228] sm:$0xff] %v738
  %747 = vst [vmem:[#allocation2 + $0x230] sm:$0xff] %v739
  %748 = vst [vmem:[#allocation2 + $0x238] sm:$0xff] %v740
  %v749 = vld [vmem:[%s3] sm:$0xff]
  %v750 = vld [vmem:[#allocation2] sm:$0xff]
  %v751 = vld [vmem:[#allocation2 + $0x8] sm:$0xff]
  %v752 = vld [vmem:[#allocation2 + $0x10] sm:$0xff]
  %v753 = vld [vmem:[#allocation2 + $0x18] sm:$0xff]
  %v754 = vld [vmem:[#allocation2 + $0x20] sm:$0xff]
  %v755 = vld [vmem:[#allocation2 + $0x28] sm:$0xff]
  %v756 = vld [vmem:[#allocation2 + $0x30] sm:$0xff]
  %v757 = vld [vmem:[#allocation2 + $0x38] sm:$0xff]
  %v758 = vld [vmem:[#allocation2 + $0x40] sm:$0xff]
  %v759 = vld [vmem:[#allocation2 + $0x48] sm:$0xff]
  %v760 = vld [vmem:[#allocation2 + $0x50] sm:$0xff]
  %v761 = vld [vmem:[#allocation2 + $0x58] sm:$0xff]
  %v762 = vld [vmem:[#allocation2 + $0x60] sm:$0xff]
  %v763 = vld [vmem:[#allocation2 + $0x68] sm:$0xff]
  %v764 = vld [vmem:[#allocation2 + $0x70] sm:$0xff]
  %v765 = vld [vmem:[#allocation2 + $0x78] sm:$0xff]
  %v766 = vld [vmem:[#allocation2 + $0x80] sm:$0xff]
  %v767 = vld [vmem:[#allocation2 + $0x88] sm:$0xff]
  %v768 = vld [vmem:[#allocation2 + $0x90] sm:$0xff]
  %v769 = vld [vmem:[#allocation2 + $0x98] sm:$0xff]
  %v770 = vld [vmem:[#allocation2 + $0xa0] sm:$0xff]
  %v771 = vld [vmem:[#allocation2 + $0xa8] sm:$0xff]
  %v772 = vld [vmem:[#allocation2 + $0xb0] sm:$0xff]
  %v773 = vld [vmem:[#allocation2 + $0xb8] sm:$0xff]
  %v774 = vld [vmem:[#allocation2 + $0xc0] sm:$0xff]
  %v775 = vld [vmem:[#allocation2 + $0xc8] sm:$0xff]
  %v776 = vld [vmem:[#allocation2 + $0xd0] sm:$0xff]
  %v777 = vld [vmem:[#allocation2 + $0xd8] sm:$0xff]
  %v778 = vld [vmem:[#allocation2 + $0xe0] sm:$0xff]
  %v779 = vld [vmem:[#allocation2 + $0xe8] sm:$0xff]
  %v780 = vld [vmem:[#allocation2 + $0xf0] sm:$0xff]
  %v781 = vld [vmem:[#allocation2 + $0xf8] sm:$0xff]
  %v782 = vld [vmem:[#allocation2 + $0x100] sm:$0xff]
  %v783 = vld [vmem:[#allocation2 + $0x108] sm:$0xff]
  %v784 = vld [vmem:[#allocation2 + $0x110] sm:$0xff]
  %v785 = vld [vmem:[#allocation2 + $0x118] sm:$0xff]
  %v786 = vld [vmem:[#allocation2 + $0x120] sm:$0xff]
  %v787 = vld [vmem:[#allocation2 + $0x128] sm:$0xff]
  %v788 = vld [vmem:[#allocation2 + $0x130] sm:$0xff]
  %v789 = vld [vmem:[#allocation2 + $0x138] sm:$0xff]
  %v790 = vld [vmem:[#allocation2 + $0x140] sm:$0xff]
  %v791 = vld [vmem:[#allocation2 + $0x148] sm:$0xff]
  %v792 = vld [vmem:[#allocation2 + $0x150] sm:$0xff]
  %v793 = vld [vmem:[#allocation2 + $0x158] sm:$0xff]
  %v794 = vld [vmem:[#allocation2 + $0x160] sm:$0xff]
  %v795 = vld [vmem:[#allocation2 + $0x168] sm:$0xff]
  %v796 = vld [vmem:[#allocation2 + $0x170] sm:$0xff]
  %v797 = vld [vmem:[#allocation2 + $0x178] sm:$0xff]
  %v798 = vld [vmem:[#allocation2 + $0x180] sm:$0xff]
  %v799 = vld [vmem:[#allocation2 + $0x188] sm:$0xff]
  %v800 = vld [vmem:[#allocation2 + $0x190] sm:$0xff]
  %v801 = vld [vmem:[#allocation2 + $0x198] sm:$0xff]
  %v802 = vld [vmem:[#allocation2 + $0x1a0] sm:$0xff]
  %v803 = vld [vmem:[#allocation2 + $0x1a8] sm:$0xff]
  %v804 = vld [vmem:[#allocation2 + $0x1b0] sm:$0xff]
  %v805 = vld [vmem:[#allocation2 + $0x1b8] sm:$0xff]
  %v806 = vld [vmem:[#allocation2 + $0x1c0] sm:$0xff]
  %v807 = vld [vmem:[#allocation2 + $0x1c8] sm:$0xff]
  %v808 = vld [vmem:[#allocation2 + $0x1d0] sm:$0xff]
  %v809 = vld [vmem:[#allocation2 + $0x1d8] sm:$0xff]
  %v810 = vld [vmem:[#allocation2 + $0x1e0] sm:$0xff]
  %v811 = vld [vmem:[#allocation2 + $0x1e8] sm:$0xff]
  %v812 = vld [vmem:[#allocation2 + $0x1f0] sm:$0xff]
  %v813 = vld [vmem:[#allocation2 + $0x1f8] sm:$0xff]
  %v814 = vld [vmem:[#allocation2 + $0x200] sm:$0xff]
  %v815 = vld [vmem:[#allocation2 + $0x208] sm:$0xff]
  %v816 = vld [vmem:[#allocation2 + $0x210] sm:$0xff]
  %v817 = vld [vmem:[#allocation2 + $0x218] sm:$0xff]
  %v818 = vld [vmem:[#allocation2 + $0x220] sm:$0xff]
  %v819 = vld [vmem:[#allocation2 + $0x228] sm:$0xff]
  %v820 = vld [vmem:[#allocation2 + $0x230] sm:$0xff]
  %v821 = vld [vmem:[#allocation2 + $0x238] sm:$0xff]
  %v822 = vld [vmem:[%s4] sm:$0xff]
  %824 = vset.pattern.permute.xlu0 0
  %825 = vperm.xlu0 %824, %v822
  %v826 = vpop.permute.xlu0 %825
  %vm828 = vcmask 588800
  %v830 = vsel %vm828, %v749, 0
  %832 = vmatprep.subr.mxu0 %v751
  %833 = vmatpush1.msra.mxu0 %v750
  %834 = vmatprep.subr.mxu0 %v759
  %835 = vmatpush1.msra.mxu0 %v758
  %836 = vmatprep.subr.mxu0 %v767
  %837 = vmatpush1.msra.mxu0 %v766
  %838 = vmatprep.subr.mxu0 %v775
  %839 = vmatpush1.msra.mxu0 %v774
  %840 = vmatprep.subr.mxu0 %v783
  %841 = vmatpush1.msra.mxu0 %v782
  %842 = vmatprep.subr.mxu0 %v791
  %843 = vmatpush1.msra.mxu0 %v790
  %844 = vmatprep.subr.mxu0 %v799
  %845 = vmatpush1.msra.mxu0 %v798
  %846 = vmatprep.subr.mxu0 %v807
  %847 = vmatpush1.msra.mxu0 %v806
  %848 = vmatprep.subr.mxu0 %v815
  %849 = vmatpush1.msra.mxu0 %v814
  %850 = vmatprep.subr.mxu0 0.0
  %851 = vmatpush1.msra.mxu0 0.0
  %852 = vmatprep.subr.mxu0 0.0
  %853 = vmatpush1.msra.mxu0 0.0
  %854 = vmatprep.subr.mxu0 0.0
  %855 = vmatpush1.msra.mxu0 0.0
  %856 = vmatprep.subr.mxu0 0.0
  %857 = vmatpush1.msra.mxu0 0.0
  %858 = vmatprep.subr.mxu0 0.0
  %859 = vmatpush1.msra.mxu0 0.0
  %860 = vmatprep.subr.mxu0 0.0
  %861 = vmatpush1.msra.mxu0 0.0
  %862 = vmatprep.subr.mxu0 0.0
  %863 = vmatpush1.msra.mxu0 0.0
  %864 = vmatprep.subr.mxu0 0.0
  %865 = vmatpush1.msra.mxu0 0.0
  %866 = vmatprep.subr.mxu0 0.0
  %867 = vmatpush1.msra.mxu0 0.0
  %868 = vmatprep.subr.mxu0 0.0
  %869 = vmatpush1.msra.mxu0 0.0
  %870 = vmatprep.subr.mxu0 0.0
  %871 = vmatpush1.msra.mxu0 0.0
  %872 = vmatprep.subr.mxu0 0.0
  %873 = vmatpush1.msra.mxu0 0.0
  %874 = vmatprep.subr.mxu0 0.0
  %875 = vmatpush1.msra.mxu0 0.0
  %876 = vmatprep.subr.mxu0 0.0
  %877 = vmatpush1.msra.mxu0 0.0
  %878 = vmatprep.subr.mxu0 0.0
  %879 = vmatpush1.msra.mxu0 0.0
  %880 = vmatprep.subr.mxu0 0.0
  %881 = vmatpush1.msra.mxu0 0.0
  %882 = vmatprep.subr.mxu0 0.0
  %883 = vmatpush1.msra.mxu0 0.0
  %884 = vmatprep.subr.mxu0 0.0
  %885 = vmatpush1.msra.mxu0 0.0
  %886 = vmatprep.subr.mxu0 0.0
  %887 = vmatpush1.msra.mxu0 0.0
  %888 = vmatprep.subr.mxu0 0.0
  %889 = vmatpush1.msra.mxu0 0.0
  %890 = vmatprep.subr.mxu0 0.0
  %891 = vmatpush1.msra.mxu0 0.0
  %892 = vmatprep.subr.mxu0 0.0
  %893 = vmatpush1.msra.mxu0 0.0
  %894 = vmatprep.subr.mxu0 0.0
  %895 = vmatpush1.msra.mxu0 0.0
  %896 = vmatprep.mubr.f32.mxu0 0.0
  %897 = vmatmul.mubr.f32.gmra.mrb[0].mxu0 %v830
  %v898 = vpop.f32.mrb[0].mxu0
  %v899 = vadd.f32 %v826, %v898
  %v900 = vpop.f32.mrb[0].mxu0
  %v901 = vadd.f32 %v826, %v900
  %902 = vdwg.mxu0
  %903 = vmatprep.subr.mxu0 %v753
  %904 = vmatpush1.msra.mxu0 %v752
  %905 = vmatprep.subr.mxu0 %v761
  %906 = vmatpush1.msra.mxu0 %v760
  %907 = vmatprep.subr.mxu0 %v769
  %908 = vmatpush1.msra.mxu0 %v768
  %909 = vmatprep.subr.mxu0 %v777
  %910 = vmatpush1.msra.mxu0 %v776
  %911 = vmatprep.subr.mxu0 %v785
  %912 = vmatpush1.msra.mxu0 %v784
  %913 = vmatprep.subr.mxu0 %v793
  %914 = vmatpush1.msra.mxu0 %v792
  %915 = vmatprep.subr.mxu0 %v801
  %916 = vmatpush1.msra.mxu0 %v800
  %917 = vmatprep.subr.mxu0 %v809
  %918 = vmatpush1.msra.mxu0 %v808
  %919 = vmatprep.subr.mxu0 %v817
  %920 = vmatpush1.msra.mxu0 %v816
  %921 = vmatprep.subr.mxu0 0.0
  %922 = vmatpush1.msra.mxu0 0.0
  %923 = vmatprep.subr.mxu0 0.0
  %924 = vmatpush1.msra.mxu0 0.0
  %925 = vmatprep.subr.mxu0 0.0
  %926 = vmatpush1.msra.mxu0 0.0
  %927 = vmatprep.subr.mxu0 0.0
  %928 = vmatpush1.msra.mxu0 0.0
  %929 = vmatprep.subr.mxu0 0.0
  %930 = vmatpush1.msra.mxu0 0.0
  %931 = vmatprep.subr.mxu0 0.0
  %932 = vmatpush1.msra.mxu0 0.0
  %933 = vmatprep.subr.mxu0 0.0
  %934 = vmatpush1.msra.mxu0 0.0
  %935 = vmatprep.subr.mxu0 0.0
  %936 = vmatpush1.msra.mxu0 0.0
  %937 = vmatprep.subr.mxu0 0.0
  %938 = vmatpush1.msra.mxu0 0.0
  %939 = vmatprep.subr.mxu0 0.0
  %940 = vmatpush1.msra.mxu0 0.0
  %941 = vmatprep.subr.mxu0 0.0
  %942 = vmatpush1.msra.mxu0 0.0
  %943 = vmatprep.subr.mxu0 0.0
  %944 = vmatpush1.msra.mxu0 0.0
  %945 = vmatprep.subr.mxu0 0.0
  %946 = vmatpush1.msra.mxu0 0.0
  %947 = vmatprep.subr.mxu0 0.0
  %948 = vmatpush1.msra.mxu0 0.0
  %949 = vmatprep.subr.mxu0 0.0
  %950 = vmatpush1.msra.mxu0 0.0
  %951 = vmatprep.subr.mxu0 0.0
  %952 = vmatpush1.msra.mxu0 0.0
  %953 = vmatprep.subr.mxu0 0.0
  %954 = vmatpush1.msra.mxu0 0.0
  %955 = vmatprep.subr.mxu0 0.0
  %956 = vmatpush1.msra.mxu0 0.0
  %957 = vmatprep.subr.mxu0 0.0
  %958 = vmatpush1.msra.mxu0 0.0
  %959 = vmatprep.subr.mxu0 0.0
  %960 = vmatpush1.msra.mxu0 0.0
  %961 = vmatprep.subr.mxu0 0.0
  %962 = vmatpush1.msra.mxu0 0.0
  %963 = vmatprep.subr.mxu0 0.0
  %964 = vmatpush1.msra.mxu0 0.0
  %965 = vmatprep.subr.mxu0 0.0
  %966 = vmatpush1.msra.mxu0 0.0
  %967 = vmatprep.mubr.f32.mxu0 0.0
  %968 = vmatmul.mubr.f32.gmra.mrb[0].mxu0 %v830
  %v969 = vpop.f32.mrb[0].mxu0
  %v970 = vadd.f32 %v826, %v969
  %v971 = vpop.f32.mrb[0].mxu0
  %v972 = vadd.f32 %v826, %v971
  %973 = vdwg.mxu0
  %974 = vmatprep.subr.mxu0 %v755
  %975 = vmatpush1.msra.mxu0 %v754
  %976 = vmatprep.subr.mxu0 %v763
  %977 = vmatpush1.msra.mxu0 %v762
  %978 = vmatprep.subr.mxu0 %v771
  %979 = vmatpush1.msra.mxu0 %v770
  %980 = vmatprep.subr.mxu0 %v779
  %981 = vmatpush1.msra.mxu0 %v778
  %982 = vmatprep.subr.mxu0 %v787
  %983 = vmatpush1.msra.mxu0 %v786
  %984 = vmatprep.subr.mxu0 %v795
  %985 = vmatpush1.msra.mxu0 %v794
  %986 = vmatprep.subr.mxu0 %v803
  %987 = vmatpush1.msra.mxu0 %v802
  %988 = vmatprep.subr.mxu0 %v811
  %989 = vmatpush1.msra.mxu0 %v810
  %990 = vmatprep.subr.mxu0 %v819
  %991 = vmatpush1.msra.mxu0 %v818
  %992 = vmatprep.subr.mxu0 0.0
  %993 = vmatpush1.msra.mxu0 0.0
  %994 = vmatprep.subr.mxu0 0.0
  %995 = vmatpush1.msra.mxu0 0.0
  %996 = vmatprep.subr.mxu0 0.0
  %997 = vmatpush1.msra.mxu0 0.0
  %998 = vmatprep.subr.mxu0 0.0
  %999 = vmatpush1.msra.mxu0 0.0
  %1000 = vmatprep.subr.mxu0 0.0
  %1001 = vmatpush1.msra.mxu0 0.0
  %1002 = vmatprep.subr.mxu0 0.0
  %1003 = vmatpush1.msra.mxu0 0.0
  %1004 = vmatprep.subr.mxu0 0.0
  %1005 = vmatpush1.msra.mxu0 0.0
  %1006 = vmatprep.subr.mxu0 0.0
  %1007 = vmatpush1.msra.mxu0 0.0
  %1008 = vmatprep.subr.mxu0 0.0
  %1009 = vmatpush1.msra.mxu0 0.0
  %1010 = vmatprep.subr.mxu0 0.0
  %1011 = vmatpush1.msra.mxu0 0.0
  %1012 = vmatprep.subr.mxu0 0.0
  %1013 = vmatpush1.msra.mxu0 0.0
  %1014 = vmatprep.subr.mxu0 0.0
  %1015 = vmatpush1.msra.mxu0 0.0
  %1016 = vmatprep.subr.mxu0 0.0
  %1017 = vmatpush1.msra.mxu0 0.0
  %1018 = vmatprep.subr.mxu0 0.0
  %1019 = vmatpush1.msra.mxu0 0.0
  %1020 = vmatprep.subr.mxu0 0.0
  %1021 = vmatpush1.msra.mxu0 0.0
  %1022 = vmatprep.subr.mxu0 0.0
  %1023 = vmatpush1.msra.mxu0 0.0
  %1024 = vmatprep.subr.mxu0 0.0
  %1025 = vmatpush1.msra.mxu0 0.0
  %1026 = vmatprep.subr.mxu0 0.0
  %1027 = vmatpush1.msra.mxu0 0.0
  %1028 = vmatprep.subr.mxu0 0.0
  %1029 = vmatpush1.msra.mxu0 0.0
  %1030 = vmatprep.subr.mxu0 0.0
  %1031 = vmatpush1.msra.mxu0 0.0
  %1032 = vmatprep.subr.mxu0 0.0
  %1033 = vmatpush1.msra.mxu0 0.0
  %1034 = vmatprep.subr.mxu0 0.0
  %1035 = vmatpush1.msra.mxu0 0.0
  %1036 = vmatprep.subr.mxu0 0.0
  %1037 = vmatpush1.msra.mxu0 0.0
  %1038 = vmatprep.mubr.f32.mxu0 0.0
  %1039 = vmatmul.mubr.f32.gmra.mrb[0].mxu0 %v830
  %v1040 = vpop.f32.mrb[0].mxu0
  %v1041 = vadd.f32 %v826, %v1040
  %v1042 = vpop.f32.mrb[0].mxu0
  %v1043 = vadd.f32 %v826, %v1042
  %1044 = vdwg.mxu0
  %1045 = vmatprep.subr.mxu0 %v757
  %1046 = vmatpush1.msra.mxu0 %v756
  %1047 = vmatprep.subr.mxu0 %v765
  %1048 = vmatpush1.msra.mxu0 %v764
  %1049 = vmatprep.subr.mxu0 %v773
  %1050 = vmatpush1.msra.mxu0 %v772
  %1051 = vmatprep.subr.mxu0 %v781
  %1052 = vmatpush1.msra.mxu0 %v780
  %1053 = vmatprep.subr.mxu0 %v789
  %1054 = vmatpush1.msra.mxu0 %v788
  %1055 = vmatprep.subr.mxu0 %v797
  %1056 = vmatpush1.msra.mxu0 %v796
  %1057 = vmatprep.subr.mxu0 %v805
  %1058 = vmatpush1.msra.mxu0 %v804
  %1059 = vmatprep.subr.mxu0 %v813
  %1060 = vmatpush1.msra.mxu0 %v812
  %1061 = vmatprep.subr.mxu0 %v821
  %1062 = vmatpush1.msra.mxu0 %v820
  %1063 = vmatprep.subr.mxu0 0.0
  %1064 = vmatpush1.msra.mxu0 0.0
  %1065 = vmatprep.subr.mxu0 0.0
  %1066 = vmatpush1.msra.mxu0 0.0
  %1067 = vmatprep.subr.mxu0 0.0
  %1068 = vmatpush1.msra.mxu0 0.0
  %1069 = vmatprep.subr.mxu0 0.0
  %1070 = vmatpush1.msra.mxu0 0.0
  %1071 = vmatprep.subr.mxu0 0.0
  %1072 = vmatpush1.msra.mxu0 0.0
  %1073 = vmatprep.subr.mxu0 0.0
  %1074 = vmatpush1.msra.mxu0 0.0
  %1075 = vmatprep.subr.mxu0 0.0
  %1076 = vmatpush1.msra.mxu0 0.0
  %1077 = vmatprep.subr.mxu0 0.0
  %1078 = vmatpush1.msra.mxu0 0.0
  %1079 = vmatprep.subr.mxu0 0.0
  %1080 = vmatpush1.msra.mxu0 0.0
  %1081 = vmatprep.subr.mxu0 0.0
  %1082 = vmatpush1.msra.mxu0 0.0
  %1083 = vmatprep.subr.mxu0 0.0
  %1084 = vmatpush1.msra.mxu0 0.0
  %1085 = vmatprep.subr.mxu0 0.0
  %1086 = vmatpush1.msra.mxu0 0.0
  %1087 = vmatprep.subr.mxu0 0.0
  %1088 = vmatpush1.msra.mxu0 0.0
  %1089 = vmatprep.subr.mxu0 0.0
  %1090 = vmatpush1.msra.mxu0 0.0
  %1091 = vmatprep.subr.mxu0 0.0
  %1092 = vmatpush1.msra.mxu0 0.0
  %1093 = vmatprep.subr.mxu0 0.0
  %1094 = vmatpush1.msra.mxu0 0.0
  %1095 = vmatprep.subr.mxu0 0.0
  %1096 = vmatpush1.msra.mxu0 0.0
  %1097 = vmatprep.subr.mxu0 0.0
  %1098 = vmatpush1.msra.mxu0 0.0
  %1099 = vmatprep.subr.mxu0 0.0
  %1100 = vmatpush1.msra.mxu0 0.0
  %1101 = vmatprep.subr.mxu0 0.0
  %1102 = vmatpush1.msra.mxu0 0.0
  %1103 = vmatprep.subr.mxu0 0.0
  %1104 = vmatpush1.msra.mxu0 0.0
  %1105 = vmatprep.subr.mxu0 0.0
  %1106 = vmatpush1.msra.mxu0 0.0
  %1107 = vmatprep.subr.mxu0 0.0
  %1108 = vmatpush1.msra.mxu0 0.0
  %1109 = vmatprep.mubr.f32.mxu0 0.0
  %1110 = vmatmul.mubr.f32.gmra.mrb[0].mxu0 %v830
  %v1111 = vpop.f32.mrb[0].mxu0
  %v1112 = vadd.f32 %v826, %v1111
  %v1113 = vpop.f32.mrb[0].mxu0
  %v1114 = vadd.f32 %v826, %v1113
  %1115 = vdwg.mxu0
  %v1116 = vmul.f32 %v899, 0.5
  %v1117 = vmul.f32 %v901, 0.5
  %v1118 = vmul.f32 %v970, 0.5
  %v1119 = vmul.f32 %v972, 0.5
  %v1120 = vmul.f32 %v1041, 0.5
  %v1121 = vmul.f32 %v1043, 0.5
  %v1122 = vmul.f32 %v1112, 0.5
  %v1123 = vmul.f32 %v1114, 0.5
  %v1124 = vmul.f32 %v899, 0.044715
  %v1125 = vmul.f32 %v901, 0.044715
  %v1126 = vmul.f32 %v970, 0.044715
  %v1127 = vmul.f32 %v972, 0.044715
  %v1128 = vmul.f32 %v1041, 0.044715
  %v1129 = vmul.f32 %v1043, 0.044715
  %v1130 = vmul.f32 %v1112, 0.044715
  %v1131 = vmul.f32 %v1114, 0.044715
  %v1132 = vmul.f32 %v1124, %v899
  %v1133 = vmul.f32 %v1125, %v901
  %v1134 = vmul.f32 %v1126, %v970
  %v1135 = vmul.f32 %v1127, %v972
  %v1136 = vmul.f32 %v1128, %v1041
  %v1137 = vmul.f32 %v1129, %v1043
  %v1138 = vmul.f32 %v1130, %v1112
  %v1139 = vmul.f32 %v1131, %v1114
  %v1140 = vmul.f32 %v1132, %v899
  %v1141 = vmul.f32 %v1133, %v901
  %v1142 = vmul.f32 %v1134, %v970
  %v1143 = vmul.f32 %v1135, %v972
  %v1144 = vmul.f32 %v1136, %v1041
  %v1145 = vmul.f32 %v1137, %v1043
  %v1146 = vmul.f32 %v1138, %v1112
  %v1147 = vmul.f32 %v1139, %v1114
  %v1148 = vadd.f32 %v899, %v1140
  %v1149 = vadd.f32 %v901, %v1141
  %v1150 = vadd.f32 %v970, %v1142
  %v1151 = vadd.f32 %v972, %v1143
  %v1152 = vadd.f32 %v1041, %v1144
  %v1153 = vadd.f32 %v1043, %v1145
  %v1154 = vadd.f32 %v1112, %v1146
  %v1155 = vadd.f32 %v1114, %v1147
  %v1156 = vmul.f32 %v1148, 0.7978846
  %v1157 = vmul.f32 %v1149, 0.7978846
  %v1158 = vmul.f32 %v1150, 0.7978846
  %v1159 = vmul.f32 %v1151, 0.7978846
  %v1160 = vmul.f32 %v1152, 0.7978846
  %v1161 = vmul.f32 %v1153, 0.7978846
  %v1162 = vmul.f32 %v1154, 0.7978846
  %v1163 = vmul.f32 %v1155, 0.7978846
  %v1164 = vtanh.pop %v1156
  %v1165 = vtanh.pop %v1157
  %v1166 = vtanh.pop %v1158
  %v1167 = vtanh.pop %v1159
  %v1168 = vtanh.pop %v1160
  %v1169 = vtanh.pop %v1161
  %v1170 = vtanh.pop %v1162
  %v1171 = vtanh.pop %v1163
  %v1172 = vadd.f32 %v1164, 1.0
  %v1173 = vadd.f32 %v1165, 1.0
  %v1174 = vadd.f32 %v1166, 1.0
  %v1175 = vadd.f32 %v1167, 1.0
  %v1176 = vadd.f32 %v1168, 1.0
  %v1177 = vadd.f32 %v1169, 1.0
  %v1178 = vadd.f32 %v1170, 1.0
  %v1179 = vadd.f32 %v1171, 1.0
  %v1180 = vmul.f32 %v1116, %v1172
  %v1181 = vmul.f32 %v1117, %v1173
  %v1182 = vmul.f32 %v1118, %v1174
  %v1183 = vmul.f32 %v1119, %v1175
  %v1184 = vmul.f32 %v1120, %v1176
  %v1185 = vmul.f32 %v1121, %v1177
  %v1186 = vmul.f32 %v1122, %v1178
  %v1187 = vmul.f32 %v1123, %v1179
  %v1188 = vld [vmem:[%s5] sm:$0xff]
  %v1189 = vld [vmem:[%s5 + $0x8] sm:$0xff]
  %v1190 = vld [vmem:[%s6] sm:$0xff]
  %v1191 = vld [vmem:[%s6 + $0x8] sm:$0xff]
  %1193 = vset.pattern.permute.xlu0 0
  %1194 = vperm.xlu0 %1193, %v1190
  %v1195 = vpop.permute.xlu0 %1194
  %1198 = vset.pattern.permute.xlu0 0
  %1199 = vperm.xlu0 %1198, %v1191
  %v1200 = vpop.permute.xlu0 %1199
  %vm1202 = vcmask 64512
  %v1204 = vsel %vm1202, %v1188, 0
  %v1207 = vsel %vm1202, %v1189, 0
  %1209 = vmatprep.subr.mxu0 %v1181
  %1210 = vmatpush1.msra.mxu0 %v1180
  %1211 = vmatprep.subr.mxu0 0.0
  %1212 = vmatpush1.msra.mxu0 0.0
  %1213 = vmatprep.subr.mxu0 0.0
  %1214 = vmatpush1.msra.mxu0 0.0
  %1215 = vmatprep.subr.mxu0 0.0
  %1216 = vmatpush1.msra.mxu0 0.0
  %1217 = vmatprep.subr.mxu0 0.0
  %1218 = vmatpush1.msra.mxu0 0.0
  %1219 = vmatprep.subr.mxu0 0.0
  %1220 = vmatpush1.msra.mxu0 0.0
  %1221 = vmatprep.subr.mxu0 0.0
  %1222 = vmatpush1.msra.mxu0 0.0
  %1223 = vmatprep.subr.mxu0 0.0
  %1224 = vmatpush1.msra.mxu0 0.0
  %1225 = vmatprep.subr.mxu0 0.0
  %1226 = vmatpush1.msra.mxu0 0.0
  %1227 = vmatprep.subr.mxu0 0.0
  %1228 = vmatpush1.msra.mxu0 0.0
  %1229 = vmatprep.subr.mxu0 0.0
  %1230 = vmatpush1.msra.mxu0 0.0
  %1231 = vmatprep.subr.mxu0 0.0
  %1232 = vmatpush1.msra.mxu0 0.0
  %1233 = vmatprep.subr.mxu0 0.0
  %1234 = vmatpush1.msra.mxu0 0.0
  %1235 = vmatprep.subr.mxu0 0.0
  %1236 = vmatpush1.msra.mxu0 0.0
  %1237 = vmatprep.subr.mxu0 0.0
  %1238 = vmatpush1.msra.mxu0 0.0
  %1239 = vmatprep.subr.mxu0 0.0
  %1240 = vmatpush1.msra.mxu0 0.0
  %1241 = vmatprep.subr.mxu0 0.0
  %1242 = vmatpush1.msra.mxu0 0.0
  %1243 = vmatprep.subr.mxu0 0.0
  %1244 = vmatpush1.msra.mxu0 0.0
  %1245 = vmatprep.subr.mxu0 0.0
  %1246 = vmatpush1.msra.mxu0 0.0
  %1247 = vmatprep.subr.mxu0 0.0
  %1248 = vmatpush1.msra.mxu0 0.0
  %1249 = vmatprep.subr.mxu0 0.0
  %1250 = vmatpush1.msra.mxu0 0.0
  %1251 = vmatprep.subr.mxu0 0.0
  %1252 = vmatpush1.msra.mxu0 0.0
  %1253 = vmatprep.subr.mxu0 0.0
  %1254 = vmatpush1.msra.mxu0 0.0
  %1255 = vmatprep.subr.mxu0 0.0
  %1256 = vmatpush1.msra.mxu0 0.0
  %1257 = vmatprep.subr.mxu0 0.0
  %1258 = vmatpush1.msra.mxu0 0.0
  %1259 = vmatprep.subr.mxu0 0.0
  %1260 = vmatpush1.msra.mxu0 0.0
  %1261 = vmatprep.subr.mxu0 0.0
  %1262 = vmatpush1.msra.mxu0 0.0
  %1263 = vmatprep.subr.mxu0 0.0
  %1264 = vmatpush1.msra.mxu0 0.0
  %1265 = vmatprep.subr.mxu0 0.0
  %1266 = vmatpush1.msra.mxu0 0.0
  %1267 = vmatprep.subr.mxu0 0.0
  %1268 = vmatpush1.msra.mxu0 0.0
  %1269 = vmatprep.subr.mxu0 0.0
  %1270 = vmatpush1.msra.mxu0 0.0
  %1271 = vmatprep.subr.mxu0 0.0
  %1272 = vmatpush1.msra.mxu0 0.0
  %1273 = vmatprep.mubr.f32.mxu0 0.0
  %1274 = vmatmul.mubr.f32.gmra.mrb[0].mxu0 %v1204
  %v1275 = vpop.f32.mrb[0].mxu0
  %v1276 = vadd.f32 %v1195, %v1275
  %v1277 = vpop.f32.mrb[0].mxu0
  %v1278 = vadd.f32 %v1195, %v1277
  %1279 = vmatprep.mubr.f32.mxu0 0.0
  %1280 = vmatmul.mubr.f32.gmra.mrb[0].mxu0 %v1207
  %v1281 = vpop.f32.mrb[0].mxu0
  %v1282 = vadd.f32 %v1200, %v1281
  %v1283 = vpop.f32.mrb[0].mxu0
  %v1284 = vadd.f32 %v1200, %v1283
  %1285 = vdwg.mxu0
  %1286 = vmatprep.subr.mxu0 %v1183
  %1287 = vmatpush1.msra.mxu0 %v1182
  %1288 = vmatprep.subr.mxu0 0.0
  %1289 = vmatpush1.msra.mxu0 0.0
  %1290 = vmatprep.subr.mxu0 0.0
  %1291 = vmatpush1.msra.mxu0 0.0
  %1292 = vmatprep.subr.mxu0 0.0
  %1293 = vmatpush1.msra.mxu0 0.0
  %1294 = vmatprep.subr.mxu0 0.0
  %1295 = vmatpush1.msra.mxu0 0.0
  %1296 = vmatprep.subr.mxu0 0.0
  %1297 = vmatpush1.msra.mxu0 0.0
  %1298 = vmatprep.subr.mxu0 0.0
  %1299 = vmatpush1.msra.mxu0 0.0
  %1300 = vmatprep.subr.mxu0 0.0
  %1301 = vmatpush1.msra.mxu0 0.0
  %1302 = vmatprep.subr.mxu0 0.0
  %1303 = vmatpush1.msra.mxu0 0.0
  %1304 = vmatprep.subr.mxu0 0.0
  %1305 = vmatpush1.msra.mxu0 0.0
  %1306 = vmatprep.subr.mxu0 0.0
  %1307 = vmatpush1.msra.mxu0 0.0
  %1308 = vmatprep.subr.mxu0 0.0
  %1309 = vmatpush1.msra.mxu0 0.0
  %1310 = vmatprep.subr.mxu0 0.0
  %1311 = vmatpush1.msra.mxu0 0.0
  %1312 = vmatprep.subr.mxu0 0.0
  %1313 = vmatpush1.msra.mxu0 0.0
  %1314 = vmatprep.subr.mxu0 0.0
  %1315 = vmatpush1.msra.mxu0 0.0
  %1316 = vmatprep.subr.mxu0 0.0
  %1317 = vmatpush1.msra.mxu0 0.0
  %1318 = vmatprep.subr.mxu0 0.0
  %1319 = vmatpush1.msra.mxu0 0.0
  %1320 = vmatprep.subr.mxu0 0.0
  %1321 = vmatpush1.msra.mxu0 0.0
  %1322 = vmatprep.subr.mxu0 0.0
  %1323 = vmatpush1.msra.mxu0 0.0
  %1324 = vmatprep.subr.mxu0 0.0
  %1325 = vmatpush1.msra.mxu0 0.0
  %1326 = vmatprep.subr.mxu0 0.0
  %1327 = vmatpush1.msra.mxu0 0.0
  %1328 = vmatprep.subr.mxu0 0.0
  %1329 = vmatpush1.msra.mxu0 0.0
  %1330 = vmatprep.subr.mxu0 0.0
  %1331 = vmatpush1.msra.mxu0 0.0
  %1332 = vmatprep.subr.mxu0 0.0
  %1333 = vmatpush1.msra.mxu0 0.0
  %1334 = vmatprep.subr.mxu0 0.0
  %1335 = vmatpush1.msra.mxu0 0.0
  %1336 = vmatprep.subr.mxu0 0.0
  %1337 = vmatpush1.msra.mxu0 0.0
  %1338 = vmatprep.subr.mxu0 0.0
  %1339 = vmatpush1.msra.mxu0 0.0
  %1340 = vmatprep.subr.mxu0 0.0
  %1341 = vmatpush1.msra.mxu0 0.0
  %1342 = vmatprep.subr.mxu0 0.0
  %1343 = vmatpush1.msra.mxu0 0.0
  %1344 = vmatprep.subr.mxu0 0.0
  %1345 = vmatpush1.msra.mxu0 0.0
  %1346 = vmatprep.subr.mxu0 0.0
  %1347 = vmatpush1.msra.mxu0 0.0
  %1348 = vmatprep.subr.mxu0 0.0
  %1349 = vmatpush1.msra.mxu0 0.0
  %1350 = vmatprep.mubr.f32.mxu0 0.0
  %1351 = vmatmul.mubr.f32.gmra.mrb[0].mxu0 %v1204
  %v1352 = vpop.f32.mrb[0].mxu0
  %v1353 = vadd.f32 %v1195, %v1352
  %v1354 = vpop.f32.mrb[0].mxu0
  %v1355 = vadd.f32 %v1195, %v1354
  %1356 = vmatprep.mubr.f32.mxu0 0.0
  %1357 = vmatmul.mubr.f32.gmra.mrb[0].mxu0 %v1207
  %v1358 = vpop.f32.mrb[0].mxu0
  %v1359 = vadd.f32 %v1200, %v1358
  %v1360 = vpop.f32.mrb[0].mxu0
  %v1361 = vadd.f32 %v1200, %v1360
  %1362 = vdwg.mxu0
  %1363 = vmatprep.subr.mxu0 %v1185
  %1364 = vmatpush1.msra.mxu0 %v1184
  %1365 = vmatprep.subr.mxu0 0.0
  %1366 = vmatpush1.msra.mxu0 0.0
  %1367 = vmatprep.subr.mxu0 0.0
  %1368 = vmatpush1.msra.mxu0 0.0
  %1369 = vmatprep.subr.mxu0 0.0
  %1370 = vmatpush1.msra.mxu0 0.0
  %1371 = vmatprep.subr.mxu0 0.0
  %1372 = vmatpush1.msra.mxu0 0.0
  %1373 = vmatprep.subr.mxu0 0.0
  %1374 = vmatpush1.msra.mxu0 0.0
  %1375 = vmatprep.subr.mxu0 0.0
  %1376 = vmatpush1.msra.mxu0 0.0
  %1377 = vmatprep.subr.mxu0 0.0
  %1378 = vmatpush1.msra.mxu0 0.0
  %1379 = vmatprep.subr.mxu0 0.0
  %1380 = vmatpush1.msra.mxu0 0.0
  %1381 = vmatprep.subr.mxu0 0.0
  %1382 = vmatpush1.msra.mxu0 0.0
  %1383 = vmatprep.subr.mxu0 0.0
  %1384 = vmatpush1.msra.mxu0 0.0
  %1385 = vmatprep.subr.mxu0 0.0
  %1386 = vmatpush1.msra.mxu0 0.0
  %1387 = vmatprep.subr.mxu0 0.0
  %1388 = vmatpush1.msra.mxu0 0.0
  %1389 = vmatprep.subr.mxu0 0.0
  %1390 = vmatpush1.msra.mxu0 0.0
  %1391 = vmatprep.subr.mxu0 0.0
  %1392 = vmatpush1.msra.mxu0 0.0
  %1393 = vmatprep.subr.mxu0 0.0
  %1394 = vmatpush1.msra.mxu0 0.0
  %1395 = vmatprep.subr.mxu0 0.0
  %1396 = vmatpush1.msra.mxu0 0.0
  %1397 = vmatprep.subr.mxu0 0.0
  %1398 = vmatpush1.msra.mxu0 0.0
  %1399 = vmatprep.subr.mxu0 0.0
  %1400 = vmatpush1.msra.mxu0 0.0
  %1401 = vmatprep.subr.mxu0 0.0
  %1402 = vmatpush1.msra.mxu0 0.0
  %1403 = vmatprep.subr.mxu0 0.0
  %1404 = vmatpush1.msra.mxu0 0.0
  %1405 = vmatprep.subr.mxu0 0.0
  %1406 = vmatpush1.msra.mxu0 0.0
  %1407 = vmatprep.subr.mxu0 0.0
  %1408 = vmatpush1.msra.mxu0 0.0
  %1409 = vmatprep.subr.mxu0 0.0
  %1410 = vmatpush1.msra.mxu0 0.0
  %1411 = vmatprep.subr.mxu0 0.0
  %1412 = vmatpush1.msra.mxu0 0.0
  %1413 = vmatprep.subr.mxu0 0.0
  %1414 = vmatpush1.msra.mxu0 0.0
  %1415 = vmatprep.subr.mxu0 0.0
  %1416 = vmatpush1.msra.mxu0 0.0
  %1417 = vmatprep.subr.mxu0 0.0
  %1418 = vmatpush1.msra.mxu0 0.0
  %1419 = vmatprep.subr.mxu0 0.0
  %1420 = vmatpush1.msra.mxu0 0.0
  %1421 = vmatprep.subr.mxu0 0.0
  %1422 = vmatpush1.msra.mxu0 0.0
  %1423 = vmatprep.subr.mxu0 0.0
  %1424 = vmatpush1.msra.mxu0 0.0
  %1425 = vmatprep.subr.mxu0 0.0
  %1426 = vmatpush1.msra.mxu0 0.0
  %1427 = vmatprep.mubr.f32.mxu0 0.0
  %1428 = vmatmul.mubr.f32.gmra.mrb[0].mxu0 %v1204
  %v1429 = vpop.f32.mrb[0].mxu0
  %v1430 = vadd.f32 %v1195, %v1429
  %v1431 = vpop.f32.mrb[0].mxu0
  %v1432 = vadd.f32 %v1195, %v1431
  %1433 = vmatprep.mubr.f32.mxu0 0.0
  %1434 = vmatmul.mubr.f32.gmra.mrb[0].mxu0 %v1207
  %v1435 = vpop.f32.mrb[0].mxu0
  %v1436 = vadd.f32 %v1200, %v1435
  %v1437 = vpop.f32.mrb[0].mxu0
  %v1438 = vadd.f32 %v1200, %v1437
  %1439 = vdwg.mxu0
  %1440 = vmatprep.subr.mxu0 %v1187
  %1441 = vmatpush1.msra.mxu0 %v1186
  %1442 = vmatprep.subr.mxu0 0.0
  %1443 = vmatpush1.msra.mxu0 0.0
  %1444 = vmatprep.subr.mxu0 0.0
  %1445 = vmatpush1.msra.mxu0 0.0
  %1446 = vmatprep.subr.mxu0 0.0
  %1447 = vmatpush1.msra.mxu0 0.0
  %1448 = vmatprep.subr.mxu0 0.0
  %1449 = vmatpush1.msra.mxu0 0.0
  %1450 = vmatprep.subr.mxu0 0.0
  %1451 = vmatpush1.msra.mxu0 0.0
  %1452 = vmatprep.subr.mxu0 0.0
  %1453 = vmatpush1.msra.mxu0 0.0
  %1454 = vmatprep.subr.mxu0 0.0
  %1455 = vmatpush1.msra.mxu0 0.0
  %1456 = vmatprep.subr.mxu0 0.0
  %1457 = vmatpush1.msra.mxu0 0.0
  %1458 = vmatprep.subr.mxu0 0.0
  %1459 = vmatpush1.msra.mxu0 0.0
  %1460 = vmatprep.subr.mxu0 0.0
  %1461 = vmatpush1.msra.mxu0 0.0
  %1462 = vmatprep.subr.mxu0 0.0
  %1463 = vmatpush1.msra.mxu0 0.0
  %1464 = vmatprep.subr.mxu0 0.0
  %1465 = vmatpush1.msra.mxu0 0.0
  %1466 = vmatprep.subr.mxu0 0.0
  %1467 = vmatpush1.msra.mxu0 0.0
  %1468 = vmatprep.subr.mxu0 0.0
  %1469 = vmatpush1.msra.mxu0 0.0
  %1470 = vmatprep.subr.mxu0 0.0
  %1471 = vmatpush1.msra.mxu0 0.0
  %1472 = vmatprep.subr.mxu0 0.0
  %1473 = vmatpush1.msra.mxu0 0.0
  %1474 = vmatprep.subr.mxu0 0.0
  %1475 = vmatpush1.msra.mxu0 0.0
  %1476 = vmatprep.subr.mxu0 0.0
  %1477 = vmatpush1.msra.mxu0 0.0
  %1478 = vmatprep.subr.mxu0 0.0
  %1479 = vmatpush1.msra.mxu0 0.0
  %1480 = vmatprep.subr.mxu0 0.0
  %1481 = vmatpush1.msra.mxu0 0.0
  %1482 = vmatprep.subr.mxu0 0.0
  %1483 = vmatpush1.msra.mxu0 0.0
  %1484 = vmatprep.subr.mxu0 0.0
  %1485 = vmatpush1.msra.mxu0 0.0
  %1486 = vmatprep.subr.mxu0 0.0
  %1487 = vmatpush1.msra.mxu0 0.0
  %1488 = vmatprep.subr.mxu0 0.0
  %1489 = vmatpush1.msra.mxu0 0.0
  %1490 = vmatprep.subr.mxu0 0.0
  %1491 = vmatpush1.msra.mxu0 0.0
  %1492 = vmatprep.subr.mxu0 0.0
  %1493 = vmatpush1.msra.mxu0 0.0
  %1494 = vmatprep.subr.mxu0 0.0
  %1495 = vmatpush1.msra.mxu0 0.0
  %1496 = vmatprep.subr.mxu0 0.0
  %1497 = vmatpush1.msra.mxu0 0.0
  %1498 = vmatprep.subr.mxu0 0.0
  %1499 = vmatpush1.msra.mxu0 0.0
  %1500 = vmatprep.subr.mxu0 0.0
  %1501 = vmatpush1.msra.mxu0 0.0
  %1502 = vmatprep.subr.mxu0 0.0
  %1503 = vmatpush1.msra.mxu0 0.0
  %1504 = vmatprep.mubr.f32.mxu0 0.0
  %1505 = vmatmul.mubr.f32.gmra.mrb[0].mxu0 %v1204
  %v1506 = vpop.f32.mrb[0].mxu0
  %v1507 = vadd.f32 %v1195, %v1506
  %v1508 = vpop.f32.mrb[0].mxu0
  %v1509 = vadd.f32 %v1195, %v1508
  %1510 = vmatprep.mubr.f32.mxu0 0.0
  %1511 = vmatmul.mubr.f32.gmra.mrb[0].mxu0 %v1207
  %v1512 = vpop.f32.mrb[0].mxu0
  %v1513 = vadd.f32 %v1200, %v1512
  %v1514 = vpop.f32.mrb[0].mxu0
  %v1515 = vadd.f32 %v1200, %v1514
  %1516 = vdwg.mxu0
  %v1517 = vmul.f32 %v1276, 0.5
  %v1518 = vmul.f32 %v1278, 0.5
  %v1519 = vmul.f32 %v1353, 0.5
  %v1520 = vmul.f32 %v1355, 0.5
  %v1521 = vmul.f32 %v1430, 0.5
  %v1522 = vmul.f32 %v1432, 0.5
  %v1523 = vmul.f32 %v1507, 0.5
  %v1524 = vmul.f32 %v1509, 0.5
  %v1525 = vmul.f32 %v1282, 0.5
  %v1526 = vmul.f32 %v1284, 0.5
  %v1527 = vmul.f32 %v1359, 0.5
  %v1528 = vmul.f32 %v1361, 0.5
  %v1529 = vmul.f32 %v1436, 0.5
  %v1530 = vmul.f32 %v1438, 0.5
  %v1531 = vmul.f32 %v1513, 0.5
  %v1532 = vmul.f32 %v1515, 0.5
  %v1533 = vmul.f32 %v1276, 0.044715
  %v1534 = vmul.f32 %v1278, 0.044715
  %v1535 = vmul.f32 %v1353, 0.044715
  %v1536 = vmul.f32 %v1355, 0.044715
  %v1537 = vmul.f32 %v1430, 0.044715
  %v1538 = vmul.f32 %v1432, 0.044715
  %v1539 = vmul.f32 %v1507, 0.044715
  %v1540 = vmul.f32 %v1509, 0.044715
  %v1541 = vmul.f32 %v1282, 0.044715
  %v1542 = vmul.f32 %v1284, 0.044715
  %v1543 = vmul.f32 %v1359, 0.044715
  %v1544 = vmul.f32 %v1361, 0.044715
  %v1545 = vmul.f32 %v1436, 0.044715
  %v1546 = vmul.f32 %v1438, 0.044715
  %v1547 = vmul.f32 %v1513, 0.044715
  %v1548 = vmul.f32 %v1515, 0.044715
  %v1549 = vmul.f32 %v1533, %v1276
  %v1550 = vmul.f32 %v1534, %v1278
  %v1551 = vmul.f32 %v1535, %v1353
  %v1552 = vmul.f32 %v1536, %v1355
  %v1553 = vmul.f32 %v1537, %v1430
  %v1554 = vmul.f32 %v1538, %v1432
  %v1555 = vmul.f32 %v1539, %v1507
  %v1556 = vmul.f32 %v1540, %v1509
  %v1557 = vmul.f32 %v1541, %v1282
  %v1558 = vmul.f32 %v1542, %v1284
  %v1559 = vmul.f32 %v1543, %v1359
  %v1560 = vmul.f32 %v1544, %v1361
  %v1561 = vmul.f32 %v1545, %v1436
  %v1562 = vmul.f32 %v1546, %v1438
  %v1563 = vmul.f32 %v1547, %v1513
  %v1564 = vmul.f32 %v1548, %v1515
  %v1565 = vmul.f32 %v1549, %v1276
  %v1566 = vmul.f32 %v1550, %v1278
  %v1567 = vmul.f32 %v1551, %v1353
  %v1568 = vmul.f32 %v1552, %v1355
  %v1569 = vmul.f32 %v1553, %v1430
  %v1570 = vmul.f32 %v1554, %v1432
  %v1571 = vmul.f32 %v1555, %v1507
  %v1572 = vmul.f32 %v1556, %v1509
  %v1573 = vmul.f32 %v1557, %v1282
  %v1574 = vmul.f32 %v1558, %v1284
  %v1575 = vmul.f32 %v1559, %v1359
  %v1576 = vmul.f32 %v1560, %v1361
  %v1577 = vmul.f32 %v1561, %v1436
  %v1578 = vmul.f32 %v1562, %v1438
  %v1579 = vmul.f32 %v1563, %v1513
  %v1580 = vmul.f32 %v1564, %v1515
  %v1581 = vadd.f32 %v1276, %v1565
  %v1582 = vadd.f32 %v1278, %v1566
  %v1583 = vadd.f32 %v1353, %v1567
  %v1584 = vadd.f32 %v1355, %v1568
  %v1585 = vadd.f32 %v1430, %v1569
  %v1586 = vadd.f32 %v1432, %v1570
  %v1587 = vadd.f32 %v1507, %v1571
  %v1588 = vadd.f32 %v1509, %v1572
  %v1589 = vadd.f32 %v1282, %v1573
  %v1590 = vadd.f32 %v1284, %v1574
  %v1591 = vadd.f32 %v1359, %v1575
  %v1592 = vadd.f32 %v1361, %v1576
  %v1593 = vadd.f32 %v1436, %v1577
  %v1594 = vadd.f32 %v1438, %v1578
  %v1595 = vadd.f32 %v1513, %v1579
  %v1596 = vadd.f32 %v1515, %v1580
  %v1597 = vmul.f32 %v1581, 0.7978846
  %v1598 = vmul.f32 %v1582, 0.7978846
  %v1599 = vmul.f32 %v1583, 0.7978846
  %v1600 = vmul.f32 %v1584, 0.7978846
  %v1601 = vmul.f32 %v1585, 0.7978846
  %v1602 = vmul.f32 %v1586, 0.7978846
  %v1603 = vmul.f32 %v1587, 0.7978846
  %v1604 = vmul.f32 %v1588, 0.7978846
  %v1605 = vmul.f32 %v1589, 0.7978846
  %v1606 = vmul.f32 %v1590, 0.7978846
  %v1607 = vmul.f32 %v1591, 0.7978846
  %v1608 = vmul.f32 %v1592, 0.7978846
  %v1609 = vmul.f32 %v1593, 0.7978846
  %v1610 = vmul.f32 %v1594, 0.7978846
  %v1611 = vmul.f32 %v1595, 0.7978846
  %v1612 = vmul.f32 %v1596, 0.7978846
  %v1613 = vtanh.pop %v1597
  %v1614 = vtanh.pop %v1598
  %v1615 = vtanh.pop %v1599
  %v1616 = vtanh.pop %v1600
  %v1617 = vtanh.pop %v1601
  %v1618 = vtanh.pop %v1602
  %v1619 = vtanh.pop %v1603
  %v1620 = vtanh.pop %v1604
  %v1621 = vtanh.pop %v1605
  %v1622 = vtanh.pop %v1606
  %v1623 = vtanh.pop %v1607
  %v1624 = vtanh.pop %v1608
  %v1625 = vtanh.pop %v1609
  %v1626 = vtanh.pop %v1610
  %v1627 = vtanh.pop %v1611
  %v1628 = vtanh.pop %v1612
  %v1629 = vadd.f32 %v1613, 1.0
  %v1630 = vadd.f32 %v1614, 1.0
  %v1631 = vadd.f32 %v1615, 1.0
  %v1632 = vadd.f32 %v1616, 1.0
  %v1633 = vadd.f32 %v1617, 1.0
  %v1634 = vadd.f32 %v1618, 1.0
  %v1635 = vadd.f32 %v1619, 1.0
  %v1636 = vadd.f32 %v1620, 1.0
  %v1637 = vadd.f32 %v1621, 1.0
  %v1638 = vadd.f32 %v1622, 1.0
  %v1639 = vadd.f32 %v1623, 1.0
  %v1640 = vadd.f32 %v1624, 1.0
  %v1641 = vadd.f32 %v1625, 1.0
  %v1642 = vadd.f32 %v1626, 1.0
  %v1643 = vadd.f32 %v1627, 1.0
  %v1644 = vadd.f32 %v1628, 1.0
  %v1645 = vmul.f32 %v1517, %v1629
  %v1646 = vmul.f32 %v1518, %v1630
  %v1647 = vmul.f32 %v1519, %v1631
  %v1648 = vmul.f32 %v1520, %v1632
  %v1649 = vmul.f32 %v1521, %v1633
  %v1650 = vmul.f32 %v1522, %v1634
  %v1651 = vmul.f32 %v1523, %v1635
  %v1652 = vmul.f32 %v1524, %v1636
  %v1653 = vmul.f32 %v1525, %v1637
  %v1654 = vmul.f32 %v1526, %v1638
  %v1655 = vmul.f32 %v1527, %v1639
  %v1656 = vmul.f32 %v1528, %v1640
  %v1657 = vmul.f32 %v1529, %v1641
  %v1658 = vmul.f32 %v1530, %v1642
  %v1659 = vmul.f32 %v1531, %v1643
  %v1660 = vmul.f32 %v1532, %v1644
  %1661 = vrot.lane.b32.xlu0 %v1645, 17
  %v1662 = vpop.permute.xlu0 %1661
  %1663 = vrot.lane.b32.xlu0 %v1653, 17
  %v1664 = vpop.permute.xlu0 %1663
  %1665 = vrot.lane.b32.xlu0 %v1646, 17
  %v1666 = vpop.permute.xlu0 %1665
  %1667 = vrot.lane.b32.xlu0 %v1654, 17
  %v1668 = vpop.permute.xlu0 %1667
  %1669 = vrot.lane.b32.xlu0 %v1647, 17
  %v1670 = vpop.permute.xlu0 %1669
  %1671 = vrot.lane.b32.xlu0 %v1655, 17
  %v1672 = vpop.permute.xlu0 %1671
  %1673 = vrot.lane.b32.xlu0 %v1648, 17
  %v1674 = vpop.permute.xlu0 %1673
  %1675 = vrot.lane.b32.xlu0 %v1656, 17
  %v1676 = vpop.permute.xlu0 %1675
  %1677 = vrot.lane.b32.xlu0 %v1649, 17
  %v1678 = vpop.permute.xlu0 %1677
  %1679 = vrot.lane.b32.xlu0 %v1657, 17
  %v1680 = vpop.permute.xlu0 %1679
  %1681 = vrot.lane.b32.xlu0 %v1650, 17
  %v1682 = vpop.permute.xlu0 %1681
  %1683 = vrot.lane.b32.xlu0 %v1658, 17
  %v1684 = vpop.permute.xlu0 %1683
  %1685 = vrot.lane.b32.xlu0 %v1651, 17
  %v1686 = vpop.permute.xlu0 %1685
  %1687 = vrot.lane.b32.xlu0 %v1659, 17
  %v1688 = vpop.permute.xlu0 %1687
  %1689 = vrot.lane.b32.xlu0 %v1652, 17
  %v1690 = vpop.permute.xlu0 %1689
  %1691 = vrot.lane.b32.xlu0 %v1660, 17
  %v1692 = vpop.permute.xlu0 %1691
  %v1693 = vsel %vm101, %v1686, %v1690
  %v1694 = vsel %vm101, %v1688, %v1692
  %v1695 = vsel %vm101, %v1682, %v1686
  %v1696 = vsel %vm101, %v1684, %v1688
  %v1697 = vsel %vm101, %v1678, %v1682
  %v1698 = vsel %vm101, %v1680, %v1684
  %v1699 = vsel %vm101, %v1674, %v1678
  %v1700 = vsel %vm101, %v1676, %v1680
  %v1701 = vsel %vm101, %v1670, %v1674
  %v1702 = vsel %vm101, %v1672, %v1676
  %v1703 = vsel %vm101, %v1666, %v1670
  %v1704 = vsel %vm101, %v1668, %v1672
  %v1705 = vsel %vm101, %v1662, %v1666
  %v1706 = vsel %vm101, %v1664, %v1668
  %v1707 = vsel %vm101, %v1690, %v1662
  %v1708 = vsel %vm101, %v1692, %v1664
  %v1709 = vmul.f32 %v1707, %v114
  %v1710 = vmul.f32 %v1705, %v118
  %v1711 = vmul.f32 %v1703, %v122
  %v1712 = vmul.f32 %v1701, %v126
  %v1713 = vmul.f32 %v1699, %v130
  %v1714 = vmul.f32 %v1697, %v134
  %v1715 = vmul.f32 %v1695, %v138
  %v1716 = vmul.f32 %v1693, %v142
  %v1717 = vmul.f32 %v1708, %v114
  %v1718 = vmul.f32 %v1706, %v118
  %v1719 = vmul.f32 %v1704, %v122
  %v1720 = vmul.f32 %v1702, %v126
  %v1721 = vmul.f32 %v1700, %v130
  %v1722 = vmul.f32 %v1698, %v134
  %v1723 = vmul.f32 %v1696, %v138
  %v1724 = vmul.f32 %v1694, %v142
  %1725 = vst [vmem:[#allocation2] sm:$0xff] %v1709
  %1726 = vst [vmem:[#allocation2 + $0x8] sm:$0xff] %v1710
  %1727 = vst [vmem:[#allocation2 + $0x10] sm:$0xff] %v1711
  %1728 = vst [vmem:[#allocation2 + $0x18] sm:$0xff] %v1712
  %1729 = vst [vmem:[#allocation2 + $0x20] sm:$0xff] %v1713
  %1730 = vst [vmem:[#allocation2 + $0x28] sm:$0xff] %v1714
  %1731 = vst [vmem:[#allocation2 + $0x30] sm:$0xff] %v1715
  %1732 = vst [vmem:[#allocation2 + $0x38] sm:$0xff] %v1716
  %1733 = vst [vmem:[#allocation2 + $0x40] sm:$0xff] %v1717
  %1734 = vst [vmem:[#allocation2 + $0x48] sm:$0xff] %v1718
  %1735 = vst [vmem:[#allocation2 + $0x50] sm:$0xff] %v1719
  %1736 = vst [vmem:[#allocation2 + $0x58] sm:$0xff] %v1720
  %1737 = vst [vmem:[#allocation2 + $0x60] sm:$0xff] %v1721
  %1738 = vst [vmem:[#allocation2 + $0x68] sm:$0xff] %v1722
  %1739 = vst [vmem:[#allocation2 + $0x70] sm:$0xff] %v1723
  %1740 = vst [vmem:[#allocation2 + $0x78] sm:$0xff] %v1724
  %1741 = vrot.lane.b32.xlu0 %v1645, 16
  %v1742 = vpop.permute.xlu0 %1741
  %1743 = vrot.lane.b32.xlu0 %v1653, 16
  %v1744 = vpop.permute.xlu0 %1743
  %1745 = vrot.lane.b32.xlu0 %v1646, 16
  %v1746 = vpop.permute.xlu0 %1745
  %1747 = vrot.lane.b32.xlu0 %v1654, 16
  %v1748 = vpop.permute.xlu0 %1747
  %1749 = vrot.lane.b32.xlu0 %v1647, 16
  %v1750 = vpop.permute.xlu0 %1749
  %1751 = vrot.lane.b32.xlu0 %v1655, 16
  %v1752 = vpop.permute.xlu0 %1751
  %1753 = vrot.lane.b32.xlu0 %v1648, 16
  %v1754 = vpop.permute.xlu0 %1753
  %1755 = vrot.lane.b32.xlu0 %v1656, 16
  %v1756 = vpop.permute.xlu0 %1755
  %1757 = vrot.lane.b32.xlu0 %v1649, 16
  %v1758 = vpop.permute.xlu0 %1757
  %1759 = vrot.lane.b32.xlu0 %v1657, 16
  %v1760 = vpop.permute.xlu0 %1759
  %1761 = vrot.lane.b32.xlu0 %v1650, 16
  %v1762 = vpop.permute.xlu0 %1761
  %1763 = vrot.lane.b32.xlu0 %v1658, 16
  %v1764 = vpop.permute.xlu0 %1763
  %1765 = vrot.lane.b32.xlu0 %v1651, 16
  %v1766 = vpop.permute.xlu0 %1765
  %1767 = vrot.lane.b32.xlu0 %v1659, 16
  %v1768 = vpop.permute.xlu0 %1767
  %1769 = vrot.lane.b32.xlu0 %v1652, 16
  %v1770 = vpop.permute.xlu0 %1769
  %1771 = vrot.lane.b32.xlu0 %v1660, 16
  %v1772 = vpop.permute.xlu0 %1771
  %v1773 = vsel %vm183, %v1766, %v1770
  %v1774 = vsel %vm183, %v1768, %v1772
  %v1775 = vsel %vm183, %v1762, %v1766
  %v1776 = vsel %vm183, %v1764, %v1768
  %v1777 = vsel %vm183, %v1758, %v1762
  %v1778 = vsel %vm183, %v1760, %v1764
  %v1779 = vsel %vm183, %v1754, %v1758
  %v1780 = vsel %vm183, %v1756, %v1760
  %v1781 = vsel %vm183, %v1750, %v1754
  %v1782 = vsel %vm183, %v1752, %v1756
  %v1783 = vsel %vm183, %v1746, %v1750
  %v1784 = vsel %vm183, %v1748, %v1752
  %v1785 = vsel %vm183, %v1742, %v1746
  %v1786 = vsel %vm183, %v1744, %v1748
  %v1787 = vsel %vm183, %v1770, %v1742
  %v1788 = vsel %vm183, %v1772, %v1744
  %v1789 = vmul.f32 %v1787, %v196
  %v1790 = vmul.f32 %v1785, %v200
  %v1791 = vmul.f32 %v1783, %v204
  %v1792 = vmul.f32 %v1781, %v208
  %v1793 = vmul.f32 %v1779, %v212
  %v1794 = vmul.f32 %v1777, %v216
  %v1795 = vmul.f32 %v1775, %v220
  %v1796 = vmul.f32 %v1773, %v224
  %v1797 = vmul.f32 %v1788, %v196
  %v1798 = vmul.f32 %v1786, %v200
  %v1799 = vmul.f32 %v1784, %v204
  %v1800 = vmul.f32 %v1782, %v208
  %v1801 = vmul.f32 %v1780, %v212
  %v1802 = vmul.f32 %v1778, %v216
  %v1803 = vmul.f32 %v1776, %v220
  %v1804 = vmul.f32 %v1774, %v224
  %1805 = vst [vmem:[#allocation2 + $0x80] sm:$0xff] %v1789
  %1806 = vst [vmem:[#allocation2 + $0x88] sm:$0xff] %v1790
  %1807 = vst [vmem:[#allocation2 + $0x90] sm:$0xff] %v1791
  %1808 = vst [vmem:[#allocation2 + $0x98] sm:$0xff] %v1792
  %1809 = vst [vmem:[#allocation2 + $0xa0] sm:$0xff] %v1793
  %1810 = vst [vmem:[#allocation2 + $0xa8] sm:$0xff] %v1794
  %1811 = vst [vmem:[#allocation2 + $0xb0] sm:$0xff] %v1795
  %1812 = vst [vmem:[#allocation2 + $0xb8] sm:$0xff] %v1796
  %1813 = vst [vmem:[#allocation2 + $0xc0] sm:$0xff] %v1797
  %1814 = vst [vmem:[#allocation2 + $0xc8] sm:$0xff] %v1798
  %1815 = vst [vmem:[#allocation2 + $0xd0] sm:$0xff] %v1799
  %1816 = vst [vmem:[#allocation2 + $0xd8] sm:$0xff] %v1800
  %1817 = vst [vmem:[#allocation2 + $0xe0] sm:$0xff] %v1801
  %1818 = vst [vmem:[#allocation2 + $0xe8] sm:$0xff] %v1802
  %1819 = vst [vmem:[#allocation2 + $0xf0] sm:$0xff] %v1803
  %1820 = vst [vmem:[#allocation2 + $0xf8] sm:$0xff] %v1804
  %1821 = vrot.lane.b32.xlu0 %v1645, 15
  %v1822 = vpop.permute.xlu0 %1821
  %1823 = vrot.lane.b32.xlu0 %v1653, 15
  %v1824 = vpop.permute.xlu0 %1823
  %1825 = vrot.lane.b32.xlu0 %v1646, 15
  %v1826 = vpop.permute.xlu0 %1825
  %1827 = vrot.lane.b32.xlu0 %v1654, 15
  %v1828 = vpop.permute.xlu0 %1827
  %1829 = vrot.lane.b32.xlu0 %v1647, 15
  %v1830 = vpop.permute.xlu0 %1829
  %1831 = vrot.lane.b32.xlu0 %v1655, 15
  %v1832 = vpop.permute.xlu0 %1831
  %1833 = vrot.lane.b32.xlu0 %v1648, 15
  %v1834 = vpop.permute.xlu0 %1833
  %1835 = vrot.lane.b32.xlu0 %v1656, 15
  %v1836 = vpop.permute.xlu0 %1835
  %1837 = vrot.lane.b32.xlu0 %v1649, 15
  %v1838 = vpop.permute.xlu0 %1837
  %1839 = vrot.lane.b32.xlu0 %v1657, 15
  %v1840 = vpop.permute.xlu0 %1839
  %1841 = vrot.lane.b32.xlu0 %v1650, 15
  %v1842 = vpop.permute.xlu0 %1841
  %1843 = vrot.lane.b32.xlu0 %v1658, 15
  %v1844 = vpop.permute.xlu0 %1843
  %1845 = vrot.lane.b32.xlu0 %v1651, 15
  %v1846 = vpop.permute.xlu0 %1845
  %1847 = vrot.lane.b32.xlu0 %v1659, 15
  %v1848 = vpop.permute.xlu0 %1847
  %1849 = vrot.lane.b32.xlu0 %v1652, 15
  %v1850 = vpop.permute.xlu0 %1849
  %1851 = vrot.lane.b32.xlu0 %v1660, 15
  %v1852 = vpop.permute.xlu0 %1851
  %v1853 = vsel %vm265, %v1846, %v1850
  %v1854 = vsel %vm265, %v1848, %v1852
  %v1855 = vsel %vm265, %v1842, %v1846
  %v1856 = vsel %vm265, %v1844, %v1848
  %v1857 = vsel %vm265, %v1838, %v1842
  %v1858 = vsel %vm265, %v1840, %v1844
  %v1859 = vsel %vm265, %v1834, %v1838
  %v1860 = vsel %vm265, %v1836, %v1840
  %v1861 = vsel %vm265, %v1830, %v1834
  %v1862 = vsel %vm265, %v1832, %v1836
  %v1863 = vsel %vm265, %v1826, %v1830
  %v1864 = vsel %vm265, %v1828, %v1832
  %v1865 = vsel %vm265, %v1822, %v1826
  %v1866 = vsel %vm265, %v1824, %v1828
  %v1867 = vsel %vm265, %v1850, %v1822
  %v1868 = vsel %vm265, %v1852, %v1824
  %v1869 = vmul.f32 %v1867, %v278
  %v1870 = vmul.f32 %v1865, %v282
  %v1871 = vmul.f32 %v1863, %v286
  %v1872 = vmul.f32 %v1861, %v290
  %v1873 = vmul.f32 %v1859, %v294
  %v1874 = vmul.f32 %v1857, %v298
  %v1875 = vmul.f32 %v1855, %v302
  %v1876 = vmul.f32 %v1853, %v306
  %v1877 = vmul.f32 %v1868, %v278
  %v1878 = vmul.f32 %v1866, %v282
  %v1879 = vmul.f32 %v1864, %v286
  %v1880 = vmul.f32 %v1862, %v290
  %v1881 = vmul.f32 %v1860, %v294
  %v1882 = vmul.f32 %v1858, %v298
  %v1883 = vmul.f32 %v1856, %v302
  %v1884 = vmul.f32 %v1854, %v306
  %1885 = vst [vmem:[#allocation2 + $0x100] sm:$0xff] %v1869
  %1886 = vst [vmem:[#allocation2 + $0x108] sm:$0xff] %v1870
  %1887 = vst [vmem:[#allocation2 + $0x110] sm:$0xff] %v1871
  %1888 = vst [vmem:[#allocation2 + $0x118] sm:$0xff] %v1872
  %1889 = vst [vmem:[#allocation2 + $0x120] sm:$0xff] %v1873
  %1890 = vst [vmem:[#allocation2 + $0x128] sm:$0xff] %v1874
  %1891 = vst [vmem:[#allocation2 + $0x130] sm:$0xff] %v1875
  %1892 = vst [vmem:[#allocation2 + $0x138] sm:$0xff] %v1876
  %1893 = vst [vmem:[#allocation2 + $0x140] sm:$0xff] %v1877
  %1894 = vst [vmem:[#allocation2 + $0x148] sm:$0xff] %v1878
  %1895 = vst [vmem:[#allocation2 + $0x150] sm:$0xff] %v1879
  %1896 = vst [vmem:[#allocation2 + $0x158] sm:$0xff] %v1880
  %1897 = vst [vmem:[#allocation2 + $0x160] sm:$0xff] %v1881
  %1898 = vst [vmem:[#allocation2 + $0x168] sm:$0xff] %v1882
  %1899 = vst [vmem:[#allocation2 + $0x170] sm:$0xff] %v1883
  %1900 = vst [vmem:[#allocation2 + $0x178] sm:$0xff] %v1884
  %1901 = vrot.lane.b32.xlu0 %v1645, 1
  %v1902 = vpop.permute.xlu0 %1901
  %1903 = vrot.lane.b32.xlu0 %v1653, 1
  %v1904 = vpop.permute.xlu0 %1903
  %1905 = vrot.lane.b32.xlu0 %v1646, 1
  %v1906 = vpop.permute.xlu0 %1905
  %1907 = vrot.lane.b32.xlu0 %v1654, 1
  %v1908 = vpop.permute.xlu0 %1907
  %1909 = vrot.lane.b32.xlu0 %v1647, 1
  %v1910 = vpop.permute.xlu0 %1909
  %1911 = vrot.lane.b32.xlu0 %v1655, 1
  %v1912 = vpop.permute.xlu0 %1911
  %1913 = vrot.lane.b32.xlu0 %v1648, 1
  %v1914 = vpop.permute.xlu0 %1913
  %1915 = vrot.lane.b32.xlu0 %v1656, 1
  %v1916 = vpop.permute.xlu0 %1915
  %1917 = vrot.lane.b32.xlu0 %v1649, 1
  %v1918 = vpop.permute.xlu0 %1917
  %1919 = vrot.lane.b32.xlu0 %v1657, 1
  %v1920 = vpop.permute.xlu0 %1919
  %1921 = vrot.lane.b32.xlu0 %v1650, 1
  %v1922 = vpop.permute.xlu0 %1921
  %1923 = vrot.lane.b32.xlu0 %v1658, 1
  %v1924 = vpop.permute.xlu0 %1923
  %1925 = vrot.lane.b32.xlu0 %v1651, 1
  %v1926 = vpop.permute.xlu0 %1925
  %1927 = vrot.lane.b32.xlu0 %v1659, 1
  %v1928 = vpop.permute.xlu0 %1927
  %1929 = vrot.lane.b32.xlu0 %v1652, 1
  %v1930 = vpop.permute.xlu0 %1929
  %1931 = vrot.lane.b32.xlu0 %v1660, 1
  %v1932 = vpop.permute.xlu0 %1931
  %v1933 = vsel %vm347, %v1926, %v1930
  %v1934 = vsel %vm347, %v1928, %v1932
  %v1935 = vsel %vm347, %v1922, %v1926
  %v1936 = vsel %vm347, %v1924, %v1928
  %v1937 = vsel %vm347, %v1918, %v1922
  %v1938 = vsel %vm347, %v1920, %v1924
  %v1939 = vsel %vm347, %v1914, %v1918
  %v1940 = vsel %vm347, %v1916, %v1920
  %v1941 = vsel %vm347, %v1910, %v1914
  %v1942 = vsel %vm347, %v1912, %v1916
  %v1943 = vsel %vm347, %v1906, %v1910
  %v1944 = vsel %vm347, %v1908, %v1912
  %v1945 = vsel %vm347, %v1902, %v1906
  %v1946 = vsel %vm347, %v1904, %v1908
  %v1947 = vsel %vm347, %v1930, %v1902
  %v1948 = vsel %vm347, %v1932, %v1904
  %v1949 = vmul.f32 %v1947, %v360
  %v1950 = vmul.f32 %v1945, %v364
  %v1951 = vmul.f32 %v1943, %v368
  %v1952 = vmul.f32 %v1941, %v372
  %v1953 = vmul.f32 %v1939, %v376
  %v1954 = vmul.f32 %v1937, %v380
  %v1955 = vmul.f32 %v1935, %v384
  %v1956 = vmul.f32 %v1933, %v388
  %v1957 = vmul.f32 %v1948, %v360
  %v1958 = vmul.f32 %v1946, %v364
  %v1959 = vmul.f32 %v1944, %v368
  %v1960 = vmul.f32 %v1942, %v372
  %v1961 = vmul.f32 %v1940, %v376
  %v1962 = vmul.f32 %v1938, %v380
  %v1963 = vmul.f32 %v1936, %v384
  %v1964 = vmul.f32 %v1934, %v388
  %1965 = vst [vmem:[#allocation2 + $0x180] sm:$0xff] %v1949
  %1966 = vst [vmem:[#allocation2 + $0x188] sm:$0xff] %v1950
  %1967 = vst [vmem:[#allocation2 + $0x190] sm:$0xff] %v1951
  %1968 = vst [vmem:[#allocation2 + $0x198] sm:$0xff] %v1952
  %1969 = vst [vmem:[#allocation2 + $0x1a0] sm:$0xff] %v1953
  %1970 = vst [vmem:[#allocation2 + $0x1a8] sm:$0xff] %v1954
  %1971 = vst [vmem:[#allocation2 + $0x1b0] sm:$0xff] %v1955
  %1972 = vst [vmem:[#allocation2 + $0x1b8] sm:$0xff] %v1956
  %1973 = vst [vmem:[#allocation2 + $0x1c0] sm:$0xff] %v1957
  %1974 = vst [vmem:[#allocation2 + $0x1c8] sm:$0xff] %v1958
  %1975 = vst [vmem:[#allocation2 + $0x1d0] sm:$0xff] %v1959
  %1976 = vst [vmem:[#allocation2 + $0x1d8] sm:$0xff] %v1960
  %1977 = vst [vmem:[#allocation2 + $0x1e0] sm:$0xff] %v1961
  %1978 = vst [vmem:[#allocation2 + $0x1e8] sm:$0xff] %v1962
  %1979 = vst [vmem:[#allocation2 + $0x1f0] sm:$0xff] %v1963
  %1980 = vst [vmem:[#allocation2 + $0x1f8] sm:$0xff] %v1964
  %1981 = vst [vmem:[#allocation2 + $0x200] sm:$0xff] %v1645
  %1982 = vst [vmem:[#allocation2 + $0x208] sm:$0xff] %v1646
  %1983 = vst [vmem:[#allocation2 + $0x210] sm:$0xff] %v1647
  %1984 = vst [vmem:[#allocation2 + $0x218] sm:$0xff] %v1648
  %1985 = vst [vmem:[#allocation2 + $0x220] sm:$0xff] %v1649
  %1986 = vst [vmem:[#allocation2 + $0x228] sm:$0xff] %v1650
  %1987 = vst [vmem:[#allocation2 + $0x230] sm:$0xff] %v1651
  %1988 = vst [vmem:[#allocation2 + $0x238] sm:$0xff] %v1652
  %1989 = vst [vmem:[#allocation2 + $0x240] sm:$0xff] %v1653
  %1990 = vst [vmem:[#allocation2 + $0x248] sm:$0xff] %v1654
  %1991 = vst [vmem:[#allocation2 + $0x250] sm:$0xff] %v1655
  %1992 = vst [vmem:[#allocation2 + $0x258] sm:$0xff] %v1656
  %1993 = vst [vmem:[#allocation2 + $0x260] sm:$0xff] %v1657
  %1994 = vst [vmem:[#allocation2 + $0x268] sm:$0xff] %v1658
  %1995 = vst [vmem:[#allocation2 + $0x270] sm:$0xff] %v1659
  %1996 = vst [vmem:[#allocation2 + $0x278] sm:$0xff] %v1660
  %1997 = vrot.lane.b32.xlu0 %v1645, 127
  %v1998 = vpop.permute.xlu0 %1997
  %1999 = vrot.lane.b32.xlu0 %v1653, 127
  %v2000 = vpop.permute.xlu0 %1999
  %2001 = vrot.lane.b32.xlu0 %v1646, 127
  %v2002 = vpop.permute.xlu0 %2001
  %2003 = vrot.lane.b32.xlu0 %v1654, 127
  %v2004 = vpop.permute.xlu0 %2003
  %2005 = vrot.lane.b32.xlu0 %v1647, 127
  %v2006 = vpop.permute.xlu0 %2005
  %2007 = vrot.lane.b32.xlu0 %v1655, 127
  %v2008 = vpop.permute.xlu0 %2007
  %2009 = vrot.lane.b32.xlu0 %v1648, 127
  %v2010 = vpop.permute.xlu0 %2009
  %2011 = vrot.lane.b32.xlu0 %v1656, 127
  %v2012 = vpop.permute.xlu0 %2011
  %2013 = vrot.lane.b32.xlu0 %v1649, 127
  %v2014 = vpop.permute.xlu0 %2013
  %2015 = vrot.lane.b32.xlu0 %v1657, 127
  %v2016 = vpop.permute.xlu0 %2015
  %2017 = vrot.lane.b32.xlu0 %v1650, 127
  %v2018 = vpop.permute.xlu0 %2017
  %2019 = vrot.lane.b32.xlu0 %v1658, 127
  %v2020 = vpop.permute.xlu0 %2019
  %2021 = vrot.lane.b32.xlu0 %v1651, 127
  %v2022 = vpop.permute.xlu0 %2021
  %2023 = vrot.lane.b32.xlu0 %v1659, 127
  %v2024 = vpop.permute.xlu0 %2023
  %2025 = vrot.lane.b32.xlu0 %v1652, 127
  %v2026 = vpop.permute.xlu0 %2025
  %2027 = vrot.lane.b32.xlu0 %v1660, 127
  %v2028 = vpop.permute.xlu0 %2027
  %v2029 = vsel %vm437, %v2022, %v2026
  %v2030 = vsel %vm437, %v2024, %v2028
  %v2031 = vsel %vm437, %v2018, %v2022
  %v2032 = vsel %vm437, %v2020, %v2024
  %v2033 = vsel %vm437, %v2014, %v2018
  %v2034 = vsel %vm437, %v2016, %v2020
  %v2035 = vsel %vm437, %v2010, %v2014
  %v2036 = vsel %vm437, %v2012, %v2016
  %v2037 = vsel %vm437, %v2006, %v2010
  %v2038 = vsel %vm437, %v2008, %v2012
  %v2039 = vsel %vm437, %v2002, %v2006
  %v2040 = vsel %vm437, %v2004, %v2008
  %v2041 = vsel %vm437, %v1998, %v2002
  %v2042 = vsel %vm437, %v2000, %v2004
  %v2043 = vsel %vm437, %v2026, %v1998
  %v2044 = vsel %vm437, %v2028, %v2000
  %v2045 = vmul.f32 %v2041, %v450
  %v2046 = vmul.f32 %v2039, %v454
  %v2047 = vmul.f32 %v2037, %v458
  %v2048 = vmul.f32 %v2035, %v462
  %v2049 = vmul.f32 %v2033, %v466
  %v2050 = vmul.f32 %v2031, %v470
  %v2051 = vmul.f32 %v2029, %v474
  %v2052 = vmul.f32 %v2043, %v478
  %v2053 = vmul.f32 %v2042, %v450
  %v2054 = vmul.f32 %v2040, %v454
  %v2055 = vmul.f32 %v2038, %v458
  %v2056 = vmul.f32 %v2036, %v462
  %v2057 = vmul.f32 %v2034, %v466
  %v2058 = vmul.f32 %v2032, %v470
  %v2059 = vmul.f32 %v2030, %v474
  %v2060 = vmul.f32 %v2044, %v478
  %2061 = vst [vmem:[#allocation2 + $0x280] sm:$0xff] %v2045
  %2062 = vst [vmem:[#allocation2 + $0x288] sm:$0xff] %v2046
  %2063 = vst [vmem:[#allocation2 + $0x290] sm:$0xff] %v2047
  %2064 = vst [vmem:[#allocation2 + $0x298] sm:$0xff] %v2048
  %2065 = vst [vmem:[#allocation2 + $0x2a0] sm:$0xff] %v2049
  %2066 = vst [vmem:[#allocation2 + $0x2a8] sm:$0xff] %v2050
  %2067 = vst [vmem:[#allocation2 + $0x2b0] sm:$0xff] %v2051
  %2068 = vst [vmem:[#allocation2 + $0x2b8] sm:$0xff] %v2052
  %2069 = vst [vmem:[#allocation2 + $0x2c0] sm:$0xff] %v2053
  %2070 = vst [vmem:[#allocation2 + $0x2c8] sm:$0xff] %v2054
  %2071 = vst [vmem:[#allocation2 + $0x2d0] sm:$0xff] %v2055
  %2072 = vst [vmem:[#allocation2 + $0x2d8] sm:$0xff] %v2056
  %2073 = vst [vmem:[#allocation2 + $0x2e0] sm:$0xff] %v2057
  %2074 = vst [vmem:[#allocation2 + $0x2e8] sm:$0xff] %v2058
  %2075 = vst [vmem:[#allocation2 + $0x2f0] sm:$0xff] %v2059
  %2076 = vst [vmem:[#allocation2 + $0x2f8] sm:$0xff] %v2060
  %2077 = vrot.lane.b32.xlu0 %v1645, 113
  %v2078 = vpop.permute.xlu0 %2077
  %2079 = vrot.lane.b32.xlu0 %v1653, 113
  %v2080 = vpop.permute.xlu0 %2079
  %2081 = vrot.lane.b32.xlu0 %v1646, 113
  %v2082 = vpop.permute.xlu0 %2081
  %2083 = vrot.lane.b32.xlu0 %v1654, 113
  %v2084 = vpop.permute.xlu0 %2083
  %2085 = vrot.lane.b32.xlu0 %v1647, 113
  %v2086 = vpop.permute.xlu0 %2085
  %2087 = vrot.lane.b32.xlu0 %v1655, 113
  %v2088 = vpop.permute.xlu0 %2087
  %2089 = vrot.lane.b32.xlu0 %v1648, 113
  %v2090 = vpop.permute.xlu0 %2089
  %2091 = vrot.lane.b32.xlu0 %v1656, 113
  %v2092 = vpop.permute.xlu0 %2091
  %2093 = vrot.lane.b32.xlu0 %v1649, 113
  %v2094 = vpop.permute.xlu0 %2093
  %2095 = vrot.lane.b32.xlu0 %v1657, 113
  %v2096 = vpop.permute.xlu0 %2095
  %2097 = vrot.lane.b32.xlu0 %v1650, 113
  %v2098 = vpop.permute.xlu0 %2097
  %2099 = vrot.lane.b32.xlu0 %v1658, 113
  %v2100 = vpop.permute.xlu0 %2099
  %2101 = vrot.lane.b32.xlu0 %v1651, 113
  %v2102 = vpop.permute.xlu0 %2101
  %2103 = vrot.lane.b32.xlu0 %v1659, 113
  %v2104 = vpop.permute.xlu0 %2103
  %2105 = vrot.lane.b32.xlu0 %v1652, 113
  %v2106 = vpop.permute.xlu0 %2105
  %2107 = vrot.lane.b32.xlu0 %v1660, 113
  %v2108 = vpop.permute.xlu0 %2107
  %v2109 = vsel %vm519, %v2102, %v2106
  %v2110 = vsel %vm519, %v2104, %v2108
  %v2111 = vsel %vm519, %v2098, %v2102
  %v2112 = vsel %vm519, %v2100, %v2104
  %v2113 = vsel %vm519, %v2094, %v2098
  %v2114 = vsel %vm519, %v2096, %v2100
  %v2115 = vsel %vm519, %v2090, %v2094
  %v2116 = vsel %vm519, %v2092, %v2096
  %v2117 = vsel %vm519, %v2086, %v2090
  %v2118 = vsel %vm519, %v2088, %v2092
  %v2119 = vsel %vm519, %v2082, %v2086
  %v2120 = vsel %vm519, %v2084, %v2088
  %v2121 = vsel %vm519, %v2078, %v2082
  %v2122 = vsel %vm519, %v2080, %v2084
  %v2123 = vsel %vm519, %v2106, %v2078
  %v2124 = vsel %vm519, %v2108, %v2080
  %v2125 = vmul.f32 %v2121, %v532
  %v2126 = vmul.f32 %v2119, %v536
  %v2127 = vmul.f32 %v2117, %v540
  %v2128 = vmul.f32 %v2115, %v544
  %v2129 = vmul.f32 %v2113, %v548
  %v2130 = vmul.f32 %v2111, %v552
  %v2131 = vmul.f32 %v2109, %v556
  %v2132 = vmul.f32 %v2123, %v560
  %v2133 = vmul.f32 %v2122, %v532
  %v2134 = vmul.f32 %v2120, %v536
  %v2135 = vmul.f32 %v2118, %v540
  %v2136 = vmul.f32 %v2116, %v544
  %v2137 = vmul.f32 %v2114, %v548
  %v2138 = vmul.f32 %v2112, %v552
  %v2139 = vmul.f32 %v2110, %v556
  %v2140 = vmul.f32 %v2124, %v560
  %2141 = vst [vmem:[#allocation2 + $0x300] sm:$0xff] %v2125
  %2142 = vst [vmem:[#allocation2 + $0x308] sm:$0xff] %v2126
  %2143 = vst [vmem:[#allocation2 + $0x310] sm:$0xff] %v2127
  %2144 = vst [vmem:[#allocation2 + $0x318] sm:$0xff] %v2128
  %2145 = vst [vmem:[#allocation2 + $0x320] sm:$0xff] %v2129
  %2146 = vst [vmem:[#allocation2 + $0x328] sm:$0xff] %v2130
  %2147 = vst [vmem:[#allocation2 + $0x330] sm:$0xff] %v2131
  %2148 = vst [vmem:[#allocation2 + $0x338] sm:$0xff] %v2132
  %2149 = vst [vmem:[#allocation2 + $0x340] sm:$0xff] %v2133
  %2150 = vst [vmem:[#allocation2 + $0x348] sm:$0xff] %v2134
  %2151 = vst [vmem:[#allocation2 + $0x350] sm:$0xff] %v2135
  %2152 = vst [vmem:[#allocation2 + $0x358] sm:$0xff] %v2136
  %2153 = vst [vmem:[#allocation2 + $0x360] sm:$0xff] %v2137
  %2154 = vst [vmem:[#allocation2 + $0x368] sm:$0xff] %v2138
  %2155 = vst [vmem:[#allocation2 + $0x370] sm:$0xff] %v2139
  %2156 = vst [vmem:[#allocation2 + $0x378] sm:$0xff] %v2140
  %2157 = vrot.lane.b32.xlu0 %v1645, 112
  %v2158 = vpop.permute.xlu0 %2157
  %2159 = vrot.lane.b32.xlu0 %v1653, 112
  %v2160 = vpop.permute.xlu0 %2159
  %2161 = vrot.lane.b32.xlu0 %v1646, 112
  %v2162 = vpop.permute.xlu0 %2161
  %2163 = vrot.lane.b32.xlu0 %v1654, 112
  %v2164 = vpop.permute.xlu0 %2163
  %2165 = vrot.lane.b32.xlu0 %v1647, 112
  %v2166 = vpop.permute.xlu0 %2165
  %2167 = vrot.lane.b32.xlu0 %v1655, 112
  %v2168 = vpop.permute.xlu0 %2167
  %2169 = vrot.lane.b32.xlu0 %v1648, 112
  %v2170 = vpop.permute.xlu0 %2169
  %2171 = vrot.lane.b32.xlu0 %v1656, 112
  %v2172 = vpop.permute.xlu0 %2171
  %2173 = vrot.lane.b32.xlu0 %v1649, 112
  %v2174 = vpop.permute.xlu0 %2173
  %2175 = vrot.lane.b32.xlu0 %v1657, 112
  %v2176 = vpop.permute.xlu0 %2175
  %2177 = vrot.lane.b32.xlu0 %v1650, 112
  %v2178 = vpop.permute.xlu0 %2177
  %2179 = vrot.lane.b32.xlu0 %v1658, 112
  %v2180 = vpop.permute.xlu0 %2179
  %2181 = vrot.lane.b32.xlu0 %v1651, 112
  %v2182 = vpop.permute.xlu0 %2181
  %2183 = vrot.lane.b32.xlu0 %v1659, 112
  %v2184 = vpop.permute.xlu0 %2183
  %2185 = vrot.lane.b32.xlu0 %v1652, 112
  %v2186 = vpop.permute.xlu0 %2185
  %2187 = vrot.lane.b32.xlu0 %v1660, 112
  %v2188 = vpop.permute.xlu0 %2187
  %v2189 = vsel %vm601, %v2182, %v2186
  %v2190 = vsel %vm601, %v2184, %v2188
  %v2191 = vsel %vm601, %v2178, %v2182
  %v2192 = vsel %vm601, %v2180, %v2184
  %v2193 = vsel %vm601, %v2174, %v2178
  %v2194 = vsel %vm601, %v2176, %v2180
  %v2195 = vsel %vm601, %v2170, %v2174
  %v2196 = vsel %vm601, %v2172, %v2176
  %v2197 = vsel %vm601, %v2166, %v2170
  %v2198 = vsel %vm601, %v2168, %v2172
  %v2199 = vsel %vm601, %v2162, %v2166
  %v2200 = vsel %vm601, %v2164, %v2168
  %v2201 = vsel %vm601, %v2158, %v2162
  %v2202 = vsel %vm601, %v2160, %v2164
  %v2203 = vsel %vm601, %v2186, %v2158
  %v2204 = vsel %vm601, %v2188, %v2160
  %v2205 = vmul.f32 %v2201, %v614
  %v2206 = vmul.f32 %v2199, %v618
  %v2207 = vmul.f32 %v2197, %v622
  %v2208 = vmul.f32 %v2195, %v626
  %v2209 = vmul.f32 %v2193, %v630
  %v2210 = vmul.f32 %v2191, %v634
  %v2211 = vmul.f32 %v2189, %v638
  %v2212 = vmul.f32 %v2203, %v642
  %v2213 = vmul.f32 %v2202, %v614
  %v2214 = vmul.f32 %v2200, %v618
  %v2215 = vmul.f32 %v2198, %v622
  %v2216 = vmul.f32 %v2196, %v626
  %v2217 = vmul.f32 %v2194, %v630
  %v2218 = vmul.f32 %v2192, %v634
  %v2219 = vmul.f32 %v2190, %v638
  %v2220 = vmul.f32 %v2204, %v642
  %2221 = vst [vmem:[#allocation2 + $0x380] sm:$0xff] %v2205
  %2222 = vst [vmem:[#allocation2 + $0x388] sm:$0xff] %v2206
  %2223 = vst [vmem:[#allocation2 + $0x390] sm:$0xff] %v2207
  %2224 = vst [vmem:[#allocation2 + $0x398] sm:$0xff] %v2208
  %2225 = vst [vmem:[#allocation2 + $0x3a0] sm:$0xff] %v2209
  %2226 = vst [vmem:[#allocation2 + $0x3a8] sm:$0xff] %v2210
  %2227 = vst [vmem:[#allocation2 + $0x3b0] sm:$0xff] %v2211
  %2228 = vst [vmem:[#allocation2 + $0x3b8] sm:$0xff] %v2212
  %2229 = vst [vmem:[#allocation2 + $0x3c0] sm:$0xff] %v2213
  %2230 = vst [vmem:[#allocation2 + $0x3c8] sm:$0xff] %v2214
  %2231 = vst [vmem:[#allocation2 + $0x3d0] sm:$0xff] %v2215
  %2232 = vst [vmem:[#allocation2 + $0x3d8] sm:$0xff] %v2216
  %2233 = vst [vmem:[#allocation2 + $0x3e0] sm:$0xff] %v2217
  %2234 = vst [vmem:[#allocation2 + $0x3e8] sm:$0xff] %v2218
  %2235 = vst [vmem:[#allocation2 + $0x3f0] sm:$0xff] %v2219
  %2236 = vst [vmem:[#allocation2 + $0x3f8] sm:$0xff] %v2220
  %2237 = vrot.lane.b32.xlu0 %v1645, 111
  %v2238 = vpop.permute.xlu0 %2237
  %2239 = vrot.lane.b32.xlu0 %v1653, 111
  %v2240 = vpop.permute.xlu0 %2239
  %2241 = vrot.lane.b32.xlu0 %v1646, 111
  %v2242 = vpop.permute.xlu0 %2241
  %2243 = vrot.lane.b32.xlu0 %v1654, 111
  %v2244 = vpop.permute.xlu0 %2243
  %2245 = vrot.lane.b32.xlu0 %v1647, 111
  %v2246 = vpop.permute.xlu0 %2245
  %2247 = vrot.lane.b32.xlu0 %v1655, 111
  %v2248 = vpop.permute.xlu0 %2247
  %2249 = vrot.lane.b32.xlu0 %v1648, 111
  %v2250 = vpop.permute.xlu0 %2249
  %2251 = vrot.lane.b32.xlu0 %v1656, 111
  %v2252 = vpop.permute.xlu0 %2251
  %2253 = vrot.lane.b32.xlu0 %v1649, 111
  %v2254 = vpop.permute.xlu0 %2253
  %2255 = vrot.lane.b32.xlu0 %v1657, 111
  %v2256 = vpop.permute.xlu0 %2255
  %2257 = vrot.lane.b32.xlu0 %v1650, 111
  %v2258 = vpop.permute.xlu0 %2257
  %2259 = vrot.lane.b32.xlu0 %v1658, 111
  %v2260 = vpop.permute.xlu0 %2259
  %2261 = vrot.lane.b32.xlu0 %v1651, 111
  %v2262 = vpop.permute.xlu0 %2261
  %2263 = vrot.lane.b32.xlu0 %v1659, 111
  %v2264 = vpop.permute.xlu0 %2263
  %2265 = vrot.lane.b32.xlu0 %v1652, 111
  %v2266 = vpop.permute.xlu0 %2265
  %2267 = vrot.lane.b32.xlu0 %v1660, 111
  %v2268 = vpop.permute.xlu0 %2267
  %v2269 = vsel %vm683, %v2262, %v2266
  %v2270 = vsel %vm683, %v2264, %v2268
  %v2271 = vsel %vm683, %v2258, %v2262
  %v2272 = vsel %vm683, %v2260, %v2264
  %v2273 = vsel %vm683, %v2254, %v2258
  %v2274 = vsel %vm683, %v2256, %v2260
  %v2275 = vsel %vm683, %v2250, %v2254
  %v2276 = vsel %vm683, %v2252, %v2256
  %v2277 = vsel %vm683, %v2246, %v2250
  %v2278 = vsel %vm683, %v2248, %v2252
  %v2279 = vsel %vm683, %v2242, %v2246
  %v2280 = vsel %vm683, %v2244, %v2248
  %v2281 = vsel %vm683, %v2238, %v2242
  %v2282 = vsel %vm683, %v2240, %v2244
  %v2283 = vsel %vm683, %v2266, %v2238
  %v2284 = vsel %vm683, %v2268, %v2240
  %v2285 = vmul.f32 %v2281, %v696
  %v2286 = vmul.f32 %v2279, %v700
  %v2287 = vmul.f32 %v2277, %v704
  %v2288 = vmul.f32 %v2275, %v708
  %v2289 = vmul.f32 %v2273, %v712
  %v2290 = vmul.f32 %v2271, %v716
  %v2291 = vmul.f32 %v2269, %v720
  %v2292 = vmul.f32 %v2283, %v724
  %v2293 = vmul.f32 %v2282, %v696
  %v2294 = vmul.f32 %v2280, %v700
  %v2295 = vmul.f32 %v2278, %v704
  %v2296 = vmul.f32 %v2276, %v708
  %v2297 = vmul.f32 %v2274, %v712
  %v2298 = vmul.f32 %v2272, %v716
  %v2299 = vmul.f32 %v2270, %v720
  %v2300 = vmul.f32 %v2284, %v724
  %2301 = vst [vmem:[#allocation2 + $0x400] sm:$0xff] %v2285
  %2302 = vst [vmem:[#allocation2 + $0x408] sm:$0xff] %v2286
  %2303 = vst [vmem:[#allocation2 + $0x410] sm:$0xff] %v2287
  %2304 = vst [vmem:[#allocation2 + $0x418] sm:$0xff] %v2288
  %2305 = vst [vmem:[#allocation2 + $0x420] sm:$0xff] %v2289
  %2306 = vst [vmem:[#allocation2 + $0x428] sm:$0xff] %v2290
  %2307 = vst [vmem:[#allocation2 + $0x430] sm:$0xff] %v2291
  %2308 = vst [vmem:[#allocation2 + $0x438] sm:$0xff] %v2292
  %2309 = vst [vmem:[#allocation2 + $0x440] sm:$0xff] %v2293
  %2310 = vst [vmem:[#allocation2 + $0x448] sm:$0xff] %v2294
  %2311 = vst [vmem:[#allocation2 + $0x450] sm:$0xff] %v2295
  %2312 = vst [vmem:[#allocation2 + $0x458] sm:$0xff] %v2296
  %2313 = vst [vmem:[#allocation2 + $0x460] sm:$0xff] %v2297
  %2314 = vst [vmem:[#allocation2 + $0x468] sm:$0xff] %v2298
  %2315 = vst [vmem:[#allocation2 + $0x470] sm:$0xff] %v2299
  %2316 = vst [vmem:[#allocation2 + $0x478] sm:$0xff] %v2300
  %v2317 = vld [vmem:[%s7] sm:$0xff]
  %v2318 = vld [vmem:[%s7 + $0x8] sm:$0xff]
  %v2319 = vld [vmem:[%s7 + $0x10] sm:$0xff]
  %v2320 = vld [vmem:[%s7 + $0x18] sm:$0xff]
  %v2321 = vld [vmem:[#allocation2] sm:$0xff]
  %v2322 = vld [vmem:[#allocation2 + $0x8] sm:$0xff]
  %v2323 = vld [vmem:[#allocation2 + $0x10] sm:$0xff]
  %v2324 = vld [vmem:[#allocation2 + $0x18] sm:$0xff]
  %v2325 = vld [vmem:[#allocation2 + $0x20] sm:$0xff]
  %v2326 = vld [vmem:[#allocation2 + $0x28] sm:$0xff]
  %v2327 = vld [vmem:[#allocation2 + $0x30] sm:$0xff]
  %v2328 = vld [vmem:[#allocation2 + $0x38] sm:$0xff]
  %v2329 = vld [vmem:[#allocation2 + $0x40] sm:$0xff]
  %v2330 = vld [vmem:[#allocation2 + $0x48] sm:$0xff]
  %v2331 = vld [vmem:[#allocation2 + $0x50] sm:$0xff]
  %v2332 = vld [vmem:[#allocation2 + $0x58] sm:$0xff]
  %v2333 = vld [vmem:[#allocation2 + $0x60] sm:$0xff]
  %v2334 = vld [vmem:[#allocation2 + $0x68] sm:$0xff]
  %v2335 = vld [vmem:[#allocation2 + $0x70] sm:$0xff]
  %v2336 = vld [vmem:[#allocation2 + $0x78] sm:$0xff]
  %v2337 = vld [vmem:[#allocation2 + $0x80] sm:$0xff]
  %v2338 = vld [vmem:[#allocation2 + $0x88] sm:$0xff]
  %v2339 = vld [vmem:[#allocation2 + $0x90] sm:$0xff]
  %v2340 = vld [vmem:[#allocation2 + $0x98] sm:$0xff]
  %v2341 = vld [vmem:[#allocation2 + $0xa0] sm:$0xff]
  %v2342 = vld [vmem:[#allocation2 + $0xa8] sm:$0xff]
  %v2343 = vld [vmem:[#allocation2 + $0xb0] sm:$0xff]
  %v2344 = vld [vmem:[#allocation2 + $0xb8] sm:$0xff]
  %v2345 = vld [vmem:[#allocation2 + $0xc0] sm:$0xff]
  %v2346 = vld [vmem:[#allocation2 + $0xc8] sm:$0xff]
  %v2347 = vld [vmem:[#allocation2 + $0xd0] sm:$0xff]
  %v2348 = vld [vmem:[#allocation2 + $0xd8] sm:$0xff]
  %v2349 = vld [vmem:[#allocation2 + $0xe0] sm:$0xff]
  %v2350 = vld [vmem:[#allocation2 + $0xe8] sm:$0xff]
  %v2351 = vld [vmem:[#allocation2 + $0xf0] sm:$0xff]
  %v2352 = vld [vmem:[#allocation2 + $0xf8] sm:$0xff]
  %v2353 = vld [vmem:[#allocation2 + $0x100] sm:$0xff]
  %v2354 = vld [vmem:[#allocation2 + $0x108] sm:$0xff]
  %v2355 = vld [vmem:[#allocation2 + $0x110] sm:$0xff]
  %v2356 = vld [vmem:[#allocation2 + $0x118] sm:$0xff]
  %v2357 = vld [vmem:[#allocation2 + $0x120] sm:$0xff]
  %v2358 = vld [vmem:[#allocation2 + $0x128] sm:$0xff]
  %v2359 = vld [vmem:[#allocation2 + $0x130] sm:$0xff]
  %v2360 = vld [vmem:[#allocation2 + $0x138] sm:$0xff]
  %v2361 = vld [vmem:[#allocation2 + $0x140] sm:$0xff]
  %v2362 = vld [vmem:[#allocation2 + $0x148] sm:$0xff]
  %v2363 = vld [vmem:[#allocation2 + $0x150] sm:$0xff]
  %v2364 = vld [vmem:[#allocation2 + $0x158] sm:$0xff]
  %v2365 = vld [vmem:[#allocation2 + $0x160] sm:$0xff]
  %v2366 = vld [vmem:[#allocation2 + $0x168] sm:$0xff]
  %v2367 = vld [vmem:[#allocation2 + $0x170] sm:$0xff]
  %v2368 = vld [vmem:[#allocation2 + $0x178] sm:$0xff]
  %v2369 = vld [vmem:[#allocation2 + $0x180] sm:$0xff]
  %v2370 = vld [vmem:[#allocation2 + $0x188] sm:$0xff]
  %v2371 = vld [vmem:[#allocation2 + $0x190] sm:$0xff]
  %v2372 = vld [vmem:[#allocation2 + $0x198] sm:$0xff]
  %v2373 = vld [vmem:[#allocation2 + $0x1a0] sm:$0xff]
  %v2374 = vld [vmem:[#allocation2 + $0x1a8] sm:$0xff]
  %v2375 = vld [vmem:[#allocation2 + $0x1b0] sm:$0xff]
  %v2376 = vld [vmem:[#allocation2 + $0x1b8] sm:$0xff]
  %v2377 = vld [vmem:[#allocation2 + $0x1c0] sm:$0xff]
  %v2378 = vld [vmem:[#allocation2 + $0x1c8] sm:$0xff]
  %v2379 = vld [vmem:[#allocation2 + $0x1d0] sm:$0xff]
  %v2380 = vld [vmem:[#allocation2 + $0x1d8] sm:$0xff]
  %v2381 = vld [vmem:[#allocation2 + $0x1e0] sm:$0xff]
  %v2382 = vld [vmem:[#allocation2 + $0x1e8] sm:$0xff]
  %v2383 = vld [vmem:[#allocation2 + $0x1f0] sm:$0xff]
  %v2384 = vld [vmem:[#allocation2 + $0x1f8] sm:$0xff]
  %v2385 = vld [vmem:[#allocation2 + $0x200] sm:$0xff]
  %v2386 = vld [vmem:[#allocation2 + $0x208] sm:$0xff]
  %v2387 = vld [vmem:[#allocation2 + $0x210] sm:$0xff]
  %v2388 = vld [vmem:[#allocation2 + $0x218] sm:$0xff]
  %v2389 = vld [vmem:[#allocation2 + $0x220] sm:$0xff]
  %v2390 = vld [vmem:[#allocation2 + $0x228] sm:$0xff]
  %v2391 = vld [vmem:[#allocation2 + $0x230] sm:$0xff]
  %v2392 = vld [vmem:[#allocation2 + $0x238] sm:$0xff]
  %v2393 = vld [vmem:[#allocation2 + $0x240] sm:$0xff]
  %v2394 = vld [vmem:[#allocation2 + $0x248] sm:$0xff]
  %v2395 = vld [vmem:[#allocation2 + $0x250] sm:$0xff]
  %v2396 = vld [vmem:[#allocation2 + $0x258] sm:$0xff]
  %v2397 = vld [vmem:[#allocation2 + $0x260] sm:$0xff]
  %v2398 = vld [vmem:[#allocation2 + $0x268] sm:$0xff]
  %v2399 = vld [vmem:[#allocation2 + $0x270] sm:$0xff]
  %v2400 = vld [vmem:[#allocation2 + $0x278] sm:$0xff]
  %v2401 = vld [vmem:[#allocation2 + $0x280] sm:$0xff]
  %v2402 = vld [vmem:[#allocation2 + $0x288] sm:$0xff]
  %v2403 = vld [vmem:[#allocation2 + $0x290] sm:$0xff]
  %v2404 = vld [vmem:[#allocation2 + $0x298] sm:$0xff]
  %v2405 = vld [vmem:[#allocation2 + $0x2a0] sm:$0xff]
  %v2406 = vld [vmem:[#allocation2 + $0x2a8] sm:$0xff]
  %v2407 = vld [vmem:[#allocation2 + $0x2b0] sm:$0xff]
  %v2408 = vld [vmem:[#allocation2 + $0x2b8] sm:$0xff]
  %v2409 = vld [vmem:[#allocation2 + $0x2c0] sm:$0xff]
  %v2410 = vld [vmem:[#allocation2 + $0x2c8] sm:$0xff]
  %v2411 = vld [vmem:[#allocation2 + $0x2d0] sm:$0xff]
  %v2412 = vld [vmem:[#allocation2 + $0x2d8] sm:$0xff]
  %v2413 = vld [vmem:[#allocation2 + $0x2e0] sm:$0xff]
  %v2414 = vld [vmem:[#allocation2 + $0x2e8] sm:$0xff]
  %v2415 = vld [vmem:[#allocation2 + $0x2f0] sm:$0xff]
  %v2416 = vld [vmem:[#allocation2 + $0x2f8] sm:$0xff]
  %v2417 = vld [vmem:[#allocation2 + $0x300] sm:$0xff]
  %v2418 = vld [vmem:[#allocation2 + $0x308] sm:$0xff]
  %v2419 = vld [vmem:[#allocation2 + $0x310] sm:$0xff]
  %v2420 = vld [vmem:[#allocation2 + $0x318] sm:$0xff]
  %v2421 = vld [vmem:[#allocation2 + $0x320] sm:$0xff]
  %v2422 = vld [vmem:[#allocation2 + $0x328] sm:$0xff]
  %v2423 = vld [vmem:[#allocation2 + $0x330] sm:$0xff]
  %v2424 = vld [vmem:[#allocation2 + $0x338] sm:$0xff]
  %v2425 = vld [vmem:[#allocation2 + $0x340] sm:$0xff]
  %v2426 = vld [vmem:[#allocation2 + $0x348] sm:$0xff]
  %v2427 = vld [vmem:[#allocation2 + $0x350] sm:$0xff]
  %v2428 = vld [vmem:[#allocation2 + $0x358] sm:$0xff]
  %v2429 = vld [vmem:[#allocation2 + $0x360] sm:$0xff]
  %v2430 = vld [vmem:[#allocation2 + $0x368] sm:$0xff]
  %v2431 = vld [vmem:[#allocation2 + $0x370] sm:$0xff]
  %v2432 = vld [vmem:[#allocation2 + $0x378] sm:$0xff]
  %v2433 = vld [vmem:[#allocation2 + $0x380] sm:$0xff]
  %v2434 = vld [vmem:[#allocation2 + $0x388] sm:$0xff]
  %v2435 = vld [vmem:[#allocation2 + $0x390] sm:$0xff]
  %v2436 = vld [vmem:[#allocation2 + $0x398] sm:$0xff]
  %v2437 = vld [vmem:[#allocation2 + $0x3a0] sm:$0xff]
  %v2438 = vld [vmem:[#allocation2 + $0x3a8] sm:$0xff]
  %v2439 = vld [vmem:[#allocation2 + $0x3b0] sm:$0xff]
  %v2440 = vld [vmem:[#allocation2 + $0x3b8] sm:$0xff]
  %v2441 = vld [vmem:[#allocation2 + $0x3c0] sm:$0xff]
  %v2442 = vld [vmem:[#allocation2 + $0x3c8] sm:$0xff]
  %v2443 = vld [vmem:[#allocation2 + $0x3d0] sm:$0xff]
  %v2444 = vld [vmem:[#allocation2 + $0x3d8] sm:$0xff]
  %v2445 = vld [vmem:[#allocation2 + $0x3e0] sm:$0xff]
  %v2446 = vld [vmem:[#allocation2 + $0x3e8] sm:$0xff]
  %v2447 = vld [vmem:[#allocation2 + $0x3f0] sm:$0xff]
  %v2448 = vld [vmem:[#allocation2 + $0x3f8] sm:$0xff]
  %v2449 = vld [vmem:[#allocation2 + $0x400] sm:$0xff]
  %v2450 = vld [vmem:[#allocation2 + $0x408] sm:$0xff]
  %v2451 = vld [vmem:[#allocation2 + $0x410] sm:$0xff]
  %v2452 = vld [vmem:[#allocation2 + $0x418] sm:$0xff]
  %v2453 = vld [vmem:[#allocation2 + $0x420] sm:$0xff]
  %v2454 = vld [vmem:[#allocation2 + $0x428] sm:$0xff]
  %v2455 = vld [vmem:[#allocation2 + $0x430] sm:$0xff]
  %v2456 = vld [vmem:[#allocation2 + $0x438] sm:$0xff]
  %v2457 = vld [vmem:[#allocation2 + $0x440] sm:$0xff]
  %v2458 = vld [vmem:[#allocation2 + $0x448] sm:$0xff]
  %v2459 = vld [vmem:[#allocation2 + $0x450] sm:$0xff]
  %v2460 = vld [vmem:[#allocation2 + $0x458] sm:$0xff]
  %v2461 = vld [vmem:[#allocation2 + $0x460] sm:$0xff]
  %v2462 = vld [vmem:[#allocation2 + $0x468] sm:$0xff]
  %v2463 = vld [vmem:[#allocation2 + $0x470] sm:$0xff]
  %v2464 = vld [vmem:[#allocation2 + $0x478] sm:$0xff]
  %v2465 = vld [vmem:[%s8] sm:$0xff]
  %v2466 = vld [vmem:[%s8 + $0x8] sm:$0xff]
  %2468 = vset.pattern.permute.xlu0 0
  %2469 = vperm.xlu0 %2468, %v2465
  %v2470 = vpop.permute.xlu0 %2469
  %2473 = vset.pattern.permute.xlu0 0
  %2474 = vperm.xlu0 %2473, %v2466
  %v2475 = vpop.permute.xlu0 %2474
  %vm2477 = vcmask 130048
  %v2479 = vsel %vm2477, %v2318, 0
  %v2482 = vsel %vm2477, %v2320, 0
  %2484 = vmatprep.subr.mxu0 %v2322
  %2485 = vmatpush1.msra.mxu0 %v2321
  %2486 = vmatprep.subr.mxu0 %v2330
  %2487 = vmatpush1.msra.mxu0 %v2329
  %2488 = vmatprep.subr.mxu0 %v2338
  %2489 = vmatpush1.msra.mxu0 %v2337
  %2490 = vmatprep.subr.mxu0 %v2346
  %2491 = vmatpush1.msra.mxu0 %v2345
  %2492 = vmatprep.subr.mxu0 %v2354
  %2493 = vmatpush1.msra.mxu0 %v2353
  %2494 = vmatprep.subr.mxu0 %v2362
  %2495 = vmatpush1.msra.mxu0 %v2361
  %2496 = vmatprep.subr.mxu0 %v2370
  %2497 = vmatpush1.msra.mxu0 %v2369
  %2498 = vmatprep.subr.mxu0 %v2378
  %2499 = vmatpush1.msra.mxu0 %v2377
  %2500 = vmatprep.subr.mxu0 %v2386
  %2501 = vmatpush1.msra.mxu0 %v2385
  %2502 = vmatprep.subr.mxu0 %v2394
  %2503 = vmatpush1.msra.mxu0 %v2393
  %2504 = vmatprep.subr.mxu0 %v2402
  %2505 = vmatpush1.msra.mxu0 %v2401
  %2506 = vmatprep.subr.mxu0 %v2410
  %2507 = vmatpush1.msra.mxu0 %v2409
  %2508 = vmatprep.subr.mxu0 %v2418
  %2509 = vmatpush1.msra.mxu0 %v2417
  %2510 = vmatprep.subr.mxu0 %v2426
  %2511 = vmatpush1.msra.mxu0 %v2425
  %2512 = vmatprep.subr.mxu0 %v2434
  %2513 = vmatpush1.msra.mxu0 %v2433
  %2514 = vmatprep.subr.mxu0 %v2442
  %2515 = vmatpush1.msra.mxu0 %v2441
  %2516 = vmatprep.subr.mxu0 %v2450
  %2517 = vmatpush1.msra.mxu0 %v2449
  %2518 = vmatprep.subr.mxu0 %v2458
  %2519 = vmatpush1.msra.mxu0 %v2457
  %2520 = vmatprep.subr.mxu0 0.0
  %2521 = vmatpush1.msra.mxu0 0.0
  %2522 = vmatprep.subr.mxu0 0.0
  %2523 = vmatpush1.msra.mxu0 0.0
  %2524 = vmatprep.subr.mxu0 0.0
  %2525 = vmatpush1.msra.mxu0 0.0
  %2526 = vmatprep.subr.mxu0 0.0
  %2527 = vmatpush1.msra.mxu0 0.0
  %2528 = vmatprep.subr.mxu0 0.0
  %2529 = vmatpush1.msra.mxu0 0.0
  %2530 = vmatprep.subr.mxu0 0.0
  %2531 = vmatpush1.msra.mxu0 0.0
  %2532 = vmatprep.subr.mxu0 0.0
  %2533 = vmatpush1.msra.mxu0 0.0
  %2534 = vmatprep.subr.mxu0 0.0
  %2535 = vmatpush1.msra.mxu0 0.0
  %2536 = vmatprep.subr.mxu0 0.0
  %2537 = vmatpush1.msra.mxu0 0.0
  %2538 = vmatprep.subr.mxu0 0.0
  %2539 = vmatpush1.msra.mxu0 0.0
  %2540 = vmatprep.subr.mxu0 0.0
  %2541 = vmatpush1.msra.mxu0 0.0
  %2542 = vmatprep.subr.mxu0 0.0
  %2543 = vmatpush1.msra.mxu0 0.0
  %2544 = vmatprep.subr.mxu0 0.0
  %2545 = vmatpush1.msra.mxu0 0.0
  %2546 = vmatprep.subr.mxu0 0.0
  %2547 = vmatpush1.msra.mxu0 0.0
  %2548 = vmatprep.mubr.f32.mxu0 %v2479
  %2549 = vmatmul.mubr.f32.gmra.mrb[0].mxu0 %v2317
  %v2550 = vpop.f32.mrb[0].mxu0
  %v2551 = vadd.f32 %v2470, %v2550
  %v2552 = vpop.f32.mrb[0].mxu0
  %v2553 = vadd.f32 %v2470, %v2552
  %2554 = vmatprep.mubr.f32.mxu0 %v2482
  %2555 = vmatmul.mubr.f32.gmra.mrb[0].mxu0 %v2319
  %v2556 = vpop.f32.mrb[0].mxu0
  %v2557 = vadd.f32 %v2475, %v2556
  %v2558 = vpop.f32.mrb[0].mxu0
  %v2559 = vadd.f32 %v2475, %v2558
  %2560 = vdwg.mxu0
  %2561 = vmatprep.subr.mxu0 %v2324
  %2562 = vmatpush1.msra.mxu0 %v2323
  %2563 = vmatprep.subr.mxu0 %v2332
  %2564 = vmatpush1.msra.mxu0 %v2331
  %2565 = vmatprep.subr.mxu0 %v2340
  %2566 = vmatpush1.msra.mxu0 %v2339
  %2567 = vmatprep.subr.mxu0 %v2348
  %2568 = vmatpush1.msra.mxu0 %v2347
  %2569 = vmatprep.subr.mxu0 %v2356
  %2570 = vmatpush1.msra.mxu0 %v2355
  %2571 = vmatprep.subr.mxu0 %v2364
  %2572 = vmatpush1.msra.mxu0 %v2363
  %2573 = vmatprep.subr.mxu0 %v2372
  %2574 = vmatpush1.msra.mxu0 %v2371
  %2575 = vmatprep.subr.mxu0 %v2380
  %2576 = vmatpush1.msra.mxu0 %v2379
  %2577 = vmatprep.subr.mxu0 %v2388
  %2578 = vmatpush1.msra.mxu0 %v2387
  %2579 = vmatprep.subr.mxu0 %v2396
  %2580 = vmatpush1.msra.mxu0 %v2395
  %2581 = vmatprep.subr.mxu0 %v2404
  %2582 = vmatpush1.msra.mxu0 %v2403
  %2583 = vmatprep.subr.mxu0 %v2412
  %2584 = vmatpush1.msra.mxu0 %v2411
  %2585 = vmatprep.subr.mxu0 %v2420
  %2586 = vmatpush1.msra.mxu0 %v2419
  %2587 = vmatprep.subr.mxu0 %v2428
  %2588 = vmatpush1.msra.mxu0 %v2427
  %2589 = vmatprep.subr.mxu0 %v2436
  %2590 = vmatpush1.msra.mxu0 %v2435
  %2591 = vmatprep.subr.mxu0 %v2444
  %2592 = vmatpush1.msra.mxu0 %v2443
  %2593 = vmatprep.subr.mxu0 %v2452
  %2594 = vmatpush1.msra.mxu0 %v2451
  %2595 = vmatprep.subr.mxu0 %v2460
  %2596 = vmatpush1.msra.mxu0 %v2459
  %2597 = vmatprep.subr.mxu0 0.0
  %2598 = vmatpush1.msra.mxu0 0.0
  %2599 = vmatprep.subr.mxu0 0.0
  %2600 = vmatpush1.msra.mxu0 0.0
  %2601 = vmatprep.subr.mxu0 0.0
  %2602 = vmatpush1.msra.mxu0 0.0
  %2603 = vmatprep.subr.mxu0 0.0
  %2604 = vmatpush1.msra.mxu0 0.0
  %2605 = vmatprep.subr.mxu0 0.0
  %2606 = vmatpush1.msra.mxu0 0.0
  %2607 = vmatprep.subr.mxu0 0.0
  %2608 = vmatpush1.msra.mxu0 0.0
  %2609 = vmatprep.subr.mxu0 0.0
  %2610 = vmatpush1.msra.mxu0 0.0
  %2611 = vmatprep.subr.mxu0 0.0
  %2612 = vmatpush1.msra.mxu0 0.0
  %2613 = vmatprep.subr.mxu0 0.0
  %2614 = vmatpush1.msra.mxu0 0.0
  %2615 = vmatprep.subr.mxu0 0.0
  %2616 = vmatpush1.msra.mxu0 0.0
  %2617 = vmatprep.subr.mxu0 0.0
  %2618 = vmatpush1.msra.mxu0 0.0
  %2619 = vmatprep.subr.mxu0 0.0
  %2620 = vmatpush1.msra.mxu0 0.0
  %2621 = vmatprep.subr.mxu0 0.0
  %2622 = vmatpush1.msra.mxu0 0.0
  %2623 = vmatprep.subr.mxu0 0.0
  %2624 = vmatpush1.msra.mxu0 0.0
  %2625 = vmatprep.mubr.f32.mxu0 %v2479
  %2626 = vmatmul.mubr.f32.gmra.mrb[0].mxu0 %v2317
  %v2627 = vpop.f32.mrb[0].mxu0
  %v2628 = vadd.f32 %v2470, %v2627
  %v2629 = vpop.f32.mrb[0].mxu0
  %v2630 = vadd.f32 %v2470, %v2629
  %2631 = vmatprep.mubr.f32.mxu0 %v2482
  %2632 = vmatmul.mubr.f32.gmra.mrb[0].mxu0 %v2319
  %v2633 = vpop.f32.mrb[0].mxu0
  %v2634 = vadd.f32 %v2475, %v2633
  %v2635 = vpop.f32.mrb[0].mxu0
  %v2636 = vadd.f32 %v2475, %v2635
  %2637 = vdwg.mxu0
  %2638 = vmatprep.subr.mxu0 %v2326
  %2639 = vmatpush1.msra.mxu0 %v2325
  %2640 = vmatprep.subr.mxu0 %v2334
  %2641 = vmatpush1.msra.mxu0 %v2333
  %2642 = vmatprep.subr.mxu0 %v2342
  %2643 = vmatpush1.msra.mxu0 %v2341
  %2644 = vmatprep.subr.mxu0 %v2350
  %2645 = vmatpush1.msra.mxu0 %v2349
  %2646 = vmatprep.subr.mxu0 %v2358
  %2647 = vmatpush1.msra.mxu0 %v2357
  %2648 = vmatprep.subr.mxu0 %v2366
  %2649 = vmatpush1.msra.mxu0 %v2365
  %2650 = vmatprep.subr.mxu0 %v2374
  %2651 = vmatpush1.msra.mxu0 %v2373
  %2652 = vmatprep.subr.mxu0 %v2382
  %2653 = vmatpush1.msra.mxu0 %v2381
  %2654 = vmatprep.subr.mxu0 %v2390
  %2655 = vmatpush1.msra.mxu0 %v2389
  %2656 = vmatprep.subr.mxu0 %v2398
  %2657 = vmatpush1.msra.mxu0 %v2397
  %2658 = vmatprep.subr.mxu0 %v2406
  %2659 = vmatpush1.msra.mxu0 %v2405
  %2660 = vmatprep.subr.mxu0 %v2414
  %2661 = vmatpush1.msra.mxu0 %v2413
  %2662 = vmatprep.subr.mxu0 %v2422
  %2663 = vmatpush1.msra.mxu0 %v2421
  %2664 = vmatprep.subr.mxu0 %v2430
  %2665 = vmatpush1.msra.mxu0 %v2429
  %2666 = vmatprep.subr.mxu0 %v2438
  %2667 = vmatpush1.msra.mxu0 %v2437
  %2668 = vmatprep.subr.mxu0 %v2446
  %2669 = vmatpush1.msra.mxu0 %v2445
  %2670 = vmatprep.subr.mxu0 %v2454
  %2671 = vmatpush1.msra.mxu0 %v2453
  %2672 = vmatprep.subr.mxu0 %v2462
  %2673 = vmatpush1.msra.mxu0 %v2461
  %2674 = vmatprep.subr.mxu0 0.0
  %2675 = vmatpush1.msra.mxu0 0.0
  %2676 = vmatprep.subr.mxu0 0.0
  %2677 = vmatpush1.msra.mxu0 0.0
  %2678 = vmatprep.subr.mxu0 0.0
  %2679 = vmatpush1.msra.mxu0 0.0
  %2680 = vmatprep.subr.mxu0 0.0
  %2681 = vmatpush1.msra.mxu0 0.0
  %2682 = vmatprep.subr.mxu0 0.0
  %2683 = vmatpush1.msra.mxu0 0.0
  %2684 = vmatprep.subr.mxu0 0.0
  %2685 = vmatpush1.msra.mxu0 0.0
  %2686 = vmatprep.subr.mxu0 0.0
  %2687 = vmatpush1.msra.mxu0 0.0
  %2688 = vmatprep.subr.mxu0 0.0
  %2689 = vmatpush1.msra.mxu0 0.0
  %2690 = vmatprep.subr.mxu0 0.0
  %2691 = vmatpush1.msra.mxu0 0.0
  %2692 = vmatprep.subr.mxu0 0.0
  %2693 = vmatpush1.msra.mxu0 0.0
  %2694 = vmatprep.subr.mxu0 0.0
  %2695 = vmatpush1.msra.mxu0 0.0
  %2696 = vmatprep.subr.mxu0 0.0
  %2697 = vmatpush1.msra.mxu0 0.0
  %2698 = vmatprep.subr.mxu0 0.0
  %2699 = vmatpush1.msra.mxu0 0.0
  %2700 = vmatprep.subr.mxu0 0.0
  %2701 = vmatpush1.msra.mxu0 0.0
  %2702 = vmatprep.mubr.f32.mxu0 %v2479
  %2703 = vmatmul.mubr.f32.gmra.mrb[0].mxu0 %v2317
  %v2704 = vpop.f32.mrb[0].mxu0
  %v2705 = vadd.f32 %v2470, %v2704
  %v2706 = vpop.f32.mrb[0].mxu0
  %v2707 = vadd.f32 %v2470, %v2706
  %2708 = vmatprep.mubr.f32.mxu0 %v2482
  %2709 = vmatmul.mubr.f32.gmra.mrb[0].mxu0 %v2319
  %v2710 = vpop.f32.mrb[0].mxu0
  %v2711 = vadd.f32 %v2475, %v2710
  %v2712 = vpop.f32.mrb[0].mxu0
  %v2713 = vadd.f32 %v2475, %v2712
  %2714 = vdwg.mxu0
  %2715 = vmatprep.subr.mxu0 %v2328
  %2716 = vmatpush1.msra.mxu0 %v2327
  %2717 = vmatprep.subr.mxu0 %v2336
  %2718 = vmatpush1.msra.mxu0 %v2335
  %2719 = vmatprep.subr.mxu0 %v2344
  %2720 = vmatpush1.msra.mxu0 %v2343
  %2721 = vmatprep.subr.mxu0 %v2352
  %2722 = vmatpush1.msra.mxu0 %v2351
  %2723 = vmatprep.subr.mxu0 %v2360
  %2724 = vmatpush1.msra.mxu0 %v2359
  %2725 = vmatprep.subr.mxu0 %v2368
  %2726 = vmatpush1.msra.mxu0 %v2367
  %2727 = vmatprep.subr.mxu0 %v2376
  %2728 = vmatpush1.msra.mxu0 %v2375
  %2729 = vmatprep.subr.mxu0 %v2384
  %2730 = vmatpush1.msra.mxu0 %v2383
  %2731 = vmatprep.subr.mxu0 %v2392
  %2732 = vmatpush1.msra.mxu0 %v2391
  %2733 = vmatprep.subr.mxu0 %v2400
  %2734 = vmatpush1.msra.mxu0 %v2399
  %2735 = vmatprep.subr.mxu0 %v2408
  %2736 = vmatpush1.msra.mxu0 %v2407
  %2737 = vmatprep.subr.mxu0 %v2416
  %2738 = vmatpush1.msra.mxu0 %v2415
  %2739 = vmatprep.subr.mxu0 %v2424
  %2740 = vmatpush1.msra.mxu0 %v2423
  %2741 = vmatprep.subr.mxu0 %v2432
  %2742 = vmatpush1.msra.mxu0 %v2431
  %2743 = vmatprep.subr.mxu0 %v2440
  %2744 = vmatpush1.msra.mxu0 %v2439
  %2745 = vmatprep.subr.mxu0 %v2448
  %2746 = vmatpush1.msra.mxu0 %v2447
  %2747 = vmatprep.subr.mxu0 %v2456
  %2748 = vmatpush1.msra.mxu0 %v2455
  %2749 = vmatprep.subr.mxu0 %v2464
  %2750 = vmatpush1.msra.mxu0 %v2463
  %2751 = vmatprep.subr.mxu0 0.0
  %2752 = vmatpush1.msra.mxu0 0.0
  %2753 = vmatprep.subr.mxu0 0.0
  %2754 = vmatpush1.msra.mxu0 0.0
  %2755 = vmatprep.subr.mxu0 0.0
  %2756 = vmatpush1.msra.mxu0 0.0
  %2757 = vmatprep.subr.mxu0 0.0
  %2758 = vmatpush1.msra.mxu0 0.0
  %2759 = vmatprep.subr.mxu0 0.0
  %2760 = vmatpush1.msra.mxu0 0.0
  %2761 = vmatprep.subr.mxu0 0.0
  %2762 = vmatpush1.msra.mxu0 0.0
  %2763 = vmatprep.subr.mxu0 0.0
  %2764 = vmatpush1.msra.mxu0 0.0
  %2765 = vmatprep.subr.mxu0 0.0
  %2766 = vmatpush1.msra.mxu0 0.0
  %2767 = vmatprep.subr.mxu0 0.0
  %2768 = vmatpush1.msra.mxu0 0.0
  %2769 = vmatprep.subr.mxu0 0.0
  %2770 = vmatpush1.msra.mxu0 0.0
  %2771 = vmatprep.subr.mxu0 0.0
  %2772 = vmatpush1.msra.mxu0 0.0
  %2773 = vmatprep.subr.mxu0 0.0
  %2774 = vmatpush1.msra.mxu0 0.0
  %2775 = vmatprep.subr.mxu0 0.0
  %2776 = vmatpush1.msra.mxu0 0.0
  %2777 = vmatprep.subr.mxu0 0.0
  %2778 = vmatpush1.msra.mxu0 0.0
  %2779 = vmatprep.mubr.f32.mxu0 %v2479
  %2780 = vmatmul.mubr.f32.gmra.mrb[0].mxu0 %v2317
  %v2781 = vpop.f32.mrb[0].mxu0
  %v2782 = vadd.f32 %v2470, %v2781
  %v2783 = vpop.f32.mrb[0].mxu0
  %v2784 = vadd.f32 %v2470, %v2783
  %2785 = vmatprep.mubr.f32.mxu0 %v2482
  %2786 = vmatmul.mubr.f32.gmra.mrb[0].mxu0 %v2319
  %v2787 = vpop.f32.mrb[0].mxu0
  %v2788 = vadd.f32 %v2475, %v2787
  %v2789 = vpop.f32.mrb[0].mxu0
  %v2790 = vadd.f32 %v2475, %v2789
  %2791 = vdwg.mxu0
  %v2792 = vmul.f32 %v2551, 0.5
  %v2793 = vmul.f32 %v2553, 0.5
  %v2794 = vmul.f32 %v2628, 0.5
  %v2795 = vmul.f32 %v2630, 0.5
  %v2796 = vmul.f32 %v2705, 0.5
  %v2797 = vmul.f32 %v2707, 0.5
  %v2798 = vmul.f32 %v2782, 0.5
  %v2799 = vmul.f32 %v2784, 0.5
  %v2800 = vmul.f32 %v2557, 0.5
  %v2801 = vmul.f32 %v2559, 0.5
  %v2802 = vmul.f32 %v2634, 0.5
  %v2803 = vmul.f32 %v2636, 0.5
  %v2804 = vmul.f32 %v2711, 0.5
  %v2805 = vmul.f32 %v2713, 0.5
  %v2806 = vmul.f32 %v2788, 0.5
  %v2807 = vmul.f32 %v2790, 0.5
  %v2808 = vmul.f32 %v2551, 0.044715
  %v2809 = vmul.f32 %v2553, 0.044715
  %v2810 = vmul.f32 %v2628, 0.044715
  %v2811 = vmul.f32 %v2630, 0.044715
  %v2812 = vmul.f32 %v2705, 0.044715
  %v2813 = vmul.f32 %v2707, 0.044715
  %v2814 = vmul.f32 %v2782, 0.044715
  %v2815 = vmul.f32 %v2784, 0.044715
  %v2816 = vmul.f32 %v2557, 0.044715
  %v2817 = vmul.f32 %v2559, 0.044715
  %v2818 = vmul.f32 %v2634, 0.044715
  %v2819 = vmul.f32 %v2636, 0.044715
  %v2820 = vmul.f32 %v2711, 0.044715
  %v2821 = vmul.f32 %v2713, 0.044715
  %v2822 = vmul.f32 %v2788, 0.044715
  %v2823 = vmul.f32 %v2790, 0.044715
  %v2824 = vmul.f32 %v2808, %v2551
  %v2825 = vmul.f32 %v2809, %v2553
  %v2826 = vmul.f32 %v2810, %v2628
  %v2827 = vmul.f32 %v2811, %v2630
  %v2828 = vmul.f32 %v2812, %v2705
  %v2829 = vmul.f32 %v2813, %v2707
  %v2830 = vmul.f32 %v2814, %v2782
  %v2831 = vmul.f32 %v2815, %v2784
  %v2832 = vmul.f32 %v2816, %v2557
  %v2833 = vmul.f32 %v2817, %v2559
  %v2834 = vmul.f32 %v2818, %v2634
  %v2835 = vmul.f32 %v2819, %v2636
  %v2836 = vmul.f32 %v2820, %v2711
  %v2837 = vmul.f32 %v2821, %v2713
  %v2838 = vmul.f32 %v2822, %v2788
  %v2839 = vmul.f32 %v2823, %v2790
  %v2840 = vmul.f32 %v2824, %v2551
  %v2841 = vmul.f32 %v2825, %v2553
  %v2842 = vmul.f32 %v2826, %v2628
  %v2843 = vmul.f32 %v2827, %v2630
  %v2844 = vmul.f32 %v2828, %v2705
  %v2845 = vmul.f32 %v2829, %v2707
  %v2846 = vmul.f32 %v2830, %v2782
  %v2847 = vmul.f32 %v2831, %v2784
  %v2848 = vmul.f32 %v2832, %v2557
  %v2849 = vmul.f32 %v2833, %v2559
  %v2850 = vmul.f32 %v2834, %v2634
  %v2851 = vmul.f32 %v2835, %v2636
  %v2852 = vmul.f32 %v2836, %v2711
  %v2853 = vmul.f32 %v2837, %v2713
  %v2854 = vmul.f32 %v2838, %v2788
  %v2855 = vmul.f32 %v2839, %v2790
  %v2856 = vadd.f32 %v2551, %v2840
  %v2857 = vadd.f32 %v2553, %v2841
  %v2858 = vadd.f32 %v2628, %v2842
  %v2859 = vadd.f32 %v2630, %v2843
  %v2860 = vadd.f32 %v2705, %v2844
  %v2861 = vadd.f32 %v2707, %v2845
  %v2862 = vadd.f32 %v2782, %v2846
  %v2863 = vadd.f32 %v2784, %v2847
  %v2864 = vadd.f32 %v2557, %v2848
  %v2865 = vadd.f32 %v2559, %v2849
  %v2866 = vadd.f32 %v2634, %v2850
  %v2867 = vadd.f32 %v2636, %v2851
  %v2868 = vadd.f32 %v2711, %v2852
  %v2869 = vadd.f32 %v2713, %v2853
  %v2870 = vadd.f32 %v2788, %v2854
  %v2871 = vadd.f32 %v2790, %v2855
  %v2872 = vmul.f32 %v2856, 0.7978846
  %v2873 = vmul.f32 %v2857, 0.7978846
  %v2874 = vmul.f32 %v2858, 0.7978846
  %v2875 = vmul.f32 %v2859, 0.7978846
  %v2876 = vmul.f32 %v2860, 0.7978846
  %v2877 = vmul.f32 %v2861, 0.7978846
  %v2878 = vmul.f32 %v2862, 0.7978846
  %v2879 = vmul.f32 %v2863, 0.7978846
  %v2880 = vmul.f32 %v2864, 0.7978846
  %v2881 = vmul.f32 %v2865, 0.7978846
  %v2882 = vmul.f32 %v2866, 0.7978846
  %v2883 = vmul.f32 %v2867, 0.7978846
  %v2884 = vmul.f32 %v2868, 0.7978846
  %v2885 = vmul.f32 %v2869, 0.7978846
  %v2886 = vmul.f32 %v2870, 0.7978846
  %v2887 = vmul.f32 %v2871, 0.7978846
  %v2888 = vtanh.pop %v2872
  %v2889 = vtanh.pop %v2873
  %v2890 = vtanh.pop %v2874
  %v2891 = vtanh.pop %v2875
  %v2892 = vtanh.pop %v2876
  %v2893 = vtanh.pop %v2877
  %v2894 = vtanh.pop %v2878
  %v2895 = vtanh.pop %v2879
  %v2896 = vtanh.pop %v2880
  %v2897 = vtanh.pop %v2881
  %v2898 = vtanh.pop %v2882
  %v2899 = vtanh.pop %v2883
  %v2900 = vtanh.pop %v2884
  %v2901 = vtanh.pop %v2885
  %v2902 = vtanh.pop %v2886
  %v2903 = vtanh.pop %v2887
  %v2904 = vadd.f32 %v2888, 1.0
  %v2905 = vadd.f32 %v2889, 1.0
  %v2906 = vadd.f32 %v2890, 1.0
  %v2907 = vadd.f32 %v2891, 1.0
  %v2908 = vadd.f32 %v2892, 1.0
  %v2909 = vadd.f32 %v2893, 1.0
  %v2910 = vadd.f32 %v2894, 1.0
  %v2911 = vadd.f32 %v2895, 1.0
  %v2912 = vadd.f32 %v2896, 1.0
  %v2913 = vadd.f32 %v2897, 1.0
  %v2914 = vadd.f32 %v2898, 1.0
  %v2915 = vadd.f32 %v2899, 1.0
  %v2916 = vadd.f32 %v2900, 1.0
  %v2917 = vadd.f32 %v2901, 1.0
  %v2918 = vadd.f32 %v2902, 1.0
  %v2919 = vadd.f32 %v2903, 1.0
  %v2920 = vmul.f32 %v2792, %v2904
  %v2921 = vmul.f32 %v2793, %v2905
  %v2922 = vmul.f32 %v2794, %v2906
  %v2923 = vmul.f32 %v2795, %v2907
  %v2924 = vmul.f32 %v2796, %v2908
  %v2925 = vmul.f32 %v2797, %v2909
  %v2926 = vmul.f32 %v2798, %v2910
  %v2927 = vmul.f32 %v2799, %v2911
  %v2928 = vmul.f32 %v2800, %v2912
  %v2929 = vmul.f32 %v2801, %v2913
  %v2930 = vmul.f32 %v2802, %v2914
  %v2931 = vmul.f32 %v2803, %v2915
  %v2932 = vmul.f32 %v2804, %v2916
  %v2933 = vmul.f32 %v2805, %v2917
  %v2934 = vmul.f32 %v2806, %v2918
  %v2935 = vmul.f32 %v2807, %v2919
  %v2936 = vld [vmem:[%s9] sm:$0xff]
  %v2937 = vld [vmem:[%s9 + $0x8] sm:$0xff]
  %v2938 = vld [vmem:[%s9 + $0x10] sm:$0xff]
  %v2939 = vld [vmem:[%s9 + $0x18] sm:$0xff]
  %v2940 = vld [vmem:[%s10] sm:$0xff]
  %v2941 = vld [vmem:[%s10 + $0x8] sm:$0xff]
  %v2942 = vld [vmem:[%s10 + $0x10] sm:$0xff]
  %v2943 = vld [vmem:[%s10 + $0x18] sm:$0xff]
  %2945 = vset.pattern.permute.xlu0 0
  %2946 = vperm.xlu0 %2945, %v2940
  %v2947 = vpop.permute.xlu0 %2946
  %2950 = vset.pattern.permute.xlu0 0
  %2951 = vperm.xlu0 %2950, %v2941
  %v2952 = vpop.permute.xlu0 %2951
  %2955 = vset.pattern.permute.xlu0 0
  %2956 = vperm.xlu0 %2955, %v2942
  %v2957 = vpop.permute.xlu0 %2956
  %2960 = vset.pattern.permute.xlu0 0
  %2961 = vperm.xlu0 %2960, %v2943
  %v2962 = vpop.permute.xlu0 %2961
  %v2965 = vsel %vm2477, %v2936, 0
  %v2968 = vsel %vm2477, %v2937, 0
  %v2971 = vsel %vm2477, %v2938, 0
  %v2974 = vsel %vm2477, %v2939, 0
  %2976 = vmatprep.subr.mxu0 %v2921
  %2977 = vmatpush1.msra.mxu0 %v2920
  %2978 = vmatprep.subr.mxu0 %v2929
  %2979 = vmatpush1.msra.mxu0 %v2928
  %2980 = vmatprep.subr.mxu0 0.0
  %2981 = vmatpush1.msra.mxu0 0.0
  %2982 = vmatprep.subr.mxu0 0.0
  %2983 = vmatpush1.msra.mxu0 0.0
  %2984 = vmatprep.subr.mxu0 0.0
  %2985 = vmatpush1.msra.mxu0 0.0
  %2986 = vmatprep.subr.mxu0 0.0
  %2987 = vmatpush1.msra.mxu0 0.0
  %2988 = vmatprep.subr.mxu0 0.0
  %2989 = vmatpush1.msra.mxu0 0.0
  %2990 = vmatprep.subr.mxu0 0.0
  %2991 = vmatpush1.msra.mxu0 0.0
  %2992 = vmatprep.subr.mxu0 0.0
  %2993 = vmatpush1.msra.mxu0 0.0
  %2994 = vmatprep.subr.mxu0 0.0
  %2995 = vmatpush1.msra.mxu0 0.0
  %2996 = vmatprep.subr.mxu0 0.0
  %2997 = vmatpush1.msra.mxu0 0.0
  %2998 = vmatprep.subr.mxu0 0.0
  %2999 = vmatpush1.msra.mxu0 0.0
  %3000 = vmatprep.subr.mxu0 0.0
  %3001 = vmatpush1.msra.mxu0 0.0
  %3002 = vmatprep.subr.mxu0 0.0
  %3003 = vmatpush1.msra.mxu0 0.0
  %3004 = vmatprep.subr.mxu0 0.0
  %3005 = vmatpush1.msra.mxu0 0.0
  %3006 = vmatprep.subr.mxu0 0.0
  %3007 = vmatpush1.msra.mxu0 0.0
  %3008 = vmatprep.subr.mxu0 0.0
  %3009 = vmatpush1.msra.mxu0 0.0
  %3010 = vmatprep.subr.mxu0 0.0
  %3011 = vmatpush1.msra.mxu0 0.0
  %3012 = vmatprep.subr.mxu0 0.0
  %3013 = vmatpush1.msra.mxu0 0.0
  %3014 = vmatprep.subr.mxu0 0.0
  %3015 = vmatpush1.msra.mxu0 0.0
  %3016 = vmatprep.subr.mxu0 0.0
  %3017 = vmatpush1.msra.mxu0 0.0
  %3018 = vmatprep.subr.mxu0 0.0
  %3019 = vmatpush1.msra.mxu0 0.0
  %3020 = vmatprep.subr.mxu0 0.0
  %3021 = vmatpush1.msra.mxu0 0.0
  %3022 = vmatprep.subr.mxu0 0.0
  %3023 = vmatpush1.msra.mxu0 0.0
  %3024 = vmatprep.subr.mxu0 0.0
  %3025 = vmatpush1.msra.mxu0 0.0
  %3026 = vmatprep.subr.mxu0 0.0
  %3027 = vmatpush1.msra.mxu0 0.0
  %3028 = vmatprep.subr.mxu0 0.0
  %3029 = vmatpush1.msra.mxu0 0.0
  %3030 = vmatprep.subr.mxu0 0.0
  %3031 = vmatpush1.msra.mxu0 0.0
  %3032 = vmatprep.subr.mxu0 0.0
  %3033 = vmatpush1.msra.mxu0 0.0
  %3034 = vmatprep.subr.mxu0 0.0
  %3035 = vmatpush1.msra.mxu0 0.0
  %3036 = vmatprep.subr.mxu0 0.0
  %3037 = vmatpush1.msra.mxu0 0.0
  %3038 = vmatprep.subr.mxu0 0.0
  %3039 = vmatpush1.msra.mxu0 0.0
  %3040 = vmatprep.mubr.f32.mxu0 0.0
  %3041 = vmatmul.mubr.f32.gmra.mrb[0].mxu0 %v2965
  %v3042 = vpop.f32.mrb[0].mxu0
  %v3043 = vadd.f32 %v2947, %v3042
  %v3044 = vpop.f32.mrb[0].mxu0
  %v3045 = vadd.f32 %v2947, %v3044
  %3046 = vmatprep.mubr.f32.mxu0 0.0
  %3047 = vmatmul.mubr.f32.gmra.mrb[0].mxu0 %v2968
  %v3048 = vpop.f32.mrb[0].mxu0
  %v3049 = vadd.f32 %v2952, %v3048
  %v3050 = vpop.f32.mrb[0].mxu0
  %v3051 = vadd.f32 %v2952, %v3050
  %3052 = vmatprep.mubr.f32.mxu0 0.0
  %3053 = vmatmul.mubr.f32.gmra.mrb[0].mxu0 %v2971
  %v3054 = vpop.f32.mrb[0].mxu0
  %v3055 = vadd.f32 %v2957, %v3054
  %v3056 = vpop.f32.mrb[0].mxu0
  %v3057 = vadd.f32 %v2957, %v3056
  %3058 = vmatprep.mubr.f32.mxu0 0.0
  %3059 = vmatmul.mubr.f32.gmra.mrb[0].mxu0 %v2974
  %v3060 = vpop.f32.mrb[0].mxu0
  %v3061 = vadd.f32 %v2962, %v3060
  %v3062 = vpop.f32.mrb[0].mxu0
  %v3063 = vadd.f32 %v2962, %v3062
  %3064 = vdwg.mxu0
  %3065 = vmatprep.subr.mxu0 %v2923
  %3066 = vmatpush1.msra.mxu0 %v2922
  %3067 = vmatprep.subr.mxu0 %v2931
  %3068 = vmatpush1.msra.mxu0 %v2930
  %3069 = vmatprep.subr.mxu0 0.0
  %3070 = vmatpush1.msra.mxu0 0.0
  %3071 = vmatprep.subr.mxu0 0.0
  %3072 = vmatpush1.msra.mxu0 0.0
  %3073 = vmatprep.subr.mxu0 0.0
  %3074 = vmatpush1.msra.mxu0 0.0
  %3075 = vmatprep.subr.mxu0 0.0
  %3076 = vmatpush1.msra.mxu0 0.0
  %3077 = vmatprep.subr.mxu0 0.0
  %3078 = vmatpush1.msra.mxu0 0.0
  %3079 = vmatprep.subr.mxu0 0.0
  %3080 = vmatpush1.msra.mxu0 0.0
  %3081 = vmatprep.subr.mxu0 0.0
  %3082 = vmatpush1.msra.mxu0 0.0
  %3083 = vmatprep.subr.mxu0 0.0
  %3084 = vmatpush1.msra.mxu0 0.0
  %3085 = vmatprep.subr.mxu0 0.0
  %3086 = vmatpush1.msra.mxu0 0.0
  %3087 = vmatprep.subr.mxu0 0.0
  %3088 = vmatpush1.msra.mxu0 0.0
  %3089 = vmatprep.subr.mxu0 0.0
  %3090 = vmatpush1.msra.mxu0 0.0
  %3091 = vmatprep.subr.mxu0 0.0
  %3092 = vmatpush1.msra.mxu0 0.0
  %3093 = vmatprep.subr.mxu0 0.0
  %3094 = vmatpush1.msra.mxu0 0.0
  %3095 = vmatprep.subr.mxu0 0.0
  %3096 = vmatpush1.msra.mxu0 0.0
  %3097 = vmatprep.subr.mxu0 0.0
  %3098 = vmatpush1.msra.mxu0 0.0
  %3099 = vmatprep.subr.mxu0 0.0
  %3100 = vmatpush1.msra.mxu0 0.0
  %3101 = vmatprep.subr.mxu0 0.0
  %3102 = vmatpush1.msra.mxu0 0.0
  %3103 = vmatprep.subr.mxu0 0.0
  %3104 = vmatpush1.msra.mxu0 0.0
  %3105 = vmatprep.subr.mxu0 0.0
  %3106 = vmatpush1.msra.mxu0 0.0
  %3107 = vmatprep.subr.mxu0 0.0
  %3108 = vmatpush1.msra.mxu0 0.0
  %3109 = vmatprep.subr.mxu0 0.0
  %3110 = vmatpush1.msra.mxu0 0.0
  %3111 = vmatprep.subr.mxu0 0.0
  %3112 = vmatpush1.msra.mxu0 0.0
  %3113 = vmatprep.subr.mxu0 0.0
  %3114 = vmatpush1.msra.mxu0 0.0
  %3115 = vmatprep.subr.mxu0 0.0
  %3116 = vmatpush1.msra.mxu0 0.0
  %3117 = vmatprep.subr.mxu0 0.0
  %3118 = vmatpush1.msra.mxu0 0.0
  %3119 = vmatprep.subr.mxu0 0.0
  %3120 = vmatpush1.msra.mxu0 0.0
  %3121 = vmatprep.subr.mxu0 0.0
  %3122 = vmatpush1.msra.mxu0 0.0
  %3123 = vmatprep.subr.mxu0 0.0
  %3124 = vmatpush1.msra.mxu0 0.0
  %3125 = vmatprep.subr.mxu0 0.0
  %3126 = vmatpush1.msra.mxu0 0.0
  %3127 = vmatprep.subr.mxu0 0.0
  %3128 = vmatpush1.msra.mxu0 0.0
  %3129 = vmatprep.mubr.f32.mxu0 0.0
  %3130 = vmatmul.mubr.f32.gmra.mrb[0].mxu0 %v2965
  %v3131 = vpop.f32.mrb[0].mxu0
  %v3132 = vadd.f32 %v2947, %v3131
  %v3133 = vpop.f32.mrb[0].mxu0
  %v3134 = vadd.f32 %v2947, %v3133
  %3135 = vmatprep.mubr.f32.mxu0 0.0
  %3136 = vmatmul.mubr.f32.gmra.mrb[0].mxu0 %v2968
  %v3137 = vpop.f32.mrb[0].mxu0
  %v3138 = vadd.f32 %v2952, %v3137
  %v3139 = vpop.f32.mrb[0].mxu0
  %v3140 = vadd.f32 %v2952, %v3139
  %3141 = vmatprep.mubr.f32.mxu0 0.0
  %3142 = vmatmul.mubr.f32.gmra.mrb[0].mxu0 %v2971
  %v3143 = vpop.f32.mrb[0].mxu0
  %v3144 = vadd.f32 %v2957, %v3143
  %v3145 = vpop.f32.mrb[0].mxu0
  %v3146 = vadd.f32 %v2957, %v3145
  %3147 = vmatprep.mubr.f32.mxu0 0.0
  %3148 = vmatmul.mubr.f32.gmra.mrb[0].mxu0 %v2974
  %v3149 = vpop.f32.mrb[0].mxu0
  %v3150 = vadd.f32 %v2962, %v3149
  %v3151 = vpop.f32.mrb[0].mxu0
  %v3152 = vadd.f32 %v2962, %v3151
  %3153 = vdwg.mxu0
  %3154 = vmatprep.subr.mxu0 %v2925
  %3155 = vmatpush1.msra.mxu0 %v2924
  %3156 = vmatprep.subr.mxu0 %v2933
  %3157 = vmatpush1.msra.mxu0 %v2932
  %3158 = vmatprep.subr.mxu0 0.0
  %3159 = vmatpush1.msra.mxu0 0.0
  %3160 = vmatprep.subr.mxu0 0.0
  %3161 = vmatpush1.msra.mxu0 0.0
  %3162 = vmatprep.subr.mxu0 0.0
  %3163 = vmatpush1.msra.mxu0 0.0
  %3164 = vmatprep.subr.mxu0 0.0
  %3165 = vmatpush1.msra.mxu0 0.0
  %3166 = vmatprep.subr.mxu0 0.0
  %3167 = vmatpush1.msra.mxu0 0.0
  %3168 = vmatprep.subr.mxu0 0.0
  %3169 = vmatpush1.msra.mxu0 0.0
  %3170 = vmatprep.subr.mxu0 0.0
  %3171 = vmatpush1.msra.mxu0 0.0
  %3172 = vmatprep.subr.mxu0 0.0
  %3173 = vmatpush1.msra.mxu0 0.0
  %3174 = vmatprep.subr.mxu0 0.0
  %3175 = vmatpush1.msra.mxu0 0.0
  %3176 = vmatprep.subr.mxu0 0.0
  %3177 = vmatpush1.msra.mxu0 0.0
  %3178 = vmatprep.subr.mxu0 0.0
  %3179 = vmatpush1.msra.mxu0 0.0
  %3180 = vmatprep.subr.mxu0 0.0
  %3181 = vmatpush1.msra.mxu0 0.0
  %3182 = vmatprep.subr.mxu0 0.0
  %3183 = vmatpush1.msra.mxu0 0.0
  %3184 = vmatprep.subr.mxu0 0.0
  %3185 = vmatpush1.msra.mxu0 0.0
  %3186 = vmatprep.subr.mxu0 0.0
  %3187 = vmatpush1.msra.mxu0 0.0
  %3188 = vmatprep.subr.mxu0 0.0
  %3189 = vmatpush1.msra.mxu0 0.0
  %3190 = vmatprep.subr.mxu0 0.0
  %3191 = vmatpush1.msra.mxu0 0.0
  %3192 = vmatprep.subr.mxu0 0.0
  %3193 = vmatpush1.msra.mxu0 0.0
  %3194 = vmatprep.subr.mxu0 0.0
  %3195 = vmatpush1.msra.mxu0 0.0
  %3196 = vmatprep.subr.mxu0 0.0
  %3197 = vmatpush1.msra.mxu0 0.0
  %3198 = vmatprep.subr.mxu0 0.0
  %3199 = vmatpush1.msra.mxu0 0.0
  %3200 = vmatprep.subr.mxu0 0.0
  %3201 = vmatpush1.msra.mxu0 0.0
  %3202 = vmatprep.subr.mxu0 0.0
  %3203 = vmatpush1.msra.mxu0 0.0
  %3204 = vmatprep.subr.mxu0 0.0
  %3205 = vmatpush1.msra.mxu0 0.0
  %3206 = vmatprep.subr.mxu0 0.0
  %3207 = vmatpush1.msra.mxu0 0.0
  %3208 = vmatprep.subr.mxu0 0.0
  %3209 = vmatpush1.msra.mxu0 0.0
  %3210 = vmatprep.subr.mxu0 0.0
  %3211 = vmatpush1.msra.mxu0 0.0
  %3212 = vmatprep.subr.mxu0 0.0
  %3213 = vmatpush1.msra.mxu0 0.0
  %3214 = vmatprep.subr.mxu0 0.0
  %3215 = vmatpush1.msra.mxu0 0.0
  %3216 = vmatprep.subr.mxu0 0.0
  %3217 = vmatpush1.msra.mxu0 0.0
  %3218 = vmatprep.mubr.f32.mxu0 0.0
  %3219 = vmatmul.mubr.f32.gmra.mrb[0].mxu0 %v2965
  %v3220 = vpop.f32.mrb[0].mxu0
  %v3221 = vadd.f32 %v2947, %v3220
  %v3222 = vpop.f32.mrb[0].mxu0
  %v3223 = vadd.f32 %v2947, %v3222
  %3224 = vmatprep.mubr.f32.mxu0 0.0
  %3225 = vmatmul.mubr.f32.gmra.mrb[0].mxu0 %v2968
  %v3226 = vpop.f32.mrb[0].mxu0
  %v3227 = vadd.f32 %v2952, %v3226
  %v3228 = vpop.f32.mrb[0].mxu0
  %v3229 = vadd.f32 %v2952, %v3228
  %3230 = vmatprep.mubr.f32.mxu0 0.0
  %3231 = vmatmul.mubr.f32.gmra.mrb[0].mxu0 %v2971
  %v3232 = vpop.f32.mrb[0].mxu0
  %v3233 = vadd.f32 %v2957, %v3232
  %v3234 = vpop.f32.mrb[0].mxu0
  %v3235 = vadd.f32 %v2957, %v3234
  %3236 = vmatprep.mubr.f32.mxu0 0.0
  %3237 = vmatmul.mubr.f32.gmra.mrb[0].mxu0 %v2974
  %v3238 = vpop.f32.mrb[0].mxu0
  %v3239 = vadd.f32 %v2962, %v3238
  %v3240 = vpop.f32.mrb[0].mxu0
  %v3241 = vadd.f32 %v2962, %v3240
  %3242 = vdwg.mxu0
  %3243 = vmatprep.subr.mxu0 %v2927
  %3244 = vmatpush1.msra.mxu0 %v2926
  %3245 = vmatprep.subr.mxu0 %v2935
  %3246 = vmatpush1.msra.mxu0 %v2934
  %3247 = vmatprep.subr.mxu0 0.0
  %3248 = vmatpush1.msra.mxu0 0.0
  %3249 = vmatprep.subr.mxu0 0.0
  %3250 = vmatpush1.msra.mxu0 0.0
  %3251 = vmatprep.subr.mxu0 0.0
  %3252 = vmatpush1.msra.mxu0 0.0
  %3253 = vmatprep.subr.mxu0 0.0
  %3254 = vmatpush1.msra.mxu0 0.0
  %3255 = vmatprep.subr.mxu0 0.0
  %3256 = vmatpush1.msra.mxu0 0.0
  %3257 = vmatprep.subr.mxu0 0.0
  %3258 = vmatpush1.msra.mxu0 0.0
  %3259 = vmatprep.subr.mxu0 0.0
  %3260 = vmatpush1.msra.mxu0 0.0
  %3261 = vmatprep.subr.mxu0 0.0
  %3262 = vmatpush1.msra.mxu0 0.0
  %3263 = vmatprep.subr.mxu0 0.0
  %3264 = vmatpush1.msra.mxu0 0.0
  %3265 = vmatprep.subr.mxu0 0.0
  %3266 = vmatpush1.msra.mxu0 0.0
  %3267 = vmatprep.subr.mxu0 0.0
  %3268 = vmatpush1.msra.mxu0 0.0
  %3269 = vmatprep.subr.mxu0 0.0
  %3270 = vmatpush1.msra.mxu0 0.0
  %3271 = vmatprep.subr.mxu0 0.0
  %3272 = vmatpush1.msra.mxu0 0.0
  %3273 = vmatprep.subr.mxu0 0.0
  %3274 = vmatpush1.msra.mxu0 0.0
  %3275 = vmatprep.subr.mxu0 0.0
  %3276 = vmatpush1.msra.mxu0 0.0
  %3277 = vmatprep.subr.mxu0 0.0
  %3278 = vmatpush1.msra.mxu0 0.0
  %3279 = vmatprep.subr.mxu0 0.0
  %3280 = vmatpush1.msra.mxu0 0.0
  %3281 = vmatprep.subr.mxu0 0.0
  %3282 = vmatpush1.msra.mxu0 0.0
  %3283 = vmatprep.subr.mxu0 0.0
  %3284 = vmatpush1.msra.mxu0 0.0
  %3285 = vmatprep.subr.mxu0 0.0
  %3286 = vmatpush1.msra.mxu0 0.0
  %3287 = vmatprep.subr.mxu0 0.0
  %3288 = vmatpush1.msra.mxu0 0.0
  %3289 = vmatprep.subr.mxu0 0.0
  %3290 = vmatpush1.msra.mxu0 0.0
  %3291 = vmatprep.subr.mxu0 0.0
  %3292 = vmatpush1.msra.mxu0 0.0
  %3293 = vmatprep.subr.mxu0 0.0
  %3294 = vmatpush1.msra.mxu0 0.0
  %3295 = vmatprep.subr.mxu0 0.0
  %3296 = vmatpush1.msra.mxu0 0.0
  %3297 = vmatprep.subr.mxu0 0.0
  %3298 = vmatpush1.msra.mxu0 0.0
  %3299 = vmatprep.subr.mxu0 0.0
  %3300 = vmatpush1.msra.mxu0 0.0
  %3301 = vmatprep.subr.mxu0 0.0
  %3302 = vmatpush1.msra.mxu0 0.0
  %3303 = vmatprep.subr.mxu0 0.0
  %3304 = vmatpush1.msra.mxu0 0.0
  %3305 = vmatprep.subr.mxu0 0.0
  %3306 = vmatpush1.msra.mxu0 0.0
  %3307 = vmatprep.mubr.f32.mxu0 0.0
  %3308 = vmatmul.mubr.f32.gmra.mrb[0].mxu0 %v2965
  %v3309 = vpop.f32.mrb[0].mxu0
  %v3310 = vadd.f32 %v2947, %v3309
  %v3311 = vpop.f32.mrb[0].mxu0
  %v3312 = vadd.f32 %v2947, %v3311
  %3313 = vmatprep.mubr.f32.mxu0 0.0
  %3314 = vmatmul.mubr.f32.gmra.mrb[0].mxu0 %v2968
  %v3315 = vpop.f32.mrb[0].mxu0
  %v3316 = vadd.f32 %v2952, %v3315
  %v3317 = vpop.f32.mrb[0].mxu0
  %v3318 = vadd.f32 %v2952, %v3317
  %3319 = vmatprep.mubr.f32.mxu0 0.0
  %3320 = vmatmul.mubr.f32.gmra.mrb[0].mxu0 %v2971
  %v3321 = vpop.f32.mrb[0].mxu0
  %v3322 = vadd.f32 %v2957, %v3321
  %v3323 = vpop.f32.mrb[0].mxu0
  %v3324 = vadd.f32 %v2957, %v3323
  %3325 = vmatprep.mubr.f32.mxu0 0.0
  %3326 = vmatmul.mubr.f32.gmra.mrb[0].mxu0 %v2974
  %v3327 = vpop.f32.mrb[0].mxu0
  %v3328 = vadd.f32 %v2962, %v3327
  %v3329 = vpop.f32.mrb[0].mxu0
  %v3330 = vadd.f32 %v2962, %v3329
  %3331 = vdwg.mxu0
  %v3332 = vld [vmem:[%s2] sm:$0xff]
  %v3333 = vld [vmem:[%s2 + $0x8] sm:$0xff]
  %v3334 = vld [vmem:[%s2 + $0x10] sm:$0xff]
  %v3335 = vld [vmem:[%s2 + $0x18] sm:$0xff]
  %v3336 = vld [vmem:[%s2 + $0x20] sm:$0xff]
  %v3337 = vld [vmem:[%s2 + $0x28] sm:$0xff]
  %v3338 = vld [vmem:[%s2 + $0x30] sm:$0xff]
  %v3339 = vld [vmem:[%s2 + $0x38] sm:$0xff]
  %v3340 = vld [vmem:[%s2 + $0x40] sm:$0xff]
  %v3341 = vld [vmem:[%s2 + $0x48] sm:$0xff]
  %v3342 = vld [vmem:[%s2 + $0x50] sm:$0xff]
  %v3343 = vld [vmem:[%s2 + $0x58] sm:$0xff]
  %v3344 = vld [vmem:[%s2 + $0x60] sm:$0xff]
  %v3345 = vld [vmem:[%s2 + $0x68] sm:$0xff]
  %v3346 = vld [vmem:[%s2 + $0x70] sm:$0xff]
  %v3347 = vld [vmem:[%s2 + $0x78] sm:$0xff]
  %v3348 = vld [vmem:[%s2 + $0x80] sm:$0xff]
  %v3349 = vld [vmem:[%s2 + $0x88] sm:$0xff]
  %v3350 = vld [vmem:[%s2 + $0x90] sm:$0xff]
  %v3351 = vld [vmem:[%s2 + $0x98] sm:$0xff]
  %v3352 = vld [vmem:[%s2 + $0xa0] sm:$0xff]
  %v3353 = vld [vmem:[%s2 + $0xa8] sm:$0xff]
  %v3354 = vld [vmem:[%s2 + $0xb0] sm:$0xff]
  %v3355 = vld [vmem:[%s2 + $0xb8] sm:$0xff]
  %v3356 = vld [vmem:[%s2 + $0xc0] sm:$0xff]
  %v3357 = vld [vmem:[%s2 + $0xc8] sm:$0xff]
  %v3358 = vld [vmem:[%s2 + $0xd0] sm:$0xff]
  %v3359 = vld [vmem:[%s2 + $0xd8] sm:$0xff]
  %v3360 = vld [vmem:[%s2 + $0xe0] sm:$0xff]
  %v3361 = vld [vmem:[%s2 + $0xe8] sm:$0xff]
  %v3362 = vld [vmem:[%s2 + $0xf0] sm:$0xff]
  %v3363 = vld [vmem:[%s2 + $0xf8] sm:$0xff]
  %v3364 = vld [vmem:[%s2 + $0x100] sm:$0xff]
  %v3365 = vld [vmem:[%s2 + $0x108] sm:$0xff]
  %v3366 = vld [vmem:[%s2 + $0x110] sm:$0xff]
  %v3367 = vld [vmem:[%s2 + $0x118] sm:$0xff]
  %v3368 = vld [vmem:[%s2 + $0x120] sm:$0xff]
  %v3369 = vld [vmem:[%s2 + $0x128] sm:$0xff]
  %v3370 = vld [vmem:[%s2 + $0x130] sm:$0xff]
  %v3371 = vld [vmem:[%s2 + $0x138] sm:$0xff]
  %v3372 = vld [vmem:[%s2 + $0x140] sm:$0xff]
  %v3373 = vld [vmem:[%s2 + $0x148] sm:$0xff]
  %v3374 = vld [vmem:[%s2 + $0x150] sm:$0xff]
  %v3375 = vld [vmem:[%s2 + $0x158] sm:$0xff]
  %v3376 = vld [vmem:[%s2 + $0x160] sm:$0xff]
  %v3377 = vld [vmem:[%s2 + $0x168] sm:$0xff]
  %v3378 = vld [vmem:[%s2 + $0x170] sm:$0xff]
  %v3379 = vld [vmem:[%s2 + $0x178] sm:$0xff]
  %v3380 = vld [vmem:[%s2 + $0x180] sm:$0xff]
  %v3381 = vld [vmem:[%s2 + $0x188] sm:$0xff]
  %v3382 = vld [vmem:[%s2 + $0x190] sm:$0xff]
  %v3383 = vld [vmem:[%s2 + $0x198] sm:$0xff]
  %v3384 = vld [vmem:[%s2 + $0x1a0] sm:$0xff]
  %v3385 = vld [vmem:[%s2 + $0x1a8] sm:$0xff]
  %v3386 = vld [vmem:[%s2 + $0x1b0] sm:$0xff]
  %v3387 = vld [vmem:[%s2 + $0x1b8] sm:$0xff]
  %v3388 = vld [vmem:[%s2 + $0x1c0] sm:$0xff]
  %v3389 = vld [vmem:[%s2 + $0x1c8] sm:$0xff]
  %v3390 = vld [vmem:[%s2 + $0x1d0] sm:$0xff]
  %v3391 = vld [vmem:[%s2 + $0x1d8] sm:$0xff]
  %v3392 = vld [vmem:[%s2 + $0x1e0] sm:$0xff]
  %v3393 = vld [vmem:[%s2 + $0x1e8] sm:$0xff]
  %v3394 = vld [vmem:[%s2 + $0x1f0] sm:$0xff]
  %v3395 = vld [vmem:[%s2 + $0x1f8] sm:$0xff]
  %v3396 = vld [vmem:[%s2 + $0x200] sm:$0xff]
  %v3397 = vld [vmem:[%s2 + $0x208] sm:$0xff]
  %v3398 = vld [vmem:[%s2 + $0x210] sm:$0xff]
  %v3399 = vld [vmem:[%s2 + $0x218] sm:$0xff]
  %v3400 = vld [vmem:[%s2 + $0x220] sm:$0xff]
  %v3401 = vld [vmem:[%s2 + $0x228] sm:$0xff]
  %v3402 = vld [vmem:[%s2 + $0x230] sm:$0xff]
  %v3403 = vld [vmem:[%s2 + $0x238] sm:$0xff]
  %v3404 = vld [vmem:[%s2 + $0x240] sm:$0xff]
  %v3405 = vld [vmem:[%s2 + $0x248] sm:$0xff]
  %v3406 = vld [vmem:[%s2 + $0x250] sm:$0xff]
  %v3407 = vld [vmem:[%s2 + $0x258] sm:$0xff]
  %v3408 = vld [vmem:[%s2 + $0x260] sm:$0xff]
  %v3409 = vld [vmem:[%s2 + $0x268] sm:$0xff]
  %v3410 = vld [vmem:[%s2 + $0x270] sm:$0xff]
  %v3411 = vld [vmem:[%s2 + $0x278] sm:$0xff]
  %v3412 = vld [vmem:[%s2 + $0x280] sm:$0xff]
  %v3413 = vld [vmem:[%s2 + $0x288] sm:$0xff]
  %v3414 = vld [vmem:[%s2 + $0x290] sm:$0xff]
  %v3415 = vld [vmem:[%s2 + $0x298] sm:$0xff]
  %v3416 = vld [vmem:[%s2 + $0x2a0] sm:$0xff]
  %v3417 = vld [vmem:[%s2 + $0x2a8] sm:$0xff]
  %v3418 = vld [vmem:[%s2 + $0x2b0] sm:$0xff]
  %v3419 = vld [vmem:[%s2 + $0x2b8] sm:$0xff]
  %v3420 = vld [vmem:[%s2 + $0x2c0] sm:$0xff]
  %v3421 = vld [vmem:[%s2 + $0x2c8] sm:$0xff]
  %v3422 = vld [vmem:[%s2 + $0x2d0] sm:$0xff]
  %v3423 = vld [vmem:[%s2 + $0x2d8] sm:$0xff]
  %v3424 = vld [vmem:[%s2 + $0x2e0] sm:$0xff]
  %v3425 = vld [vmem:[%s2 + $0x2e8] sm:$0xff]
  %v3426 = vld [vmem:[%s2 + $0x2f0] sm:$0xff]
  %v3427 = vld [vmem:[%s2 + $0x2f8] sm:$0xff]
  %v3428 = vld [vmem:[%s2 + $0x300] sm:$0xff]
  %v3429 = vld [vmem:[%s2 + $0x308] sm:$0xff]
  %v3430 = vld [vmem:[%s2 + $0x310] sm:$0xff]
  %v3431 = vld [vmem:[%s2 + $0x318] sm:$0xff]
  %v3432 = vld [vmem:[%s2 + $0x320] sm:$0xff]
  %v3433 = vld [vmem:[%s2 + $0x328] sm:$0xff]
  %v3434 = vld [vmem:[%s2 + $0x330] sm:$0xff]
  %v3435 = vld [vmem:[%s2 + $0x338] sm:$0xff]
  %v3436 = vld [vmem:[%s2 + $0x340] sm:$0xff]
  %v3437 = vld [vmem:[%s2 + $0x348] sm:$0xff]
  %v3438 = vld [vmem:[%s2 + $0x350] sm:$0xff]
  %v3439 = vld [vmem:[%s2 + $0x358] sm:$0xff]
  %v3440 = vld [vmem:[%s2 + $0x360] sm:$0xff]
  %v3441 = vld [vmem:[%s2 + $0x368] sm:$0xff]
  %v3442 = vld [vmem:[%s2 + $0x370] sm:$0xff]
  %v3443 = vld [vmem:[%s2 + $0x378] sm:$0xff]
  %v3444 = vld [vmem:[%s2 + $0x380] sm:$0xff]
  %v3445 = vld [vmem:[%s2 + $0x388] sm:$0xff]
  %v3446 = vld [vmem:[%s2 + $0x390] sm:$0xff]
  %v3447 = vld [vmem:[%s2 + $0x398] sm:$0xff]
  %v3448 = vld [vmem:[%s2 + $0x3a0] sm:$0xff]
  %v3449 = vld [vmem:[%s2 + $0x3a8] sm:$0xff]
  %v3450 = vld [vmem:[%s2 + $0x3b0] sm:$0xff]
  %v3451 = vld [vmem:[%s2 + $0x3b8] sm:$0xff]
  %v3452 = vld [vmem:[%s2 + $0x3c0] sm:$0xff]
  %v3453 = vld [vmem:[%s2 + $0x3c8] sm:$0xff]
  %v3454 = vld [vmem:[%s2 + $0x3d0] sm:$0xff]
  %v3455 = vld [vmem:[%s2 + $0x3d8] sm:$0xff]
  %v3456 = vld [vmem:[%s2 + $0x3e0] sm:$0xff]
  %v3457 = vld [vmem:[%s2 + $0x3e8] sm:$0xff]
  %v3458 = vld [vmem:[%s2 + $0x3f0] sm:$0xff]
  %v3459 = vld [vmem:[%s2 + $0x3f8] sm:$0xff]
  %3460 = vmatprep.subr.mxu0 0.0
  %3461 = vmatpush1.msra.mxu0 %v3332
  %3462 = vmatprep.subr.mxu0 0.0
  %3463 = vmatpush1.msra.mxu0 %v3333
  %3464 = vmatprep.subr.mxu0 0.0
  %3465 = vmatpush1.msra.mxu0 %v3334
  %3466 = vmatprep.subr.mxu0 0.0
  %3467 = vmatpush1.msra.mxu0 %v3335
  %3468 = vmatprep.subr.mxu0 0.0
  %3469 = vmatpush1.msra.mxu0 %v3336
  %3470 = vmatprep.subr.mxu0 0.0
  %3471 = vmatpush1.msra.mxu0 %v3337
  %3472 = vmatprep.subr.mxu0 0.0
  %3473 = vmatpush1.msra.mxu0 %v3338
  %3474 = vmatprep.subr.mxu0 0.0
  %3475 = vmatpush1.msra.mxu0 %v3339
  %3476 = vmatprep.subr.mxu0 0.0
  %3477 = vmatpush1.msra.mxu0 %v3340
  %3478 = vmatprep.subr.mxu0 0.0
  %3479 = vmatpush1.msra.mxu0 %v3341
  %3480 = vmatprep.subr.mxu0 0.0
  %3481 = vmatpush1.msra.mxu0 %v3342
  %3482 = vmatprep.subr.mxu0 0.0
  %3483 = vmatpush1.msra.mxu0 %v3343
  %3484 = vmatprep.subr.mxu0 0.0
  %3485 = vmatpush1.msra.mxu0 %v3344
  %3486 = vmatprep.subr.mxu0 0.0
  %3487 = vmatpush1.msra.mxu0 %v3345
  %3488 = vmatprep.subr.mxu0 0.0
  %3489 = vmatpush1.msra.mxu0 %v3346
  %3490 = vmatprep.subr.mxu0 0.0
  %3491 = vmatpush1.msra.mxu0 %v3347
  %3492 = vmatprep.subr.mxu0 0.0
  %3493 = vmatpush1.msra.mxu0 %v3348
  %3494 = vmatprep.subr.mxu0 0.0
  %3495 = vmatpush1.msra.mxu0 %v3349
  %3496 = vmatprep.subr.mxu0 0.0
  %3497 = vmatpush1.msra.mxu0 %v3350
  %3498 = vmatprep.subr.mxu0 0.0
  %3499 = vmatpush1.msra.mxu0 %v3351
  %3500 = vmatprep.subr.mxu0 0.0
  %3501 = vmatpush1.msra.mxu0 %v3352
  %3502 = vmatprep.subr.mxu0 0.0
  %3503 = vmatpush1.msra.mxu0 %v3353
  %3504 = vmatprep.subr.mxu0 0.0
  %3505 = vmatpush1.msra.mxu0 %v3354
  %3506 = vmatprep.subr.mxu0 0.0
  %3507 = vmatpush1.msra.mxu0 %v3355
  %3508 = vmatprep.subr.mxu0 0.0
  %3509 = vmatpush1.msra.mxu0 %v3356
  %3510 = vmatprep.subr.mxu0 0.0
  %3511 = vmatpush1.msra.mxu0 %v3357
  %3512 = vmatprep.subr.mxu0 0.0
  %3513 = vmatpush1.msra.mxu0 %v3358
  %3514 = vmatprep.subr.mxu0 0.0
  %3515 = vmatpush1.msra.mxu0 %v3359
  %3516 = vmatprep.subr.mxu0 0.0
  %3517 = vmatpush1.msra.mxu0 %v3360
  %3518 = vmatprep.subr.mxu0 0.0
  %3519 = vmatpush1.msra.mxu0 %v3361
  %3520 = vmatprep.subr.mxu0 0.0
  %3521 = vmatpush1.msra.mxu0 %v3362
  %3522 = vmatprep.subr.mxu0 0.0
  %3523 = vmatpush1.msra.mxu0 %v3363
  %3524 = vmatprep.mubr.f32.mxu0 %v3045
  %3525 = vmatmul.mubr.f32.gmra.mrb[0].mxu0 %v3043
  %v3526 = vpop.f32.mrb[0].mxu0
  %v3527 = vadd.f32 0.0, %v3526
  %v3528 = vpop.f32.mrb[0].mxu0
  %3529 = vmatprep.mubr.f32.mxu0 %v3051
  %3530 = vmatmul.mubr.f32.gmra.mrb[0].mxu0 %v3049
  %v3531 = vpop.f32.mrb[0].mxu0
  %v3532 = vadd.f32 0.0, %v3531
  %v3533 = vpop.f32.mrb[0].mxu0
  %3534 = vmatprep.mubr.f32.mxu0 %v3057
  %3535 = vmatmul.mubr.f32.gmra.mrb[0].mxu0 %v3055
  %v3536 = vpop.f32.mrb[0].mxu0
  %v3537 = vadd.f32 0.0, %v3536
  %v3538 = vpop.f32.mrb[0].mxu0
  %3539 = vmatprep.mubr.f32.mxu0 %v3063
  %3540 = vmatmul.mubr.f32.gmra.mrb[0].mxu0 %v3061
  %v3541 = vpop.f32.mrb[0].mxu0
  %v3542 = vadd.f32 0.0, %v3541
  %v3543 = vpop.f32.mrb[0].mxu0
  %3544 = vdwg.mxu0
  %3545 = vmatprep.subr.mxu0 0.0
  %3546 = vmatpush1.msra.mxu0 %v3364
  %3547 = vmatprep.subr.mxu0 0.0
  %3548 = vmatpush1.msra.mxu0 %v3365
  %3549 = vmatprep.subr.mxu0 0.0
  %3550 = vmatpush1.msra.mxu0 %v3366
  %3551 = vmatprep.subr.mxu0 0.0
  %3552 = vmatpush1.msra.mxu0 %v3367
  %3553 = vmatprep.subr.mxu0 0.0
  %3554 = vmatpush1.msra.mxu0 %v3368
  %3555 = vmatprep.subr.mxu0 0.0
  %3556 = vmatpush1.msra.mxu0 %v3369
  %3557 = vmatprep.subr.mxu0 0.0
  %3558 = vmatpush1.msra.mxu0 %v3370
  %3559 = vmatprep.subr.mxu0 0.0
  %3560 = vmatpush1.msra.mxu0 %v3371
  %3561 = vmatprep.subr.mxu0 0.0
  %3562 = vmatpush1.msra.mxu0 %v3372
  %3563 = vmatprep.subr.mxu0 0.0
  %3564 = vmatpush1.msra.mxu0 %v3373
  %3565 = vmatprep.subr.mxu0 0.0
  %3566 = vmatpush1.msra.mxu0 %v3374
  %3567 = vmatprep.subr.mxu0 0.0
  %3568 = vmatpush1.msra.mxu0 %v3375
  %3569 = vmatprep.subr.mxu0 0.0
  %3570 = vmatpush1.msra.mxu0 %v3376
  %3571 = vmatprep.subr.mxu0 0.0
  %3572 = vmatpush1.msra.mxu0 %v3377
  %3573 = vmatprep.subr.mxu0 0.0
  %3574 = vmatpush1.msra.mxu0 %v3378
  %3575 = vmatprep.subr.mxu0 0.0
  %3576 = vmatpush1.msra.mxu0 %v3379
  %3577 = vmatprep.subr.mxu0 0.0
  %3578 = vmatpush1.msra.mxu0 %v3380
  %3579 = vmatprep.subr.mxu0 0.0
  %3580 = vmatpush1.msra.mxu0 %v3381
  %3581 = vmatprep.subr.mxu0 0.0
  %3582 = vmatpush1.msra.mxu0 %v3382
  %3583 = vmatprep.subr.mxu0 0.0
  %3584 = vmatpush1.msra.mxu0 %v3383
  %3585 = vmatprep.subr.mxu0 0.0
  %3586 = vmatpush1.msra.mxu0 %v3384
  %3587 = vmatprep.subr.mxu0 0.0
  %3588 = vmatpush1.msra.mxu0 %v3385
  %3589 = vmatprep.subr.mxu0 0.0
  %3590 = vmatpush1.msra.mxu0 %v3386
  %3591 = vmatprep.subr.mxu0 0.0
  %3592 = vmatpush1.msra.mxu0 %v3387
  %3593 = vmatprep.subr.mxu0 0.0
  %3594 = vmatpush1.msra.mxu0 %v3388
  %3595 = vmatprep.subr.mxu0 0.0
  %3596 = vmatpush1.msra.mxu0 %v3389
  %3597 = vmatprep.subr.mxu0 0.0
  %3598 = vmatpush1.msra.mxu0 %v3390
  %3599 = vmatprep.subr.mxu0 0.0
  %3600 = vmatpush1.msra.mxu0 %v3391
  %3601 = vmatprep.subr.mxu0 0.0
  %3602 = vmatpush1.msra.mxu0 %v3392
  %3603 = vmatprep.subr.mxu0 0.0
  %3604 = vmatpush1.msra.mxu0 %v3393
  %3605 = vmatprep.subr.mxu0 0.0
  %3606 = vmatpush1.msra.mxu0 %v3394
  %3607 = vmatprep.subr.mxu0 0.0
  %3608 = vmatpush1.msra.mxu0 %v3395
  %3609 = vmatprep.mubr.f32.mxu0 %v3134
  %3610 = vmatmul.mubr.f32.gmra.mrb[0].mxu0 %v3132
  %v3611 = vpop.f32.mrb[0].mxu0
  %v3612 = vadd.f32 %v3527, %v3611
  %v3613 = vpop.f32.mrb[0].mxu0
  %3614 = vmatprep.mubr.f32.mxu0 %v3140
  %3615 = vmatmul.mubr.f32.gmra.mrb[0].mxu0 %v3138
  %v3616 = vpop.f32.mrb[0].mxu0
  %v3617 = vadd.f32 %v3532, %v3616
  %v3618 = vpop.f32.mrb[0].mxu0
  %3619 = vmatprep.mubr.f32.mxu0 %v3146
  %3620 = vmatmul.mubr.f32.gmra.mrb[0].mxu0 %v3144
  %v3621 = vpop.f32.mrb[0].mxu0
  %v3622 = vadd.f32 %v3537, %v3621
  %v3623 = vpop.f32.mrb[0].mxu0
  %3624 = vmatprep.mubr.f32.mxu0 %v3152
  %3625 = vmatmul.mubr.f32.gmra.mrb[0].mxu0 %v3150
  %v3626 = vpop.f32.mrb[0].mxu0
  %v3627 = vadd.f32 %v3542, %v3626
  %v3628 = vpop.f32.mrb[0].mxu0
  %3629 = vdwg.mxu0
  %3630 = vmatprep.subr.mxu0 0.0
  %3631 = vmatpush1.msra.mxu0 %v3396
  %3632 = vmatprep.subr.mxu0 0.0
  %3633 = vmatpush1.msra.mxu0 %v3397
  %3634 = vmatprep.subr.mxu0 0.0
  %3635 = vmatpush1.msra.mxu0 %v3398
  %3636 = vmatprep.subr.mxu0 0.0
  %3637 = vmatpush1.msra.mxu0 %v3399
  %3638 = vmatprep.subr.mxu0 0.0
  %3639 = vmatpush1.msra.mxu0 %v3400
  %3640 = vmatprep.subr.mxu0 0.0
  %3641 = vmatpush1.msra.mxu0 %v3401
  %3642 = vmatprep.subr.mxu0 0.0
  %3643 = vmatpush1.msra.mxu0 %v3402
  %3644 = vmatprep.subr.mxu0 0.0
  %3645 = vmatpush1.msra.mxu0 %v3403
  %3646 = vmatprep.subr.mxu0 0.0
  %3647 = vmatpush1.msra.mxu0 %v3404
  %3648 = vmatprep.subr.mxu0 0.0
  %3649 = vmatpush1.msra.mxu0 %v3405
  %3650 = vmatprep.subr.mxu0 0.0
  %3651 = vmatpush1.msra.mxu0 %v3406
  %3652 = vmatprep.subr.mxu0 0.0
  %3653 = vmatpush1.msra.mxu0 %v3407
  %3654 = vmatprep.subr.mxu0 0.0
  %3655 = vmatpush1.msra.mxu0 %v3408
  %3656 = vmatprep.subr.mxu0 0.0
  %3657 = vmatpush1.msra.mxu0 %v3409
  %3658 = vmatprep.subr.mxu0 0.0
  %3659 = vmatpush1.msra.mxu0 %v3410
  %3660 = vmatprep.subr.mxu0 0.0
  %3661 = vmatpush1.msra.mxu0 %v3411
  %3662 = vmatprep.subr.mxu0 0.0
  %3663 = vmatpush1.msra.mxu0 %v3412
  %3664 = vmatprep.subr.mxu0 0.0
  %3665 = vmatpush1.msra.mxu0 %v3413
  %3666 = vmatprep.subr.mxu0 0.0
  %3667 = vmatpush1.msra.mxu0 %v3414
  %3668 = vmatprep.subr.mxu0 0.0
  %3669 = vmatpush1.msra.mxu0 %v3415
  %3670 = vmatprep.subr.mxu0 0.0
  %3671 = vmatpush1.msra.mxu0 %v3416
  %3672 = vmatprep.subr.mxu0 0.0
  %3673 = vmatpush1.msra.mxu0 %v3417
  %3674 = vmatprep.subr.mxu0 0.0
  %3675 = vmatpush1.msra.mxu0 %v3418
  %3676 = vmatprep.subr.mxu0 0.0
  %3677 = vmatpush1.msra.mxu0 %v3419
  %3678 = vmatprep.subr.mxu0 0.0
  %3679 = vmatpush1.msra.mxu0 %v3420
  %3680 = vmatprep.subr.mxu0 0.0
  %3681 = vmatpush1.msra.mxu0 %v3421
  %3682 = vmatprep.subr.mxu0 0.0
  %3683 = vmatpush1.msra.mxu0 %v3422
  %3684 = vmatprep.subr.mxu0 0.0
  %3685 = vmatpush1.msra.mxu0 %v3423
  %3686 = vmatprep.subr.mxu0 0.0
  %3687 = vmatpush1.msra.mxu0 %v3424
  %3688 = vmatprep.subr.mxu0 0.0
  %3689 = vmatpush1.msra.mxu0 %v3425
  %3690 = vmatprep.subr.mxu0 0.0
  %3691 = vmatpush1.msra.mxu0 %v3426
  %3692 = vmatprep.subr.mxu0 0.0
  %3693 = vmatpush1.msra.mxu0 %v3427
  %3694 = vmatprep.mubr.f32.mxu0 %v3223
  %3695 = vmatmul.mubr.f32.gmra.mrb[0].mxu0 %v3221
  %v3696 = vpop.f32.mrb[0].mxu0
  %v3697 = vadd.f32 %v3612, %v3696
  %v3698 = vpop.f32.mrb[0].mxu0
  %3699 = vmatprep.mubr.f32.mxu0 %v3229
  %3700 = vmatmul.mubr.f32.gmra.mrb[0].mxu0 %v3227
  %v3701 = vpop.f32.mrb[0].mxu0
  %v3702 = vadd.f32 %v3617, %v3701
  %v3703 = vpop.f32.mrb[0].mxu0
  %3704 = vmatprep.mubr.f32.mxu0 %v3235
  %3705 = vmatmul.mubr.f32.gmra.mrb[0].mxu0 %v3233
  %v3706 = vpop.f32.mrb[0].mxu0
  %v3707 = vadd.f32 %v3622, %v3706
  %v3708 = vpop.f32.mrb[0].mxu0
  %3709 = vmatprep.mubr.f32.mxu0 %v3241
  %3710 = vmatmul.mubr.f32.gmra.mrb[0].mxu0 %v3239
  %v3711 = vpop.f32.mrb[0].mxu0
  %v3712 = vadd.f32 %v3627, %v3711
  %v3713 = vpop.f32.mrb[0].mxu0
  %3714 = vdwg.mxu0
  %3715 = vmatprep.subr.mxu0 0.0
  %3716 = vmatpush1.msra.mxu0 %v3428
  %3717 = vmatprep.subr.mxu0 0.0
  %3718 = vmatpush1.msra.mxu0 %v3429
  %3719 = vmatprep.subr.mxu0 0.0
  %3720 = vmatpush1.msra.mxu0 %v3430
  %3721 = vmatprep.subr.mxu0 0.0
  %3722 = vmatpush1.msra.mxu0 %v3431
  %3723 = vmatprep.subr.mxu0 0.0
  %3724 = vmatpush1.msra.mxu0 %v3432
  %3725 = vmatprep.subr.mxu0 0.0
  %3726 = vmatpush1.msra.mxu0 %v3433
  %3727 = vmatprep.subr.mxu0 0.0
  %3728 = vmatpush1.msra.mxu0 %v3434
  %3729 = vmatprep.subr.mxu0 0.0
  %3730 = vmatpush1.msra.mxu0 %v3435
  %3731 = vmatprep.subr.mxu0 0.0
  %3732 = vmatpush1.msra.mxu0 %v3436
  %3733 = vmatprep.subr.mxu0 0.0
  %3734 = vmatpush1.msra.mxu0 %v3437
  %3735 = vmatprep.subr.mxu0 0.0
  %3736 = vmatpush1.msra.mxu0 %v3438
  %3737 = vmatprep.subr.mxu0 0.0
  %3738 = vmatpush1.msra.mxu0 %v3439
  %3739 = vmatprep.subr.mxu0 0.0
  %3740 = vmatpush1.msra.mxu0 %v3440
  %3741 = vmatprep.subr.mxu0 0.0
  %3742 = vmatpush1.msra.mxu0 %v3441
  %3743 = vmatprep.subr.mxu0 0.0
  %3744 = vmatpush1.msra.mxu0 %v3442
  %3745 = vmatprep.subr.mxu0 0.0
  %3746 = vmatpush1.msra.mxu0 %v3443
  %3747 = vmatprep.subr.mxu0 0.0
  %3748 = vmatpush1.msra.mxu0 %v3444
  %3749 = vmatprep.subr.mxu0 0.0
  %3750 = vmatpush1.msra.mxu0 %v3445
  %3751 = vmatprep.subr.mxu0 0.0
  %3752 = vmatpush1.msra.mxu0 %v3446
  %3753 = vmatprep.subr.mxu0 0.0
  %3754 = vmatpush1.msra.mxu0 %v3447
  %3755 = vmatprep.subr.mxu0 0.0
  %3756 = vmatpush1.msra.mxu0 %v3448
  %3757 = vmatprep.subr.mxu0 0.0
  %3758 = vmatpush1.msra.mxu0 %v3449
  %3759 = vmatprep.subr.mxu0 0.0
  %3760 = vmatpush1.msra.mxu0 %v3450
  %3761 = vmatprep.subr.mxu0 0.0
  %3762 = vmatpush1.msra.mxu0 %v3451
  %3763 = vmatprep.subr.mxu0 0.0
  %3764 = vmatpush1.msra.mxu0 %v3452
  %3765 = vmatprep.subr.mxu0 0.0
  %3766 = vmatpush1.msra.mxu0 %v3453
  %3767 = vmatprep.subr.mxu0 0.0
  %3768 = vmatpush1.msra.mxu0 %v3454
  %3769 = vmatprep.subr.mxu0 0.0
  %3770 = vmatpush1.msra.mxu0 %v3455
  %3771 = vmatprep.subr.mxu0 0.0
  %3772 = vmatpush1.msra.mxu0 %v3456
  %3773 = vmatprep.subr.mxu0 0.0
  %3774 = vmatpush1.msra.mxu0 %v3457
  %3775 = vmatprep.subr.mxu0 0.0
  %3776 = vmatpush1.msra.mxu0 %v3458
  %3777 = vmatprep.subr.mxu0 0.0
  %3778 = vmatpush1.msra.mxu0 %v3459
  %3779 = vmatprep.mubr.f32.mxu0 %v3312
  %3780 = vmatmul.mubr.f32.gmra.mrb[0].mxu0 %v3310
  %v3781 = vpop.f32.mrb[0].mxu0
  %v3782 = vadd.f32 %v3697, %v3781
  %v3783 = vpop.f32.mrb[0].mxu0
  %3784 = vmatprep.mubr.f32.mxu0 %v3318
  %3785 = vmatmul.mubr.f32.gmra.mrb[0].mxu0 %v3316
  %v3786 = vpop.f32.mrb[0].mxu0
  %v3787 = vadd.f32 %v3702, %v3786
  %v3788 = vpop.f32.mrb[0].mxu0
  %3789 = vmatprep.mubr.f32.mxu0 %v3324
  %3790 = vmatmul.mubr.f32.gmra.mrb[0].mxu0 %v3322
  %v3791 = vpop.f32.mrb[0].mxu0
  %v3792 = vadd.f32 %v3707, %v3791
  %v3793 = vpop.f32.mrb[0].mxu0
  %3794 = vmatprep.mubr.f32.mxu0 %v3330
  %3795 = vmatmul.mubr.f32.gmra.mrb[0].mxu0 %v3328
  %v3796 = vpop.f32.mrb[0].mxu0
  %v3797 = vadd.f32 %v3712, %v3796
  %v3798 = vpop.f32.mrb[0].mxu0
  %3799 = vdwg.mxu0
  %v3800 = vmul.f32 %v3043, %v3043
  %v3801 = vmul.f32 %v3045, %v3045
  %v3802 = vmul.f32 %v3132, %v3132
  %v3803 = vmul.f32 %v3134, %v3134
  %v3804 = vmul.f32 %v3221, %v3221
  %v3805 = vmul.f32 %v3223, %v3223
  %v3806 = vmul.f32 %v3310, %v3310
  %v3807 = vmul.f32 %v3312, %v3312
  %v3808 = vmul.f32 %v3049, %v3049
  %v3809 = vmul.f32 %v3051, %v3051
  %v3810 = vmul.f32 %v3138, %v3138
  %v3811 = vmul.f32 %v3140, %v3140
  %v3812 = vmul.f32 %v3227, %v3227
  %v3813 = vmul.f32 %v3229, %v3229
  %v3814 = vmul.f32 %v3316, %v3316
  %v3815 = vmul.f32 %v3318, %v3318
  %v3816 = vmul.f32 %v3055, %v3055
  %v3817 = vmul.f32 %v3057, %v3057
  %v3818 = vmul.f32 %v3144, %v3144
  %v3819 = vmul.f32 %v3146, %v3146
  %v3820 = vmul.f32 %v3233, %v3233
  %v3821 = vmul.f32 %v3235, %v3235
  %v3822 = vmul.f32 %v3322, %v3322
  %v3823 = vmul.f32 %v3324, %v3324
  %v3824 = vmul.f32 %v3061, %v3061
  %v3825 = vmul.f32 %v3063, %v3063
  %v3826 = vmul.f32 %v3150, %v3150
  %v3827 = vmul.f32 %v3152, %v3152
  %v3828 = vmul.f32 %v3239, %v3239
  %v3829 = vmul.f32 %v3241, %v3241
  %v3830 = vmul.f32 %v3328, %v3328
  %v3831 = vmul.f32 %v3330, %v3330
  %3832 = vmatprep.subr.mxu0 0.0
  %3833 = vmatpush1.msra.mxu0 %v3332
  %3834 = vmatprep.subr.mxu0 0.0
  %3835 = vmatpush1.msra.mxu0 %v3333
  %3836 = vmatprep.subr.mxu0 0.0
  %3837 = vmatpush1.msra.mxu0 %v3334
  %3838 = vmatprep.subr.mxu0 0.0
  %3839 = vmatpush1.msra.mxu0 %v3335
  %3840 = vmatprep.subr.mxu0 0.0
  %3841 = vmatpush1.msra.mxu0 %v3336
  %3842 = vmatprep.subr.mxu0 0.0
  %3843 = vmatpush1.msra.mxu0 %v3337
  %3844 = vmatprep.subr.mxu0 0.0
  %3845 = vmatpush1.msra.mxu0 %v3338
  %3846 = vmatprep.subr.mxu0 0.0
  %3847 = vmatpush1.msra.mxu0 %v3339
  %3848 = vmatprep.subr.mxu0 0.0
  %3849 = vmatpush1.msra.mxu0 %v3340
  %3850 = vmatprep.subr.mxu0 0.0
  %3851 = vmatpush1.msra.mxu0 %v3341
  %3852 = vmatprep.subr.mxu0 0.0
  %3853 = vmatpush1.msra.mxu0 %v3342
  %3854 = vmatprep.subr.mxu0 0.0
  %3855 = vmatpush1.msra.mxu0 %v3343
  %3856 = vmatprep.subr.mxu0 0.0
  %3857 = vmatpush1.msra.mxu0 %v3344
  %3858 = vmatprep.subr.mxu0 0.0
  %3859 = vmatpush1.msra.mxu0 %v3345
  %3860 = vmatprep.subr.mxu0 0.0
  %3861 = vmatpush1.msra.mxu0 %v3346
  %3862 = vmatprep.subr.mxu0 0.0
  %3863 = vmatpush1.msra.mxu0 %v3347
  %3864 = vmatprep.subr.mxu0 0.0
  %3865 = vmatpush1.msra.mxu0 %v3348
  %3866 = vmatprep.subr.mxu0 0.0
  %3867 = vmatpush1.msra.mxu0 %v3349
  %3868 = vmatprep.subr.mxu0 0.0
  %3869 = vmatpush1.msra.mxu0 %v3350
  %3870 = vmatprep.subr.mxu0 0.0
  %3871 = vmatpush1.msra.mxu0 %v3351
  %3872 = vmatprep.subr.mxu0 0.0
  %3873 = vmatpush1.msra.mxu0 %v3352
  %3874 = vmatprep.subr.mxu0 0.0
  %3875 = vmatpush1.msra.mxu0 %v3353
  %3876 = vmatprep.subr.mxu0 0.0
  %3877 = vmatpush1.msra.mxu0 %v3354
  %3878 = vmatprep.subr.mxu0 0.0
  %3879 = vmatpush1.msra.mxu0 %v3355
  %3880 = vmatprep.subr.mxu0 0.0
  %3881 = vmatpush1.msra.mxu0 %v3356
  %3882 = vmatprep.subr.mxu0 0.0
  %3883 = vmatpush1.msra.mxu0 %v3357
  %3884 = vmatprep.subr.mxu0 0.0
  %3885 = vmatpush1.msra.mxu0 %v3358
  %3886 = vmatprep.subr.mxu0 0.0
  %3887 = vmatpush1.msra.mxu0 %v3359
  %3888 = vmatprep.subr.mxu0 0.0
  %3889 = vmatpush1.msra.mxu0 %v3360
  %3890 = vmatprep.subr.mxu0 0.0
  %3891 = vmatpush1.msra.mxu0 %v3361
  %3892 = vmatprep.subr.mxu0 0.0
  %3893 = vmatpush1.msra.mxu0 %v3362
  %3894 = vmatprep.subr.mxu0 0.0
  %3895 = vmatpush1.msra.mxu0 %v3363
  %3896 = vmatprep.mubr.f32.mxu0 %v3801
  %3897 = vmatmul.mubr.f32.gmra.mrb[0].mxu0 %v3800
  %v3898 = vpop.f32.mrb[0].mxu0
  %v3899 = vadd.f32 0.0, %v3898
  %v3900 = vpop.f32.mrb[0].mxu0
  %3901 = vmatprep.mubr.f32.mxu0 %v3809
  %3902 = vmatmul.mubr.f32.gmra.mrb[0].mxu0 %v3808
  %v3903 = vpop.f32.mrb[0].mxu0
  %v3904 = vadd.f32 0.0, %v3903
  %v3905 = vpop.f32.mrb[0].mxu0
  %3906 = vmatprep.mubr.f32.mxu0 %v3817
  %3907 = vmatmul.mubr.f32.gmra.mrb[0].mxu0 %v3816
  %v3908 = vpop.f32.mrb[0].mxu0
  %v3909 = vadd.f32 0.0, %v3908
  %v3910 = vpop.f32.mrb[0].mxu0
  %3911 = vmatprep.mubr.f32.mxu0 %v3825
  %3912 = vmatmul.mubr.f32.gmra.mrb[0].mxu0 %v3824
  %v3913 = vpop.f32.mrb[0].mxu0
  %v3914 = vadd.f32 0.0, %v3913
  %v3915 = vpop.f32.mrb[0].mxu0
  %3916 = vdwg.mxu0
  %3917 = vmatprep.subr.mxu0 0.0
  %3918 = vmatpush1.msra.mxu0 %v3364
  %3919 = vmatprep.subr.mxu0 0.0
  %3920 = vmatpush1.msra.mxu0 %v3365
  %3921 = vmatprep.subr.mxu0 0.0
  %3922 = vmatpush1.msra.mxu0 %v3366
  %3923 = vmatprep.subr.mxu0 0.0
  %3924 = vmatpush1.msra.mxu0 %v3367
  %3925 = vmatprep.subr.mxu0 0.0
  %3926 = vmatpush1.msra.mxu0 %v3368
  %3927 = vmatprep.subr.mxu0 0.0
  %3928 = vmatpush1.msra.mxu0 %v3369
  %3929 = vmatprep.subr.mxu0 0.0
  %3930 = vmatpush1.msra.mxu0 %v3370
  %3931 = vmatprep.subr.mxu0 0.0
  %3932 = vmatpush1.msra.mxu0 %v3371
  %3933 = vmatprep.subr.mxu0 0.0
  %3934 = vmatpush1.msra.mxu0 %v3372
  %3935 = vmatprep.subr.mxu0 0.0
  %3936 = vmatpush1.msra.mxu0 %v3373
  %3937 = vmatprep.subr.mxu0 0.0
  %3938 = vmatpush1.msra.mxu0 %v3374
  %3939 = vmatprep.subr.mxu0 0.0
  %3940 = vmatpush1.msra.mxu0 %v3375
  %3941 = vmatprep.subr.mxu0 0.0
  %3942 = vmatpush1.msra.mxu0 %v3376
  %3943 = vmatprep.subr.mxu0 0.0
  %3944 = vmatpush1.msra.mxu0 %v3377
  %3945 = vmatprep.subr.mxu0 0.0
  %3946 = vmatpush1.msra.mxu0 %v3378
  %3947 = vmatprep.subr.mxu0 0.0
  %3948 = vmatpush1.msra.mxu0 %v3379
  %3949 = vmatprep.subr.mxu0 0.0
  %3950 = vmatpush1.msra.mxu0 %v3380
  %3951 = vmatprep.subr.mxu0 0.0
  %3952 = vmatpush1.msra.mxu0 %v3381
  %3953 = vmatprep.subr.mxu0 0.0
  %3954 = vmatpush1.msra.mxu0 %v3382
  %3955 = vmatprep.subr.mxu0 0.0
  %3956 = vmatpush1.msra.mxu0 %v3383
  %3957 = vmatprep.subr.mxu0 0.0
  %3958 = vmatpush1.msra.mxu0 %v3384
  %3959 = vmatprep.subr.mxu0 0.0
  %3960 = vmatpush1.msra.mxu0 %v3385
  %3961 = vmatprep.subr.mxu0 0.0
  %3962 = vmatpush1.msra.mxu0 %v3386
  %3963 = vmatprep.subr.mxu0 0.0
  %3964 = vmatpush1.msra.mxu0 %v3387
  %3965 = vmatprep.subr.mxu0 0.0
  %3966 = vmatpush1.msra.mxu0 %v3388
  %3967 = vmatprep.subr.mxu0 0.0
  %3968 = vmatpush1.msra.mxu0 %v3389
  %3969 = vmatprep.subr.mxu0 0.0
  %3970 = vmatpush1.msra.mxu0 %v3390
  %3971 = vmatprep.subr.mxu0 0.0
  %3972 = vmatpush1.msra.mxu0 %v3391
  %3973 = vmatprep.subr.mxu0 0.0
  %3974 = vmatpush1.msra.mxu0 %v3392
  %3975 = vmatprep.subr.mxu0 0.0
  %3976 = vmatpush1.msra.mxu0 %v3393
  %3977 = vmatprep.subr.mxu0 0.0
  %3978 = vmatpush1.msra.mxu0 %v3394
  %3979 = vmatprep.subr.mxu0 0.0
  %3980 = vmatpush1.msra.mxu0 %v3395
  %3981 = vmatprep.mubr.f32.mxu0 %v3803
  %3982 = vmatmul.mubr.f32.gmra.mrb[0].mxu0 %v3802
  %v3983 = vpop.f32.mrb[0].mxu0
  %v3984 = vadd.f32 %v3899, %v3983
  %v3985 = vpop.f32.mrb[0].mxu0
  %3986 = vmatprep.mubr.f32.mxu0 %v3811
  %3987 = vmatmul.mubr.f32.gmra.mrb[0].mxu0 %v3810
  %v3988 = vpop.f32.mrb[0].mxu0
  %v3989 = vadd.f32 %v3904, %v3988
  %v3990 = vpop.f32.mrb[0].mxu0
  %3991 = vmatprep.mubr.f32.mxu0 %v3819
  %3992 = vmatmul.mubr.f32.gmra.mrb[0].mxu0 %v3818
  %v3993 = vpop.f32.mrb[0].mxu0
  %v3994 = vadd.f32 %v3909, %v3993
  %v3995 = vpop.f32.mrb[0].mxu0
  %3996 = vmatprep.mubr.f32.mxu0 %v3827
  %3997 = vmatmul.mubr.f32.gmra.mrb[0].mxu0 %v3826
  %v3998 = vpop.f32.mrb[0].mxu0
  %v3999 = vadd.f32 %v3914, %v3998
  %v4000 = vpop.f32.mrb[0].mxu0
  %4001 = vdwg.mxu0
  %4002 = vmatprep.subr.mxu0 0.0
  %4003 = vmatpush1.msra.mxu0 %v3396
  %4004 = vmatprep.subr.mxu0 0.0
  %4005 = vmatpush1.msra.mxu0 %v3397
  %4006 = vmatprep.subr.mxu0 0.0
  %4007 = vmatpush1.msra.mxu0 %v3398
  %4008 = vmatprep.subr.mxu0 0.0
  %4009 = vmatpush1.msra.mxu0 %v3399
  %4010 = vmatprep.subr.mxu0 0.0
  %4011 = vmatpush1.msra.mxu0 %v3400
  %4012 = vmatprep.subr.mxu0 0.0
  %4013 = vmatpush1.msra.mxu0 %v3401
  %4014 = vmatprep.subr.mxu0 0.0
  %4015 = vmatpush1.msra.mxu0 %v3402
  %4016 = vmatprep.subr.mxu0 0.0
  %4017 = vmatpush1.msra.mxu0 %v3403
  %4018 = vmatprep.subr.mxu0 0.0
  %4019 = vmatpush1.msra.mxu0 %v3404
  %4020 = vmatprep.subr.mxu0 0.0
  %4021 = vmatpush1.msra.mxu0 %v3405
  %4022 = vmatprep.subr.mxu0 0.0
  %4023 = vmatpush1.msra.mxu0 %v3406
  %4024 = vmatprep.subr.mxu0 0.0
  %4025 = vmatpush1.msra.mxu0 %v3407
  %4026 = vmatprep.subr.mxu0 0.0
  %4027 = vmatpush1.msra.mxu0 %v3408
  %4028 = vmatprep.subr.mxu0 0.0
  %4029 = vmatpush1.msra.mxu0 %v3409
  %4030 = vmatprep.subr.mxu0 0.0
  %4031 = vmatpush1.msra.mxu0 %v3410
  %4032 = vmatprep.subr.mxu0 0.0
  %4033 = vmatpush1.msra.mxu0 %v3411
  %4034 = vmatprep.subr.mxu0 0.0
  %4035 = vmatpush1.msra.mxu0 %v3412
  %4036 = vmatprep.subr.mxu0 0.0
  %4037 = vmatpush1.msra.mxu0 %v3413
  %4038 = vmatprep.subr.mxu0 0.0
  %4039 = vmatpush1.msra.mxu0 %v3414
  %4040 = vmatprep.subr.mxu0 0.0
  %4041 = vmatpush1.msra.mxu0 %v3415
  %4042 = vmatprep.subr.mxu0 0.0
  %4043 = vmatpush1.msra.mxu0 %v3416
  %4044 = vmatprep.subr.mxu0 0.0
  %4045 = vmatpush1.msra.mxu0 %v3417
  %4046 = vmatprep.subr.mxu0 0.0
  %4047 = vmatpush1.msra.mxu0 %v3418
  %4048 = vmatprep.subr.mxu0 0.0
  %4049 = vmatpush1.msra.mxu0 %v3419
  %4050 = vmatprep.subr.mxu0 0.0
  %4051 = vmatpush1.msra.mxu0 %v3420
  %4052 = vmatprep.subr.mxu0 0.0
  %4053 = vmatpush1.msra.mxu0 %v3421
  %4054 = vmatprep.subr.mxu0 0.0
  %4055 = vmatpush1.msra.mxu0 %v3422
  %4056 = vmatprep.subr.mxu0 0.0
  %4057 = vmatpush1.msra.mxu0 %v3423
  %4058 = vmatprep.subr.mxu0 0.0
  %4059 = vmatpush1.msra.mxu0 %v3424
  %4060 = vmatprep.subr.mxu0 0.0
  %4061 = vmatpush1.msra.mxu0 %v3425
  %4062 = vmatprep.subr.mxu0 0.0
  %4063 = vmatpush1.msra.mxu0 %v3426
  %4064 = vmatprep.subr.mxu0 0.0
  %4065 = vmatpush1.msra.mxu0 %v3427
  %4066 = vmatprep.mubr.f32.mxu0 %v3805
  %4067 = vmatmul.mubr.f32.gmra.mrb[0].mxu0 %v3804
  %v4068 = vpop.f32.mrb[0].mxu0
  %v4069 = vadd.f32 %v3984, %v4068
  %v4070 = vpop.f32.mrb[0].mxu0
  %4071 = vmatprep.mubr.f32.mxu0 %v3813
  %4072 = vmatmul.mubr.f32.gmra.mrb[0].mxu0 %v3812
  %v4073 = vpop.f32.mrb[0].mxu0
  %v4074 = vadd.f32 %v3989, %v4073
  %v4075 = vpop.f32.mrb[0].mxu0
  %4076 = vmatprep.mubr.f32.mxu0 %v3821
  %4077 = vmatmul.mubr.f32.gmra.mrb[0].mxu0 %v3820
  %v4078 = vpop.f32.mrb[0].mxu0
  %v4079 = vadd.f32 %v3994, %v4078
  %v4080 = vpop.f32.mrb[0].mxu0
  %4081 = vmatprep.mubr.f32.mxu0 %v3829
  %4082 = vmatmul.mubr.f32.gmra.mrb[0].mxu0 %v3828
  %v4083 = vpop.f32.mrb[0].mxu0
  %v4084 = vadd.f32 %v3999, %v4083
  %v4085 = vpop.f32.mrb[0].mxu0
  %4086 = vdwg.mxu0
  %4087 = vmatprep.subr.mxu0 0.0
  %4088 = vmatpush1.msra.mxu0 %v3428
  %4089 = vmatprep.subr.mxu0 0.0
  %4090 = vmatpush1.msra.mxu0 %v3429
  %4091 = vmatprep.subr.mxu0 0.0
  %4092 = vmatpush1.msra.mxu0 %v3430
  %4093 = vmatprep.subr.mxu0 0.0
  %4094 = vmatpush1.msra.mxu0 %v3431
  %4095 = vmatprep.subr.mxu0 0.0
  %4096 = vmatpush1.msra.mxu0 %v3432
  %4097 = vmatprep.subr.mxu0 0.0
  %4098 = vmatpush1.msra.mxu0 %v3433
  %4099 = vmatprep.subr.mxu0 0.0
  %4100 = vmatpush1.msra.mxu0 %v3434
  %4101 = vmatprep.subr.mxu0 0.0
  %4102 = vmatpush1.msra.mxu0 %v3435
  %4103 = vmatprep.subr.mxu0 0.0
  %4104 = vmatpush1.msra.mxu0 %v3436
  %4105 = vmatprep.subr.mxu0 0.0
  %4106 = vmatpush1.msra.mxu0 %v3437
  %4107 = vmatprep.subr.mxu0 0.0
  %4108 = vmatpush1.msra.mxu0 %v3438
  %4109 = vmatprep.subr.mxu0 0.0
  %4110 = vmatpush1.msra.mxu0 %v3439
  %4111 = vmatprep.subr.mxu0 0.0
  %4112 = vmatpush1.msra.mxu0 %v3440
  %4113 = vmatprep.subr.mxu0 0.0
  %4114 = vmatpush1.msra.mxu0 %v3441
  %4115 = vmatprep.subr.mxu0 0.0
  %4116 = vmatpush1.msra.mxu0 %v3442
  %4117 = vmatprep.subr.mxu0 0.0
  %4118 = vmatpush1.msra.mxu0 %v3443
  %4119 = vmatprep.subr.mxu0 0.0
  %4120 = vmatpush1.msra.mxu0 %v3444
  %4121 = vmatprep.subr.mxu0 0.0
  %4122 = vmatpush1.msra.mxu0 %v3445
  %4123 = vmatprep.subr.mxu0 0.0
  %4124 = vmatpush1.msra.mxu0 %v3446
  %4125 = vmatprep.subr.mxu0 0.0
  %4126 = vmatpush1.msra.mxu0 %v3447
  %4127 = vmatprep.subr.mxu0 0.0
  %4128 = vmatpush1.msra.mxu0 %v3448
  %4129 = vmatprep.subr.mxu0 0.0
  %4130 = vmatpush1.msra.mxu0 %v3449
  %4131 = vmatprep.subr.mxu0 0.0
  %4132 = vmatpush1.msra.mxu0 %v3450
  %4133 = vmatprep.subr.mxu0 0.0
  %4134 = vmatpush1.msra.mxu0 %v3451
  %4135 = vmatprep.subr.mxu0 0.0
  %4136 = vmatpush1.msra.mxu0 %v3452
  %4137 = vmatprep.subr.mxu0 0.0
  %4138 = vmatpush1.msra.mxu0 %v3453
  %4139 = vmatprep.subr.mxu0 0.0
  %4140 = vmatpush1.msra.mxu0 %v3454
  %4141 = vmatprep.subr.mxu0 0.0
  %4142 = vmatpush1.msra.mxu0 %v3455
  %4143 = vmatprep.subr.mxu0 0.0
  %4144 = vmatpush1.msra.mxu0 %v3456
  %4145 = vmatprep.subr.mxu0 0.0
  %4146 = vmatpush1.msra.mxu0 %v3457
  %4147 = vmatprep.subr.mxu0 0.0
  %4148 = vmatpush1.msra.mxu0 %v3458
  %4149 = vmatprep.subr.mxu0 0.0
  %4150 = vmatpush1.msra.mxu0 %v3459
  %4151 = vmatprep.mubr.f32.mxu0 %v3807
  %4152 = vmatmul.mubr.f32.gmra.mrb[0].mxu0 %v3806
  %v4153 = vpop.f32.mrb[0].mxu0
  %v4154 = vadd.f32 %v4069, %v4153
  %v4155 = vpop.f32.mrb[0].mxu0
  %4156 = vmatprep.mubr.f32.mxu0 %v3815
  %4157 = vmatmul.mubr.f32.gmra.mrb[0].mxu0 %v3814
  %v4158 = vpop.f32.mrb[0].mxu0
  %v4159 = vadd.f32 %v4074, %v4158
  %v4160 = vpop.f32.mrb[0].mxu0
  %4161 = vmatprep.mubr.f32.mxu0 %v3823
  %4162 = vmatmul.mubr.f32.gmra.mrb[0].mxu0 %v3822
  %v4163 = vpop.f32.mrb[0].mxu0
  %v4164 = vadd.f32 %v4079, %v4163
  %v4165 = vpop.f32.mrb[0].mxu0
  %4166 = vmatprep.mubr.f32.mxu0 %v3831
  %4167 = vmatmul.mubr.f32.gmra.mrb[0].mxu0 %v3830
  %v4168 = vpop.f32.mrb[0].mxu0
  %v4169 = vadd.f32 %v4084, %v4168
  %v4170 = vpop.f32.mrb[0].mxu0
  %4171 = vdwg.mxu0
  %v4172 = vmul.f32 %v3782, 0.00390625
  %v4173 = vmul.f32 %v3787, 0.00390625
  %v4174 = vmul.f32 %v3792, 0.00390625
  %v4175 = vmul.f32 %v3797, 0.00390625
  %v4176 = vmul.f32 %v4154, 0.00390625
  %v4177 = vmul.f32 %v4159, 0.00390625
  %v4178 = vmul.f32 %v4164, 0.00390625
  %v4179 = vmul.f32 %v4169, 0.00390625
  %v4180 = vmul.f32 %v4172, %v4172
  %v4181 = vmul.f32 %v4173, %v4173
  %v4182 = vmul.f32 %v4174, %v4174
  %v4183 = vmul.f32 %v4175, %v4175
  %v4184 = vsub.f32 %v4176, %v4180
  %v4185 = vsub.f32 %v4177, %v4181
  %v4186 = vsub.f32 %v4178, %v4182
  %v4187 = vsub.f32 %v4179, %v4183
  %v4188 = vld [vmem:[%s11] sm:$0xff]
  %v4189 = vld [vmem:[%s11 + $0x8] sm:$0xff]
  %v4190 = vld [vmem:[%s11 + $0x10] sm:$0xff]
  %v4191 = vld [vmem:[%s11 + $0x18] sm:$0xff]
  %v4192 = vadd.f32 %v4184, 1e-05
  %v4193 = vadd.f32 %v4185, 1e-05
  %v4194 = vadd.f32 %v4186, 1e-05
  %v4195 = vadd.f32 %v4187, 1e-05
  %v4196 = vrsqrt.pop %v4192
  %v4197 = vrsqrt.pop %v4193
  %v4198 = vrsqrt.pop %v4194
  %v4199 = vrsqrt.pop %v4195
  %4201 = vset.pattern.permute.xlu0 0
  %4202 = vperm.xlu0 %4201, %v4188
  %v4203 = vpop.permute.xlu0 %4202
  %4206 = vset.pattern.permute.xlu0 0
  %4207 = vperm.xlu0 %4206, %v4189
  %v4208 = vpop.permute.xlu0 %4207
  %4211 = vset.pattern.permute.xlu0 0
  %4212 = vperm.xlu0 %4211, %v4190
  %v4213 = vpop.permute.xlu0 %4212
  %4216 = vset.pattern.permute.xlu0 0
  %4217 = vperm.xlu0 %4216, %v4191
  %v4218 = vpop.permute.xlu0 %4217
  %v4220 = vmul.f32 %v4203, %v4196
  %v4221 = vmul.f32 %v4208, %v4197
  %v4222 = vmul.f32 %v4213, %v4198
  %v4223 = vmul.f32 %v4218, %v4199
  %v4224 = vld [vmem:[%s12] sm:$0xff]
  %v4225 = vld [vmem:[%s12 + $0x8] sm:$0xff]
  %v4226 = vld [vmem:[%s12 + $0x10] sm:$0xff]
  %v4227 = vld [vmem:[%s12 + $0x18] sm:$0xff]
  %v4228 = vmul.f32 %v4172, %v4220
  %v4229 = vmul.f32 %v4173, %v4221
  %v4230 = vmul.f32 %v4174, %v4222
  %v4231 = vmul.f32 %v4175, %v4223
  %4233 = vset.pattern.permute.xlu0 0
  %4234 = vperm.xlu0 %4233, %v4224
  %v4235 = vpop.permute.xlu0 %4234
  %4238 = vset.pattern.permute.xlu0 0
  %4239 = vperm.xlu0 %4238, %v4225
  %v4240 = vpop.permute.xlu0 %4239
  %4243 = vset.pattern.permute.xlu0 0
  %4244 = vperm.xlu0 %4243, %v4226
  %v4245 = vpop.permute.xlu0 %4244
  %4248 = vset.pattern.permute.xlu0 0
  %4249 = vperm.xlu0 %4248, %v4227
  %v4250 = vpop.permute.xlu0 %4249
  %v4252 = vsub.f32 %v4235, %v4228
  %v4253 = vsub.f32 %v4240, %v4229
  %v4254 = vsub.f32 %v4245, %v4230
  %v4255 = vsub.f32 %v4250, %v4231
  %4257 = vset.pattern.permute.xlu0 0
  %4258 = vperm.xlu0 %4257, %v4220
  %v4259 = vpop.permute.xlu0 %4258
  %4262 = vset.pattern.permute.xlu0 0
  %4263 = vperm.xlu0 %4262, %v4221
  %v4264 = vpop.permute.xlu0 %4263
  %4267 = vset.pattern.permute.xlu0 0
  %4268 = vperm.xlu0 %4267, %v4222
  %v4269 = vpop.permute.xlu0 %4268
  %4272 = vset.pattern.permute.xlu0 0
  %4273 = vperm.xlu0 %4272, %v4223
  %v4274 = vpop.permute.xlu0 %4273
  %v4276 = vmul.f32 %v3043, %v4259
  %v4277 = vmul.f32 %v3045, %v4259
  %v4278 = vmul.f32 %v3049, %v4264
  %v4279 = vmul.f32 %v3051, %v4264
  %v4280 = vmul.f32 %v3055, %v4269
  %v4281 = vmul.f32 %v3057, %v4269
  %v4282 = vmul.f32 %v3061, %v4274
  %v4283 = vmul.f32 %v3063, %v4274
  %4285 = vset.pattern.permute.xlu0 0
  %4286 = vperm.xlu0 %4285, %v4252
  %v4287 = vpop.permute.xlu0 %4286
  %4290 = vset.pattern.permute.xlu0 0
  %4291 = vperm.xlu0 %4290, %v4253
  %v4292 = vpop.permute.xlu0 %4291
  %4295 = vset.pattern.permute.xlu0 0
  %4296 = vperm.xlu0 %4295, %v4254
  %v4297 = vpop.permute.xlu0 %4296
  %4300 = vset.pattern.permute.xlu0 0
  %4301 = vperm.xlu0 %4300, %v4255
  %v4302 = vpop.permute.xlu0 %4301
  %v4304 = vadd.f32 %v4276, %v4287
  %v4305 = vadd.f32 %v4277, %v4287
  %v4306 = vadd.f32 %v4278, %v4292
  %v4307 = vadd.f32 %v4279, %v4292
  %v4308 = vadd.f32 %v4280, %v4297
  %v4309 = vadd.f32 %v4281, %v4297
  %v4310 = vadd.f32 %v4282, %v4302
  %v4311 = vadd.f32 %v4283, %v4302
  %4312 = vst [vmem:[%s13] sm:$0xff] %v4304
  %4313 = vst [vmem:[%s13 + $0x8] sm:$0xff] %v4305
  %4314 = vst [vmem:[%s13 + $0x10] sm:$0xff] %v4306
  %4315 = vst [vmem:[%s13 + $0x18] sm:$0xff] %v4307
  %4316 = vst [vmem:[%s13 + $0x20] sm:$0xff] %v4308
  %4317 = vst [vmem:[%s13 + $0x28] sm:$0xff] %v4309
  %4318 = vst [vmem:[%s13 + $0x30] sm:$0xff] %v4310
  %4319 = vst [vmem:[%s13 + $0x38] sm:$0xff] %v4311
  %4320 = vset.pattern.permute.xlu0 1
  %4321 = vperm.xlu0 %4320, %v4220
  %v4322 = vpop.permute.xlu0 %4321
  %4324 = vset.pattern.permute.xlu0 1
  %4325 = vperm.xlu0 %4324, %v4221
  %v4326 = vpop.permute.xlu0 %4325
  %4328 = vset.pattern.permute.xlu0 1
  %4329 = vperm.xlu0 %4328, %v4222
  %v4330 = vpop.permute.xlu0 %4329
  %4332 = vset.pattern.permute.xlu0 1
  %4333 = vperm.xlu0 %4332, %v4223
  %v4334 = vpop.permute.xlu0 %4333
  %v4336 = vmul.f32 %v3132, %v4322
  %v4337 = vmul.f32 %v3134, %v4322
  %v4338 = vmul.f32 %v3138, %v4326
  %v4339 = vmul.f32 %v3140, %v4326
  %v4340 = vmul.f32 %v3144, %v4330
  %v4341 = vmul.f32 %v3146, %v4330
  %v4342 = vmul.f32 %v3150, %v4334
  %v4343 = vmul.f32 %v3152, %v4334
  %4344 = vset.pattern.permute.xlu0 1
  %4345 = vperm.xlu0 %4344, %v4252
  %v4346 = vpop.permute.xlu0 %4345
  %4348 = vset.pattern.permute.xlu0 1
  %4349 = vperm.xlu0 %4348, %v4253
  %v4350 = vpop.permute.xlu0 %4349
  %4352 = vset.pattern.permute.xlu0 1
  %4353 = vperm.xlu0 %4352, %v4254
  %v4354 = vpop.permute.xlu0 %4353
  %4356 = vset.pattern.permute.xlu0 1
  %4357 = vperm.xlu0 %4356, %v4255
  %v4358 = vpop.permute.xlu0 %4357
  %v4360 = vadd.f32 %v4336, %v4346
  %v4361 = vadd.f32 %v4337, %v4346
  %v4362 = vadd.f32 %v4338, %v4350
  %v4363 = vadd.f32 %v4339, %v4350
  %v4364 = vadd.f32 %v4340, %v4354
  %v4365 = vadd.f32 %v4341, %v4354
  %v4366 = vadd.f32 %v4342, %v4358
  %v4367 = vadd.f32 %v4343, %v4358
  %s4368 = scalar_lea.vmem %s13, 64
  %4369 = vst [vmem:[%s4368] sm:$0xff] %v4360
  %4370 = vst [vmem:[%s4368 + $0x8] sm:$0xff] %v4361
  %4371 = vst [vmem:[%s4368 + $0x10] sm:$0xff] %v4362
  %4372 = vst [vmem:[%s4368 + $0x18] sm:$0xff] %v4363
  %4373 = vst [vmem:[%s4368 + $0x20] sm:$0xff] %v4364
  %4374 = vst [vmem:[%s4368 + $0x28] sm:$0xff] %v4365
  %4375 = vst [vmem:[%s4368 + $0x30] sm:$0xff] %v4366
  %4376 = vst [vmem:[%s4368 + $0x38] sm:$0xff] %v4367
  %4377 = vset.pattern.permute.xlu0 2
  %4378 = vperm.xlu0 %4377, %v4220
  %v4379 = vpop.permute.xlu0 %4378
  %4381 = vset.pattern.permute.xlu0 2
  %4382 = vperm.xlu0 %4381, %v4221
  %v4383 = vpop.permute.xlu0 %4382
  %4385 = vset.pattern.permute.xlu0 2
  %4386 = vperm.xlu0 %4385, %v4222
  %v4387 = vpop.permute.xlu0 %4386
  %4389 = vset.pattern.permute.xlu0 2
  %4390 = vperm.xlu0 %4389, %v4223
  %v4391 = vpop.permute.xlu0 %4390
  %v4393 = vmul.f32 %v3221, %v4379
  %v4394 = vmul.f32 %v3223, %v4379
  %v4395 = vmul.f32 %v3227, %v4383
  %v4396 = vmul.f32 %v3229, %v4383
  %v4397 = vmul.f32 %v3233, %v4387
  %v4398 = vmul.f32 %v3235, %v4387
  %v4399 = vmul.f32 %v3239, %v4391
  %v4400 = vmul.f32 %v3241, %v4391
  %4401 = vset.pattern.permute.xlu0 2
  %4402 = vperm.xlu0 %4401, %v4252
  %v4403 = vpop.permute.xlu0 %4402
  %4405 = vset.pattern.permute.xlu0 2
  %4406 = vperm.xlu0 %4405, %v4253
  %v4407 = vpop.permute.xlu0 %4406
  %4409 = vset.pattern.permute.xlu0 2
  %4410 = vperm.xlu0 %4409, %v4254
  %v4411 = vpop.permute.xlu0 %4410
  %4413 = vset.pattern.permute.xlu0 2
  %4414 = vperm.xlu0 %4413, %v4255
  %v4415 = vpop.permute.xlu0 %4414
  %v4417 = vadd.f32 %v4393, %v4403
  %v4418 = vadd.f32 %v4394, %v4403
  %v4419 = vadd.f32 %v4395, %v4407
  %v4420 = vadd.f32 %v4396, %v4407
  %v4421 = vadd.f32 %v4397, %v4411
  %v4422 = vadd.f32 %v4398, %v4411
  %v4423 = vadd.f32 %v4399, %v4415
  %v4424 = vadd.f32 %v4400, %v4415
  %s4425 = scalar_lea.vmem %s13, 128
  %4426 = vst [vmem:[%s4425] sm:$0xff] %v4417
  %4427 = vst [vmem:[%s4425 + $0x8] sm:$0xff] %v4418
  %4428 = vst [vmem:[%s4425 + $0x10] sm:$0xff] %v4419
  %4429 = vst [vmem:[%s4425 + $0x18] sm:$0xff] %v4420
  %4430 = vst [vmem:[%s4425 + $0x20] sm:$0xff] %v4421
  %4431 = vst [vmem:[%s4425 + $0x28] sm:$0xff] %v4422
  %4432 = vst [vmem:[%s4425 + $0x30] sm:$0xff] %v4423
  %4433 = vst [vmem:[%s4425 + $0x38] sm:$0xff] %v4424
  %4434 = vset.pattern.permute.xlu0 3
  %4435 = vperm.xlu0 %4434, %v4220
  %v4436 = vpop.permute.xlu0 %4435
  %4438 = vset.pattern.permute.xlu0 3
  %4439 = vperm.xlu0 %4438, %v4221
  %v4440 = vpop.permute.xlu0 %4439
  %4442 = vset.pattern.permute.xlu0 3
  %4443 = vperm.xlu0 %4442, %v4222
  %v4444 = vpop.permute.xlu0 %4443
  %4446 = vset.pattern.permute.xlu0 3
  %4447 = vperm.xlu0 %4446, %v4223
  %v4448 = vpop.permute.xlu0 %4447
  %v4450 = vmul.f32 %v3310, %v4436
  %v4451 = vmul.f32 %v3312, %v4436
  %v4452 = vmul.f32 %v3316, %v4440
  %v4453 = vmul.f32 %v3318, %v4440
  %v4454 = vmul.f32 %v3322, %v4444
  %v4455 = vmul.f32 %v3324, %v4444
  %v4456 = vmul.f32 %v3328, %v4448
  %v4457 = vmul.f32 %v3330, %v4448
  %4458 = vset.pattern.permute.xlu0 3
  %4459 = vperm.xlu0 %4458, %v4252
  %v4460 = vpop.permute.xlu0 %4459
  %4462 = vset.pattern.permute.xlu0 3
  %4463 = vperm.xlu0 %4462, %v4253
  %v4464 = vpop.permute.xlu0 %4463
  %4466 = vset.pattern.permute.xlu0 3
  %4467 = vperm.xlu0 %4466, %v4254
  %v4468 = vpop.permute.xlu0 %4467
  %4470 = vset.pattern.permute.xlu0 3
  %4471 = vperm.xlu0 %4470, %v4255
  %v4472 = vpop.permute.xlu0 %4471
  %v4474 = vadd.f32 %v4450, %v4460
  %v4475 = vadd.f32 %v4451, %v4460
  %v4476 = vadd.f32 %v4452, %v4464
  %v4477 = vadd.f32 %v4453, %v4464
  %v4478 = vadd.f32 %v4454, %v4468
  %v4479 = vadd.f32 %v4455, %v4468
  %v4480 = vadd.f32 %v4456, %v4472
  %v4481 = vadd.f32 %v4457, %v4472
  %s4482 = scalar_lea.vmem %s13, 192
  %4483 = vst [vmem:[%s4482] sm:$0xff] %v4474
  %4484 = vst [vmem:[%s4482 + $0x8] sm:$0xff] %v4475
  %4485 = vst [vmem:[%s4482 + $0x10] sm:$0xff] %v4476
  %4486 = vst [vmem:[%s4482 + $0x18] sm:$0xff] %v4477
  %4487 = vst [vmem:[%s4482 + $0x20] sm:$0xff] %v4478
  %4488 = vst [vmem:[%s4482 + $0x28] sm:$0xff] %v4479
  %4489 = vst [vmem:[%s4482 + $0x30] sm:$0xff] %v4480
  %4490 = vst [vmem:[%s4482 + $0x38] sm:$0xff] %v4481
  // Predicated region
  $region54: #{scm_forward.1} parent=0 // pred_check
    _
  $region55: #{scm_forward.1} parent=0 // pred_check_branch
    %4492 = sbr.rel (0) target = $region57
  $region56: #{scm_forward.1} parent=0 // pred_region
    _
  $region57: #{scm_forward.1} parent=0 // pred_fallthru
    _
  // Predicated region
  $region58: #{scm_forward.1} parent=0 // pred_check
    _
  $region59: #{scm_forward.1} parent=0 // pred_check_branch
    %4494 = sbr.rel (0) target = $region61
  $region60: #{scm_forward.1} parent=0 // pred_region
    _
  $region61: #{scm_forward.1} parent=0 // pred_fallthru
    _

</llo_original>
